<compile_context>
chip_gen: v6e
topology: v6e:2x2x1
jax: 0.10.0
libtpu: 0.0.40
codegen_flags: <defaults>
</compile_context>

<pallas_src>
import functools

import jax
import jax.numpy as jnp
from jax.experimental import pallas as pl
from jax.experimental.pallas import tpu as pltpu


_VMEM_LIMIT = 32 * 1024 * 1024  # explicit scoped-VMEM budget (safe on v5e/v6e/v7x)


# ----------------------------- Pallas kernels -----------------------------

def _encoder_kernel(frames_ref, w_ref, b_ref, out_ref):
    # One row tile: relu(frames @ w + b).  frames: [TM, K] bf16, w: [K, N] bf16.
    acc = jnp.dot(frames_ref[...], w_ref[...], preferred_element_type=jnp.float32)
    out_ref[...] = jnp.maximum(acc + b_ref[...], 0.0).astype(out_ref.dtype)


def _layernorm_f32(x, g, b):
    mean = jnp.mean(x, axis=-1, keepdims=True)
    var = jnp.mean((x - mean) ** 2, axis=-1, keepdims=True)
    return (x - mean) * jax.lax.rsqrt(var + 1e-5) * g + b


def _mossformer_block_kernel(xq_ref, xkv_ref, ln_g_ref, ln_b_ref,
                             wq_ref, wk_ref, wv_ref, wu_ref, wo_ref,
                             out_ref,
                             q_sc, m_sc, l_sc, acc_sc):
    """Flash-style gated single-head attention block.

    grid = (B, L // tq, L // tk); the kv axis (last, "arbitrary") is the
    online-softmax reduction axis.  MXU inputs are bf16; LayerNorm stats,
    softmax and the accumulator stay f32.
    """
    ki = pl.program_id(2)
    nk = pl.num_programs(2)

    xq = xq_ref[0].astype(jnp.float32)                      # [tq, D]
    d = xq.shape[-1]
    scale = 1.0 / jnp.sqrt(jnp.float32(d))
    ln_g = ln_g_ref[...]
    ln_b = ln_b_ref[...]

    @pl.when(ki == 0)
    def _init():
        xn_q = _layernorm_f32(xq, ln_g, ln_b).astype(jnp.bfloat16)
        q = jnp.dot(xn_q, wq_ref[...], preferred_element_type=jnp.float32)
        q_sc[...] = (q * scale).astype(jnp.bfloat16)        # pre-scaled query
        m_sc[...] = jnp.full_like(m_sc, -jnp.inf)
        l_sc[...] = jnp.zeros_like(l_sc)
        acc_sc[...] = jnp.zeros_like(acc_sc)

    # K / V for this kv tile (LayerNorm is row-wise, so it tiles cleanly).
    xn_kv = _layernorm_f32(xkv_ref[0].astype(jnp.float32), ln_g, ln_b)
    xn_kv = xn_kv.astype(jnp.bfloat16)
    k = jnp.dot(xn_kv, wk_ref[...], preferred_element_type=jnp.float32)
    v = jnp.dot(xn_kv, wv_ref[...], preferred_element_type=jnp.float32)

    # Scores: contract the feature dim of q and k (no explicit transpose).
    s = jax.lax.dot_general(
        q_sc[...], k.astype(jnp.bfloat16),
        dimension_numbers=(((1,), (1,)), ((), ())),
        preferred_element_type=jnp.float32)                 # [tq, tk]

    m_new = jnp.maximum(m_sc[...], jnp.max(s, axis=-1, keepdims=True))
    alpha = jnp.exp(m_sc[...] - m_new)
    p = jnp.exp(s - m_new)
    l_sc[...] = alpha * l_sc[...] + jnp.sum(p, axis=-1, keepdims=True)
    acc_sc[...] = alpha * acc_sc[...] + jnp.dot(
        p.astype(jnp.bfloat16), v.astype(jnp.bfloat16),
        preferred_element_type=jnp.float32)
    m_sc[...] = m_new

    @pl.when(ki == nk - 1)
    def _finalize():
        xn_q = _layernorm_f32(xq, ln_g, ln_b).astype(jnp.bfloat16)
        u = jnp.dot(xn_q, wu_ref[...], preferred_element_type=jnp.float32)
        attn = acc_sc[...] * pl.reciprocal(l_sc[...], approx=True)
        gated = (attn * jax.nn.sigmoid(u)).astype(jnp.bfloat16)
        out = xq + jnp.dot(gated, wo_ref[...], preferred_element_type=jnp.float32)
        out_ref[0] = out.astype(out_ref.dtype)


def _mask_decode_kernel(feat_ref, enc_ref, wt_ref, wg_ref, wdec_ref, out_ref):
    """Fused gated mask head + per-speaker masked decoder for one row tile.

    feat: [TM, D] bf16, enc: [TM, N] bf16, wt/wg: [D, spk*N] bf16,
    wdec: [N, K] bf16 -> out: [TM, spk*K] f32 (single lane-dense store).
    The [TM, spk*N] masks stay in VMEM and never touch HBM.
    """
    y = feat_ref[...]
    t = jnp.tanh(jnp.dot(y, wt_ref[...], preferred_element_type=jnp.float32))
    g = jax.nn.sigmoid(jnp.dot(y, wg_ref[...], preferred_element_type=jnp.float32))
    masks = jnp.maximum(t * g, 0.0)                         # [TM, spk*N] f32
    e = enc_ref[...].astype(jnp.float32)                    # [TM, N]
    n = e.shape[-1]
    num_spk = masks.shape[-1] // n
    outs = []
    for s in range(num_spk):
        masked = (e * masks[:, s * n:(s + 1) * n]).astype(jnp.bfloat16)
        outs.append(jnp.dot(masked, wdec_ref[...],
                            preferred_element_type=jnp.float32))
    out_ref[...] = jnp.concatenate(outs, axis=-1)           # [TM, spk*K]


# ----------------------------- JAX wrapper -----------------------------

@functools.partial(jax.jit,
                   static_argnames=("kernel_size", "stride", "num_spk",
                                    "tq", "tk", "tm"))
def mossformer2_ss_forward(mixture, params, *, kernel_size, stride, num_spk,
                           tq=64, tk=64, tm=128):
    """mixture: [B, T] float32 -> est_sources [B, T_out, num_spk]."""
    B, T = mixture.shape
    K, S = kernel_size, stride
    L = (T - K) // S + 1
    N = params["w_enc"].shape[1]          # encoder dim
    D = params["wq"].shape[0]             # model dim (== N here)

    tq = min(tq, L)
    tk = min(tk, L)
    tm = min(tm, B * L)
    assert L % tq == 0 and L % tk == 0 and (B * L) % tm == 0, (L, tq, tk, tm)

    # ---- frame extraction (XLA glue) ----
    # TODO(synk): fold the strided frame gather (and the final overlap-add)
    # into the encoder / decoder kernels to avoid the K/S-times duplicated
    # frame tensor in HBM.
    idx = jnp.arange(L)[:, None] * S + jnp.arange(K)[None, :]    # [L, K]
    frames = mixture[:, idx].reshape(B * L, K).astype(jnp.bfloat16)

    # ---- encoder: row-tiled relu(frames @ w + b), pipelined & parallel ----
    enc_flat = pl.pallas_call(
        _encoder_kernel,
        out_shape=jax.ShapeDtypeStruct((B * L, N), jnp.bfloat16),
        grid=(pl.cdiv(B * L, tm),),
        in_specs=[
            pl.BlockSpec((tm, K), lambda i: (i, 0)),
            pl.BlockSpec((K, N), lambda i: (0, 0)),
            pl.BlockSpec((1, N), lambda i: (0, 0)),
        ],
        out_specs=pl.BlockSpec((tm, N), lambda i: (i, 0)),
        compiler_params=pltpu.CompilerParams(
            dimension_semantics=("parallel",),
            vmem_limit_bytes=_VMEM_LIMIT),
    )(frames, params["w_enc"], params["b_enc"])
    enc = enc_flat.reshape(B, L, N)                              # [B, L, N]

    # ---- MossFormer block: flash-style gated attention ----
    wspec = lambda shape: pl.BlockSpec(shape, lambda b, qi, ki: (0, 0))
    feats = pl.pallas_call(
        _mossformer_block_kernel,
        out_shape=jax.ShapeDtypeStruct((B, L, D), jnp.bfloat16),
        grid=(B, L // tq, L // tk),
        in_specs=[
            pl.BlockSpec((1, tq, D), lambda b, qi, ki: (b, qi, 0)),   # q rows
            pl.BlockSpec((1, tk, D), lambda b, qi, ki: (b, ki, 0)),   # kv rows
            wspec((1, D)), wspec((1, D)),
            wspec((D, D)), wspec((D, D)), wspec((D, D)), wspec((D, D)),
            wspec((D, D)),
        ],
        out_specs=pl.BlockSpec((1, tq, D), lambda b, qi, ki: (b, qi, 0)),
        scratch_shapes=[
            pltpu.VMEM((tq, D), jnp.bfloat16),   # pre-scaled q
            pltpu.VMEM((tq, 1), jnp.float32),    # running max
            pltpu.VMEM((tq, 1), jnp.float32),    # running denom
            pltpu.VMEM((tq, D), jnp.float32),    # running numerator
        ],
        compiler_params=pltpu.CompilerParams(
            dimension_semantics=("parallel", "parallel", "arbitrary"),
            vmem_limit_bytes=_VMEM_LIMIT),
    )(enc, enc, params["ln_g"], params["ln_b"], params["wq"], params["wk"],
      params["wv"], params["wu"], params["wo"])

    # ---- fused mask head + masked decoder (row-tiled; masks stay in VMEM) ----
    dec_flat = pl.pallas_call(
        _mask_decode_kernel,
        out_shape=jax.ShapeDtypeStruct((B * L, num_spk * K), jnp.float32),
        grid=(pl.cdiv(B * L, tm),),
        in_specs=[
            pl.BlockSpec((tm, D), lambda i: (i, 0)),
            pl.BlockSpec((tm, N), lambda i: (i, 0)),
            pl.BlockSpec((D, N * num_spk), lambda i: (0, 0)),
            pl.BlockSpec((D, N * num_spk), lambda i: (0, 0)),
            pl.BlockSpec((N, K), lambda i: (0, 0)),
        ],
        out_specs=pl.BlockSpec((tm, num_spk * K), lambda i: (i, 0)),
        compiler_params=pltpu.CompilerParams(
            dimension_semantics=("parallel",),
            vmem_limit_bytes=_VMEM_LIMIT),
    )(feats.reshape(B * L, D), enc_flat, params["w_mask_t"],
      params["w_mask_g"], params["w_dec"])

    # ---- overlap-add reconstruction (XLA glue) ----
    # TODO(synk): move the stride-S overlap-add into a small Pallas kernel.
    T_out = (L - 1) * S + K
    dec = dec_flat.reshape(B, L, num_spk, K).transpose(2, 0, 1, 3)  # [spk,B,L,K]
    sig = jnp.zeros((num_spk, B, T_out), jnp.float32)
    sig = sig.at[:, :, idx].add(dec)                                # [spk,B,T]
    est_sources = jnp.transpose(sig, (1, 2, 0))                     # [B,T,spk]
    return est_sources


def init_params(key, *, kernel_size, enc_dim, d_model, num_spk):
    ks = jax.random.split(key, 10)
    sc = 0.05

    def rn(k, shape):
        # matmul weights stored in bf16 (halves HBM bytes, doubles MXU rate)
        return (sc * jax.random.normal(k, shape)).astype(jnp.bfloat16)

    return {
        "w_enc": rn(ks[0], (kernel_size, enc_dim)),
        "b_enc": jnp.zeros((1, enc_dim), jnp.float32),
        "ln_g": jnp.ones((1, d_model), jnp.float32),
        "ln_b": jnp.zeros((1, d_model), jnp.float32),
        "wq": rn(ks[1], (d_model, d_model)),
        "wk": rn(ks[2], (d_model, d_model)),
        "wv": rn(ks[3], (d_model, d_model)),
        "wu": rn(ks[4], (d_model, d_model)),
        "wo": rn(ks[5], (d_model, d_model)),
        "w_mask_t": rn(ks[6], (d_model, enc_dim * num_spk)),
        "w_mask_g": rn(ks[7], (d_model, enc_dim * num_spk)),
        "w_dec": rn(ks[8], (enc_dim, kernel_size)),
    }


if __name__ == "__main__":
    # Small shapes consistent with a waveform separation forward pass,
    # but lane-dense (N = D = 128) and tile-friendly (L = 128).
    B = 2            # batch
    K = 16           # encoder kernel size
    S = 8            # encoder stride
    N = 128          # encoder / model dim (multiple of 128 -> lane-dense)
    L = 128          # encoder frames
    T = (L - 1) * S + K   # 1032 audio samples
    NUM_SPK = 2      # separated sources

    key = jax.random.PRNGKey(0)
    k_in, k_par = jax.random.split(key)
    mixture = jax.random.normal(k_in, (B, T), dtype=jnp.float32)
    params = init_params(k_par, kernel_size=K, enc_dim=N, d_model=N,
                         num_spk=NUM_SPK)

    est_sources = mossformer2_ss_forward(
        mixture, params, kernel_size=K, stride=S, num_spk=NUM_SPK)
    jax.block_until_ready(est_sources)

    assert est_sources.shape == (B, T, NUM_SPK), est_sources.shape
    assert bool(jnp.all(jnp.isfinite(est_sources)))
    print("KERNEL_OK")
</pallas_src>

<mosaic_0001>
module attributes {stable_mosaic.version = 11 : i64} {
  func.func @_encoder_kernel(%arg0: i32, %arg1: memref<128x16xbf16, #tpu.memory_space<vmem>>, %arg2: memref<16x128xbf16, #tpu.memory_space<vmem>>, %arg3: memref<1x128xf32, #tpu.memory_space<vmem>>, %arg4: memref<128x128xbf16, #tpu.memory_space<vmem>>) attributes {dimension_semantics = [#tpu.dimension_semantics<parallel>], iteration_bounds = array<i64: 2>, scalar_prefetch = 0 : i64, scratch_operands = 0 : i64, tpu.core_type = #tpu.core_type<tc>, window_params = [{transform_indices = @transform_0, window_bounds = array<i64: 128, 16>}, {pipeline_mode = #tpu.pipeline_mode<synchronous>, transform_indices = @transform_1, window_bounds = array<i64: 16, 128>}, {pipeline_mode = #tpu.pipeline_mode<synchronous>, transform_indices = @transform_2, window_bounds = array<i64: 1, 128>}, {transform_indices = @transform_3, window_bounds = array<i64: 128, 128>}]} {
    %c0 = arith.constant 0 : index
    %c0_0 = arith.constant 0 : index
    %0 = vector.load %arg1[%c0, %c0_0] : memref<128x16xbf16, #tpu.memory_space<vmem>>, vector<128x16xbf16>
    %c0_1 = arith.constant 0 : index
    %c0_2 = arith.constant 0 : index
    %1 = vector.load %arg2[%c0_1, %c0_2] : memref<16x128xbf16, #tpu.memory_space<vmem>>, vector<16x128xbf16>
    %cst = arith.constant dense<0.000000e+00> : vector<128x128xf32>
    %2 = tpu.matmul %0, %1, %cst {dimension_numbers = #tpu.dot_dimension_numbers<[1], [0], [0], [1], [0, 0, 1, 1], [], []>} : vector<128x16xbf16>, vector<16x128xbf16>, vector<128x128xf32> -> vector<128x128xf32>
    %c0_3 = arith.constant 0 : index
    %c0_4 = arith.constant 0 : index
    %3 = vector.load %arg3[%c0_3, %c0_4] : memref<1x128xf32, #tpu.memory_space<vmem>>, vector<1x128xf32>
    %4 = vector.broadcast %3 : vector<1x128xf32> to vector<128x128xf32>
    %5 = arith.addf %2, %4 : vector<128x128xf32>
    %cst_5 = arith.constant 0.000000e+00 : f32
    %6 = vector.broadcast %cst_5 : f32 to vector<128x128xf32>
    %7 = arith.maximumf %5, %6 : vector<128x128xf32>
    %8 = arith.truncf %7 : vector<128x128xf32> to vector<128x128xbf16>
    %c0_6 = arith.constant 0 : index
    %c0_7 = arith.constant 0 : index
    %9 = vector.load %arg4[%c0_6, %c0_7] : memref<128x128xbf16, #tpu.memory_space<vmem>>, vector<128x128xbf16>
    tpu.vector_store %arg4[%c0_6, %c0_7], %8 {strides = array<i32>} : memref<128x128xbf16, #tpu.memory_space<vmem>>, vector<128x128xbf16>,
    return
  }
  func.func @transform_0(%arg0: i32) -> (i32, i32) {
    %c0_i32 = arith.constant 0 : i32
    %c0_i32_0 = arith.constant 0 : i32
    return %arg0, %c0_i32 : i32, i32
  }
  func.func @transform_1(%arg0: i32) -> (i32, i32) {
    %c0_i32 = arith.constant 0 : i32
    %c0_i32_0 = arith.constant 0 : i32
    %c0_i32_1 = arith.constant 0 : i32
    return %c0_i32, %c0_i32_0 : i32, i32
  }
  func.func @transform_2(%arg0: i32) -> (i32, i32) {
    %c0_i32 = arith.constant 0 : i32
    %c0_i32_0 = arith.constant 0 : i32
    %c0_i32_1 = arith.constant 0 : i32
    return %c0_i32, %c0_i32_0 : i32, i32
  }
  func.func @transform_3(%arg0: i32) -> (i32, i32) {
    %c0_i32 = arith.constant 0 : i32
    %c0_i32_0 = arith.constant 0 : i32
    return %arg0, %c0_i32 : i32, i32
  }
}

module attributes {stable_mosaic.version = 11 : i64} {
  func.func @_mossformer_block_kernel(%arg0: i32, %arg1: i32, %arg2: i32, %arg3: memref<1x64x128xbf16, #tpu.memory_space<vmem>>, %arg4: memref<1x64x128xbf16, #tpu.memory_space<vmem>>, %arg5: memref<1x128xf32, #tpu.memory_space<vmem>>, %arg6: memref<1x128xf32, #tpu.memory_space<vmem>>, %arg7: memref<128x128xbf16, #tpu.memory_space<vmem>>, %arg8: memref<128x128xbf16, #tpu.memory_space<vmem>>, %arg9: memref<128x128xbf16, #tpu.memory_space<vmem>>, %arg10: memref<128x128xbf16, #tpu.memory_space<vmem>>, %arg11: memref<128x128xbf16, #tpu.memory_space<vmem>>, %arg12: memref<1x64x128xbf16, #tpu.memory_space<vmem>>, %arg13: memref<64x128xbf16, #tpu.memory_space<vmem>>, %arg14: memref<64x1xf32, #tpu.memory_space<vmem>>, %arg15: memref<64x1xf32, #tpu.memory_space<vmem>>, %arg16: memref<64x128xf32, #tpu.memory_space<vmem>>) attributes {dimension_semantics = [#tpu.dimension_semantics<parallel>, #tpu.dimension_semantics<parallel>, #tpu.dimension_semantics<arbitrary>], iteration_bounds = array<i64: 2, 2, 2>, scalar_prefetch = 0 : i64, scratch_operands = 4 : i64, tpu.core_type = #tpu.core_type<tc>, window_params = [{transform_indices = @transform_0, window_bounds = array<i64: 1, 64, 128>}, {transform_indices = @transform_1, window_bounds = array<i64: 1, 64, 128>}, {pipeline_mode = #tpu.pipeline_mode<synchronous>, transform_indices = @transform_2, window_bounds = array<i64: 1, 128>}, {pipeline_mode = #tpu.pipeline_mode<synchronous>, transform_indices = @transform_3, window_bounds = array<i64: 1, 128>}, {pipeline_mode = #tpu.pipeline_mode<synchronous>, transform_indices = @transform_4, window_bounds = array<i64: 128, 128>}, {pipeline_mode = #tpu.pipeline_mode<synchronous>, transform_indices = @transform_5, window_bounds = array<i64: 128, 128>}, {pipeline_mode = #tpu.pipeline_mode<synchronous>, transform_indices = @transform_6, window_bounds = array<i64: 128, 128>}, {pipeline_mode = #tpu.pipeline_mode<synchronous>, transform_indices = @transform_7, window_bounds = array<i64: 128, 128>}, {pipeline_mode = #tpu.pipeline_mode<synchronous>, transform_indices = @transform_8, window_bounds = array<i64: 128, 128>}, {transform_indices = @transform_9, window_bounds = array<i64: 1, 64, 128>}]} {
    %c0 = arith.constant 0 : index
    %c0_0 = arith.constant 0 : index
    %c0_1 = arith.constant 0 : index
    %0 = vector.load %arg3[%c0, %c0_0, %c0_1] : memref<1x64x128xbf16, #tpu.memory_space<vmem>>, vector<1x64x128xbf16>
    %1 = vector.shape_cast %0 : vector<1x64x128xbf16> to vector<64x128xbf16>
    %2 = arith.extf %1 : vector<64x128xbf16> to vector<64x128xf32>
    %cst = arith.constant 1.280000e+02 : f32
    %3 = math.sqrt %cst : f32
    %cst_2 = arith.constant 1.000000e+00 : f32
    %4 = arith.divf %cst_2, %3 : f32
    %c0_3 = arith.constant 0 : index
    %c0_4 = arith.constant 0 : index
    %5 = vector.load %arg5[%c0_3, %c0_4] : memref<1x128xf32, #tpu.memory_space<vmem>>, vector<1x128xf32>
    %c0_5 = arith.constant 0 : index
    %c0_6 = arith.constant 0 : index
    %6 = vector.load %arg6[%c0_5, %c0_6] : memref<1x128xf32, #tpu.memory_space<vmem>>, vector<1x128xf32>
    %c0_i32 = arith.constant 0 : i32
    %7 = arith.cmpi eq, %arg2, %c0_i32 : i32
    %8 = arith.extui %7 : i1 to i32
    %c0_i32_7 = arith.constant 0 : i32
    %9 = arith.cmpi ne, %8, %c0_i32_7 : i32
    scf.if %9 {
      %cst_43 = arith.constant dense<0.000000e+00> : vector<64xf32>
      %71 = vector.multi_reduction <add>, %2, %cst_43 [1] : vector<64x128xf32> to vector<64xf32>
      %72 = vector.shape_cast %71 : vector<64xf32> to vector<64x1xf32>
      %cst_44 = arith.constant 1.280000e+02 : f32
      %73 = vector.broadcast %cst_44 : f32 to vector<64x1xf32>
      %74 = arith.divf %72, %73 : vector<64x1xf32>
      %75 = vector.broadcast %74 : vector<64x1xf32> to vector<64x128xf32>
      %76 = arith.subf %2, %75 : vector<64x128xf32>
      %77 = arith.mulf %76, %76 : vector<64x128xf32>
      %cst_45 = arith.constant dense<0.000000e+00> : vector<64xf32>
      %78 = vector.multi_reduction <add>, %77, %cst_45 [1] : vector<64x128xf32> to vector<64xf32>
      %79 = vector.shape_cast %78 : vector<64xf32> to vector<64x1xf32>
      %cst_46 = arith.constant 1.280000e+02 : f32
      %80 = vector.broadcast %cst_46 : f32 to vector<64x1xf32>
      %81 = arith.divf %79, %80 : vector<64x1xf32>
      %82 = vector.broadcast %74 : vector<64x1xf32> to vector<64x128xf32>
      %83 = arith.subf %2, %82 : vector<64x128xf32>
      %cst_47 = arith.constant 9.99999974E-6 : f32
      %84 = vector.broadcast %cst_47 : f32 to vector<64x1xf32>
      %85 = arith.addf %81, %84 : vector<64x1xf32>
      %86 = math.rsqrt %85 : vector<64x1xf32>
      %87 = vector.broadcast %86 : vector<64x1xf32> to vector<64x128xf32>
      %88 = arith.mulf %83, %87 : vector<64x128xf32>
      %89 = vector.broadcast %5 : vector<1x128xf32> to vector<64x128xf32>
      %90 = arith.mulf %88, %89 : vector<64x128xf32>
      %91 = vector.broadcast %6 : vector<1x128xf32> to vector<64x128xf32>
      %92 = arith.addf %90, %91 : vector<64x128xf32>
      %93 = arith.truncf %92 : vector<64x128xf32> to vector<64x128xbf16>
      %c0_48 = arith.constant 0 : index
      %c0_49 = arith.constant 0 : index
      %94 = vector.load %arg7[%c0_48, %c0_49] : memref<128x128xbf16, #tpu.memory_space<vmem>>, vector<128x128xbf16>
      %cst_50 = arith.constant dense<0.000000e+00> : vector<64x128xf32>
      %95 = tpu.matmul %93, %94, %cst_50 {dimension_numbers = #tpu.dot_dimension_numbers<[1], [0], [0], [1], [0, 0, 1, 1], [], []>} : vector<64x128xbf16>, vector<128x128xbf16>, vector<64x128xf32> -> vector<64x128xf32>
      %96 = vector.broadcast %4 : f32 to vector<64x128xf32>
      %97 = arith.mulf %95, %96 : vector<64x128xf32>
      %98 = arith.truncf %97 : vector<64x128xf32> to vector<64x128xbf16>
      %c0_51 = arith.constant 0 : index
      %c0_52 = arith.constant 0 : index
      %99 = vector.load %arg13[%c0_51, %c0_52] : memref<64x128xbf16, #tpu.memory_space<vmem>>, vector<64x128xbf16>
      tpu.vector_store %arg13[%c0_51, %c0_52], %98 {strides = array<i32>} : memref<64x128xbf16, #tpu.memory_space<vmem>>, vector<64x128xbf16>,
      %cst_53 = arith.constant 0xFF800000 : f32
      %100 = vector.broadcast %cst_53 : f32 to vector<64x1xf32>
      %c0_54 = arith.constant 0 : index
      %c0_55 = arith.constant 0 : index
      %101 = vector.load %arg14[%c0_54, %c0_55] : memref<64x1xf32, #tpu.memory_space<vmem>>, vector<64x1xf32>
      tpu.vector_store %arg14[%c0_54, %c0_55], %100 {strides = array<i32>} : memref<64x1xf32, #tpu.memory_space<vmem>>, vector<64x1xf32>,
      %cst_56 = arith.constant 0.000000e+00 : f32
      %102 = vector.broadcast %cst_56 : f32 to vector<64x1xf32>
      %c0_57 = arith.constant 0 : index
      %c0_58 = arith.constant 0 : index
      %103 = vector.load %arg15[%c0_57, %c0_58] : memref<64x1xf32, #tpu.memory_space<vmem>>, vector<64x1xf32>
      tpu.vector_store %arg15[%c0_57, %c0_58], %102 {strides = array<i32>} : memref<64x1xf32, #tpu.memory_space<vmem>>, vector<64x1xf32>,
      %cst_59 = arith.constant 0.000000e+00 : f32
      %104 = vector.broadcast %cst_59 : f32 to vector<64x128xf32>
      %c0_60 = arith.constant 0 : index
      %c0_61 = arith.constant 0 : index
      %105 = vector.load %arg16[%c0_60, %c0_61] : memref<64x128xf32, #tpu.memory_space<vmem>>, vector<64x128xf32>
      tpu.vector_store %arg16[%c0_60, %c0_61], %104 {strides = array<i32>} : memref<64x128xf32, #tpu.memory_space<vmem>>, vector<64x128xf32>,
    } else {
    }
    %c0_8 = arith.constant 0 : index
    %c0_9 = arith.constant 0 : index
    %c0_10 = arith.constant 0 : index
    %10 = vector.load %arg4[%c0_8, %c0_9, %c0_10] : memref<1x64x128xbf16, #tpu.memory_space<vmem>>, vector<1x64x128xbf16>
    %11 = vector.shape_cast %10 : vector<1x64x128xbf16> to vector<64x128xbf16>
    %12 = arith.extf %11 : vector<64x128xbf16> to vector<64x128xf32>
    %cst_11 = arith.constant dense<0.000000e+00> : vector<64xf32>
    %13 = vector.multi_reduction <add>, %12, %cst_11 [1] : vector<64x128xf32> to vector<64xf32>
    %14 = vector.shape_cast %13 : vector<64xf32> to vector<64x1xf32>
    %cst_12 = arith.constant 1.280000e+02 : f32
    %15 = vector.broadcast %cst_12 : f32 to vector<64x1xf32>
    %16 = arith.divf %14, %15 : vector<64x1xf32>
    %17 = vector.broadcast %16 : vector<64x1xf32> to vector<64x128xf32>
    %18 = arith.subf %12, %17 : vector<64x128xf32>
    %19 = arith.mulf %18, %18 : vector<64x128xf32>
    %cst_13 = arith.constant dense<0.000000e+00> : vector<64xf32>
    %20 = vector.multi_reduction <add>, %19, %cst_13 [1] : vector<64x128xf32> to vector<64xf32>
    %21 = vector.shape_cast %20 : vector<64xf32> to vector<64x1xf32>
    %cst_14 = arith.constant 1.280000e+02 : f32
    %22 = vector.broadcast %cst_14 : f32 to vector<64x1xf32>
    %23 = arith.divf %21, %22 : vector<64x1xf32>
    %24 = vector.broadcast %16 : vector<64x1xf32> to vector<64x128xf32>
    %25 = arith.subf %12, %24 : vector<64x128xf32>
    %cst_15 = arith.constant 9.99999974E-6 : f32
    %26 = vector.broadcast %cst_15 : f32 to vector<64x1xf32>
    %27 = arith.addf %23, %26 : vector<64x1xf32>
    %28 = math.rsqrt %27 : vector<64x1xf32>
    %29 = vector.broadcast %28 : vector<64x1xf32> to vector<64x128xf32>
    %30 = arith.mulf %25, %29 : vector<64x128xf32>
    %31 = vector.broadcast %5 : vector<1x128xf32> to vector<64x128xf32>
    %32 = arith.mulf %30, %31 : vector<64x128xf32>
    %33 = vector.broadcast %6 : vector<1x128xf32> to vector<64x128xf32>
    %34 = arith.addf %32, %33 : vector<64x128xf32>
    %35 = arith.truncf %34 : vector<64x128xf32> to vector<64x128xbf16>
    %c0_16 = arith.constant 0 : index
    %c0_17 = arith.constant 0 : index
    %36 = vector.load %arg8[%c0_16, %c0_17] : memref<128x128xbf16, #tpu.memory_space<vmem>>, vector<128x128xbf16>
    %cst_18 = arith.constant dense<0.000000e+00> : vector<64x128xf32>
    %37 = tpu.matmul %35, %36, %cst_18 {dimension_numbers = #tpu.dot_dimension_numbers<[1], [0], [0], [1], [0, 0, 1, 1], [], []>} : vector<64x128xbf16>, vector<128x128xbf16>, vector<64x128xf32> -> vector<64x128xf32>
    %c0_19 = arith.constant 0 : index
    %c0_20 = arith.constant 0 : index
    %38 = vector.load %arg9[%c0_19, %c0_20] : memref<128x128xbf16, #tpu.memory_space<vmem>>, vector<128x128xbf16>
    %cst_21 = arith.constant dense<0.000000e+00> : vector<64x128xf32>
    %39 = tpu.matmul %35, %38, %cst_21 {dimension_numbers = #tpu.dot_dimension_numbers<[1], [0], [0], [1], [0, 0, 1, 1], [], []>} : vector<64x128xbf16>, vector<128x128xbf16>, vector<64x128xf32> -> vector<64x128xf32>
    %c0_22 = arith.constant 0 : index
    %c0_23 = arith.constant 0 : index
    %40 = vector.load %arg13[%c0_22, %c0_23] : memref<64x128xbf16, #tpu.memory_space<vmem>>, vector<64x128xbf16>
    %41 = arith.truncf %37 : vector<64x128xf32> to vector<64x128xbf16>
    %cst_24 = arith.constant dense<0.000000e+00> : vector<64x64xf32>
    %42 = tpu.matmul %40, %41, %cst_24 {dimension_numbers = #tpu.dot_dimension_numbers<[1], [1], [0], [0], [0, 0, 1, 0], [], []>} : vector<64x128xbf16>, vector<64x128xbf16>, vector<64x64xf32> -> vector<64x64xf32>
    %c0_25 = arith.constant 0 : index
    %c0_26 = arith.constant 0 : index
    %43 = vector.load %arg14[%c0_25, %c0_26] : memref<64x1xf32, #tpu.memory_space<vmem>>, vector<64x1xf32>
    %cst_27 = arith.constant dense<0xFF800000> : vector<64xf32>
    %44 = vector.multi_reduction <maximumf>, %42, %cst_27 [1] : vector<64x64xf32> to vector<64xf32>
    %45 = vector.shape_cast %44 : vector<64xf32> to vector<64x1xf32>
    %46 = arith.maximumf %43, %45 : vector<64x1xf32>
    %c0_28 = arith.constant 0 : index
    %c0_29 = arith.constant 0 : index
    %47 = vector.load %arg14[%c0_28, %c0_29] : memref<64x1xf32, #tpu.memory_space<vmem>>, vector<64x1xf32>
    %48 = arith.subf %47, %46 : vector<64x1xf32>
    %49 = math.exp %48 : vector<64x1xf32>
    %50 = vector.broadcast %46 : vector<64x1xf32> to vector<64x64xf32>
    %51 = arith.subf %42, %50 : vector<64x64xf32>
    %52 = math.exp %51 : vector<64x64xf32>
    %c0_30 = arith.constant 0 : index
    %c0_31 = arith.constant 0 : index
    %53 = vector.load %arg15[%c0_30, %c0_31] : memref<64x1xf32, #tpu.memory_space<vmem>>, vector<64x1xf32>
    %54 = arith.mulf %49, %53 : vector<64x1xf32>
    %cst_32 = arith.constant dense<0.000000e+00> : vector<64xf32>
    %55 = vector.multi_reduction <add>, %52, %cst_32 [1] : vector<64x64xf32> to vector<64xf32>
    %56 = vector.shape_cast %55 : vector<64xf32> to vector<64x1xf32>
    %57 = arith.addf %54, %56 : vector<64x1xf32>
    %c0_33 = arith.constant 0 : index
    %c0_34 = arith.constant 0 : index
    %58 = vector.load %arg15[%c0_33, %c0_34] : memref<64x1xf32, #tpu.memory_space<vmem>>, vector<64x1xf32>
    tpu.vector_store %arg15[%c0_33, %c0_34], %57 {strides = array<i32>} : memref<64x1xf32, #tpu.memory_space<vmem>>, vector<64x1xf32>,
    %c0_35 = arith.constant 0 : index
    %c0_36 = arith.constant 0 : index
    %59 = vector.load %arg16[%c0_35, %c0_36] : memref<64x128xf32, #tpu.memory_space<vmem>>, vector<64x128xf32>
    %60 = vector.broadcast %49 : vector<64x1xf32> to vector<64x128xf32>
    %61 = arith.mulf %60, %59 : vector<64x128xf32>
    %62 = arith.truncf %52 : vector<64x64xf32> to vector<64x64xbf16>
    %63 = arith.truncf %39 : vector<64x128xf32> to vector<64x128xbf16>
    %cst_37 = arith.constant dense<0.000000e+00> : vector<64x128xf32>
    %64 = tpu.matmul %62, %63, %cst_37 {dimension_numbers = #tpu.dot_dimension_numbers<[1], [0], [0], [1], [0, 0, 1, 1], [], []>} : vector<64x64xbf16>, vector<64x128xbf16>, vector<64x128xf32> -> vector<64x128xf32>
    %65 = arith.addf %61, %64 : vector<64x128xf32>
    %c0_38 = arith.constant 0 : index
    %c0_39 = arith.constant 0 : index
    %66 = vector.load %arg16[%c0_38, %c0_39] : memref<64x128xf32, #tpu.memory_space<vmem>>, vector<64x128xf32>
    tpu.vector_store %arg16[%c0_38, %c0_39], %65 {strides = array<i32>} : memref<64x128xf32, #tpu.memory_space<vmem>>, vector<64x128xf32>,
    %c0_40 = arith.constant 0 : index
    %c0_41 = arith.constant 0 : index
    %67 = vector.load %arg14[%c0_40, %c0_41] : memref<64x1xf32, #tpu.memory_space<vmem>>, vector<64x1xf32>
    tpu.vector_store %arg14[%c0_40, %c0_41], %46 {strides = array<i32>} : memref<64x1xf32, #tpu.memory_space<vmem>>, vector<64x1xf32>,
    %c1_i32 = arith.constant 1 : i32
    %68 = arith.cmpi eq, %arg2, %c1_i32 : i32
    %69 = arith.extui %68 : i1 to i32
    %c0_i32_42 = arith.constant 0 : i32
    %70 = arith.cmpi ne, %69, %c0_i32_42 : i32
    scf.if %70 {
      %cst_43 = arith.constant dense<0.000000e+00> : vector<64xf32>
      %71 = vector.multi_reduction <add>, %2, %cst_43 [1] : vector<64x128xf32> to vector<64xf32>
      %72 = vector.shape_cast %71 : vector<64xf32> to vector<64x1xf32>
      %cst_44 = arith.constant 1.280000e+02 : f32
      %73 = vector.broadcast %cst_44 : f32 to vector<64x1xf32>
      %74 = arith.divf %72, %73 : vector<64x1xf32>
      %75 = vector.broadcast %74 : vector<64x1xf32> to vector<64x128xf32>
      %76 = arith.subf %2, %75 : vector<64x128xf32>
      %77 = arith.mulf %76, %76 : vector<64x128xf32>
      %cst_45 = arith.constant dense<0.000000e+00> : vector<64xf32>
      %78 = vector.multi_reduction <add>, %77, %cst_45 [1] : vector<64x128xf32> to vector<64xf32>
      %79 = vector.shape_cast %78 : vector<64xf32> to vector<64x1xf32>
      %cst_46 = arith.constant 1.280000e+02 : f32
      %80 = vector.broadcast %cst_46 : f32 to vector<64x1xf32>
      %81 = arith.divf %79, %80 : vector<64x1xf32>
      %82 = vector.broadcast %74 : vector<64x1xf32> to vector<64x128xf32>
      %83 = arith.subf %2, %82 : vector<64x128xf32>
      %cst_47 = arith.constant 9.99999974E-6 : f32
      %84 = vector.broadcast %cst_47 : f32 to vector<64x1xf32>
      %85 = arith.addf %81, %84 : vector<64x1xf32>
      %86 = math.rsqrt %85 : vector<64x1xf32>
      %87 = vector.broadcast %86 : vector<64x1xf32> to vector<64x128xf32>
      %88 = arith.mulf %83, %87 : vector<64x128xf32>
      %89 = vector.broadcast %5 : vector<1x128xf32> to vector<64x128xf32>
      %90 = arith.mulf %88, %89 : vector<64x128xf32>
      %91 = vector.broadcast %6 : vector<1x128xf32> to vector<64x128xf32>
      %92 = arith.addf %90, %91 : vector<64x128xf32>
      %93 = arith.truncf %92 : vector<64x128xf32> to vector<64x128xbf16>
      %c0_48 = arith.constant 0 : index
      %c0_49 = arith.constant 0 : index
      %94 = vector.load %arg10[%c0_48, %c0_49] : memref<128x128xbf16, #tpu.memory_space<vmem>>, vector<128x128xbf16>
      %cst_50 = arith.constant dense<0.000000e+00> : vector<64x128xf32>
      %95 = tpu.matmul %93, %94, %cst_50 {dimension_numbers = #tpu.dot_dimension_numbers<[1], [0], [0], [1], [0, 0, 1, 1], [], []>} : vector<64x128xbf16>, vector<128x128xbf16>, vector<64x128xf32> -> vector<64x128xf32>
      %c0_51 = arith.constant 0 : index
      %c0_52 = arith.constant 0 : index
      %96 = vector.load %arg16[%c0_51, %c0_52] : memref<64x128xf32, #tpu.memory_space<vmem>>, vector<64x128xf32>
      %c0_53 = arith.constant 0 : index
      %c0_54 = arith.constant 0 : index
      %97 = vector.load %arg15[%c0_53, %c0_54] : memref<64x1xf32, #tpu.memory_space<vmem>>, vector<64x1xf32>
      %98 = tpu.reciprocal %97 {approx = true} : vector<64x1xf32> -> vector<64x1xf32>
      %99 = vector.broadcast %98 : vector<64x1xf32> to vector<64x128xf32>
      %100 = arith.mulf %96, %99 : vector<64x128xf32>
      %101 = arith.negf %95 : vector<64x128xf32>
      %102 = math.exp %101 : vector<64x128xf32>
      %cst_55 = arith.constant 1.000000e+00 : f32
      %103 = vector.broadcast %cst_55 : f32 to vector<64x128xf32>
      %104 = arith.addf %103, %102 : vector<64x128xf32>
      %105 = arith.divf %103, %104 : vector<64x128xf32>
      %106 = arith.mulf %100, %105 : vector<64x128xf32>
      %107 = arith.truncf %106 : vector<64x128xf32> to vector<64x128xbf16>
      %c0_56 = arith.constant 0 : index
      %c0_57 = arith.constant 0 : index
      %108 = vector.load %arg11[%c0_56, %c0_57] : memref<128x128xbf16, #tpu.memory_space<vmem>>, vector<128x128xbf16>
      %cst_58 = arith.constant dense<0.000000e+00> : vector<64x128xf32>
      %109 = tpu.matmul %107, %108, %cst_58 {dimension_numbers = #tpu.dot_dimension_numbers<[1], [0], [0], [1], [0, 0, 1, 1], [], []>} : vector<64x128xbf16>, vector<128x128xbf16>, vector<64x128xf32> -> vector<64x128xf32>
      %110 = arith.addf %2, %109 : vector<64x128xf32>
      %111 = arith.truncf %110 : vector<64x128xf32> to vector<64x128xbf16>
      %c0_59 = arith.constant 0 : index
      %c0_60 = arith.constant 0 : index
      %c0_61 = arith.constant 0 : index
      %112 = vector.load %arg12[%c0_59, %c0_60, %c0_61] : memref<1x64x128xbf16, #tpu.memory_space<vmem>>, vector<1x64x128xbf16>
      %113 = vector.shape_cast %112 : vector<1x64x128xbf16> to vector<64x128xbf16>
      %114 = vector.shape_cast %111 : vector<64x128xbf16> to vector<1x64x128xbf16>
      tpu.vector_store %arg12[%c0_59, %c0_60, %c0_61], %114 {strides = array<i32>} : memref<1x64x128xbf16, #tpu.memory_space<vmem>>, vector<1x64x128xbf16>,
    } else {
    }
    return
  }
  func.func @transform_0(%arg0: i32, %arg1: i32, %arg2: i32) -> (i32, i32, i32) {
    %c0_i32 = arith.constant 0 : i32
    %c0_i32_0 = arith.constant 0 : i32
    return %arg0, %arg1, %c0_i32 : i32, i32, i32
  }
  func.func @transform_1(%arg0: i32, %arg1: i32, %arg2: i32) -> (i32, i32, i32) {
    %c0_i32 = arith.constant 0 : i32
    %c0_i32_0 = arith.constant 0 : i32
    return %arg0, %arg2, %c0_i32 : i32, i32, i32
  }
  func.func @transform_2(%arg0: i32, %arg1: i32, %arg2: i32) -> (i32, i32) {
    %c0_i32 = arith.constant 0 : i32
    %c0_i32_0 = arith.constant 0 : i32
    %c0_i32_1 = arith.constant 0 : i32
    return %c0_i32, %c0_i32_0 : i32, i32
  }
  func.func @transform_3(%arg0: i32, %arg1: i32, %arg2: i32) -> (i32, i32) {
    %c0_i32 = arith.constant 0 : i32
    %c0_i32_0 = arith.constant 0 : i32
    %c0_i32_1 = arith.constant 0 : i32
    return %c0_i32, %c0_i32_0 : i32, i32
  }
  func.func @transform_4(%arg0: i32, %arg1: i32, %arg2: i32) -> (i32, i32) {
    %c0_i32 = arith.constant 0 : i32
    %c0_i32_0 = arith.constant 0 : i32
    %c0_i32_1 = arith.constant 0 : i32
    return %c0_i32, %c0_i32_0 : i32, i32
  }
  func.func @transform_5(%arg0: i32, %arg1: i32, %arg2: i32) -> (i32, i32) {
    %c0_i32 = arith.constant 0 : i32
    %c0_i32_0 = arith.constant 0 : i32
    %c0_i32_1 = arith.constant 0 : i32
    return %c0_i32, %c0_i32_0 : i32, i32
  }
  func.func @transform_6(%arg0: i32, %arg1: i32, %arg2: i32) -> (i32, i32) {
    %c0_i32 = arith.constant 0 : i32
    %c0_i32_0 = arith.constant 0 : i32
    %c0_i32_1 = arith.constant 0 : i32
    return %c0_i32, %c0_i32_0 : i32, i32
  }
  func.func @transform_7(%arg0: i32, %arg1: i32, %arg2: i32) -> (i32, i32) {
    %c0_i32 = arith.constant 0 : i32
    %c0_i32_0 = arith.constant 0 : i32
    %c0_i32_1 = arith.constant 0 : i32
    return %c0_i32, %c0_i32_0 : i32, i32
  }
  func.func @transform_8(%arg0: i32, %arg1: i32, %arg2: i32) -> (i32, i32) {
    %c0_i32 = arith.constant 0 : i32
    %c0_i32_0 = arith.constant 0 : i32
    %c0_i32_1 = arith.constant 0 : i32
    return %c0_i32, %c0_i32_0 : i32, i32
  }
  func.func @transform_9(%arg0: i32, %arg1: i32, %arg2: i32) -> (i32, i32, i32) {
    %c0_i32 = arith.constant 0 : i32
    %c0_i32_0 = arith.constant 0 : i32
    return %arg0, %arg1, %c0_i32 : i32, i32, i32
  }
}

module attributes {stable_mosaic.version = 11 : i64} {
  func.func @_mask_decode_kernel(%arg0: i32, %arg1: memref<128x128xbf16, #tpu.memory_space<vmem>>, %arg2: memref<128x128xbf16, #tpu.memory_space<vmem>>, %arg3: memref<128x256xbf16, #tpu.memory_space<vmem>>, %arg4: memref<128x256xbf16, #tpu.memory_space<vmem>>, %arg5: memref<128x16xbf16, #tpu.memory_space<vmem>>, %arg6: memref<128x32xf32, #tpu.memory_space<vmem>>) attributes {dimension_semantics = [#tpu.dimension_semantics<parallel>], iteration_bounds = array<i64: 2>, scalar_prefetch = 0 : i64, scratch_operands = 0 : i64, tpu.core_type = #tpu.core_type<tc>, window_params = [{transform_indices = @transform_0, window_bounds = array<i64: 128, 128>}, {transform_indices = @transform_1, window_bounds = array<i64: 128, 128>}, {pipeline_mode = #tpu.pipeline_mode<synchronous>, transform_indices = @transform_2, window_bounds = array<i64: 128, 256>}, {pipeline_mode = #tpu.pipeline_mode<synchronous>, transform_indices = @transform_3, window_bounds = array<i64: 128, 256>}, {pipeline_mode = #tpu.pipeline_mode<synchronous>, transform_indices = @transform_4, window_bounds = array<i64: 128, 16>}, {transform_indices = @transform_5, window_bounds = array<i64: 128, 32>}]} {
    %c0 = arith.constant 0 : index
    %c0_0 = arith.constant 0 : index
    %0 = vector.load %arg1[%c0, %c0_0] : memref<128x128xbf16, #tpu.memory_space<vmem>>, vector<128x128xbf16>
    %c0_1 = arith.constant 0 : index
    %c0_2 = arith.constant 0 : index
    %1 = vector.load %arg3[%c0_1, %c0_2] : memref<128x256xbf16, #tpu.memory_space<vmem>>, vector<128x256xbf16>
    %cst = arith.constant dense<0.000000e+00> : vector<128x256xf32>
    %2 = tpu.matmul %0, %1, %cst {dimension_numbers = #tpu.dot_dimension_numbers<[1], [0], [0], [1], [0, 0, 1, 1], [], []>} : vector<128x128xbf16>, vector<128x256xbf16>, vector<128x256xf32> -> vector<128x256xf32>
    %3 = math.tanh %2 : vector<128x256xf32>
    %c0_3 = arith.constant 0 : index
    %c0_4 = arith.constant 0 : index
    %4 = vector.load %arg4[%c0_3, %c0_4] : memref<128x256xbf16, #tpu.memory_space<vmem>>, vector<128x256xbf16>
    %cst_5 = arith.constant dense<0.000000e+00> : vector<128x256xf32>
    %5 = tpu.matmul %0, %4, %cst_5 {dimension_numbers = #tpu.dot_dimension_numbers<[1], [0], [0], [1], [0, 0, 1, 1], [], []>} : vector<128x128xbf16>, vector<128x256xbf16>, vector<128x256xf32> -> vector<128x256xf32>
    %6 = arith.negf %5 : vector<128x256xf32>
    %7 = math.exp %6 : vector<128x256xf32>
    %cst_6 = arith.constant 1.000000e+00 : f32
    %8 = vector.broadcast %cst_6 : f32 to vector<128x256xf32>
    %9 = arith.addf %8, %7 : vector<128x256xf32>
    %10 = arith.divf %8, %9 : vector<128x256xf32>
    %11 = arith.mulf %3, %10 : vector<128x256xf32>
    %cst_7 = arith.constant 0.000000e+00 : f32
    %12 = vector.broadcast %cst_7 : f32 to vector<128x256xf32>
    %13 = arith.maximumf %11, %12 : vector<128x256xf32>
    %c0_8 = arith.constant 0 : index
    %c0_9 = arith.constant 0 : index
    %14 = vector.load %arg2[%c0_8, %c0_9] : memref<128x128xbf16, #tpu.memory_space<vmem>>, vector<128x128xbf16>
    %15 = arith.extf %14 : vector<128x128xbf16> to vector<128x128xf32>
    %16 = vector.extract_strided_slice %13 {offsets = [0, 0], sizes = [128, 128], strides = [1, 1]} : vector<128x256xf32> to vector<128x128xf32>
    %17 = arith.mulf %15, %16 : vector<128x128xf32>
    %18 = arith.truncf %17 : vector<128x128xf32> to vector<128x128xbf16>
    %c0_10 = arith.constant 0 : index
    %c0_11 = arith.constant 0 : index
    %19 = vector.load %arg5[%c0_10, %c0_11] : memref<128x16xbf16, #tpu.memory_space<vmem>>, vector<128x16xbf16>
    %cst_12 = arith.constant dense<0.000000e+00> : vector<128x16xf32>
    %20 = tpu.matmul %18, %19, %cst_12 {dimension_numbers = #tpu.dot_dimension_numbers<[1], [0], [0], [1], [0, 0, 1, 1], [], []>} : vector<128x128xbf16>, vector<128x16xbf16>, vector<128x16xf32> -> vector<128x16xf32>
    %21 = vector.extract_strided_slice %13 {offsets = [0, 128], sizes = [128, 128], strides = [1, 1]} : vector<128x256xf32> to vector<128x128xf32>
    %22 = arith.mulf %15, %21 : vector<128x128xf32>
    %23 = arith.truncf %22 : vector<128x128xf32> to vector<128x128xbf16>
    %c0_13 = arith.constant 0 : index
    %c0_14 = arith.constant 0 : index
    %24 = vector.load %arg5[%c0_13, %c0_14] : memref<128x16xbf16, #tpu.memory_space<vmem>>, vector<128x16xbf16>
    %cst_15 = arith.constant dense<0.000000e+00> : vector<128x16xf32>
    %25 = tpu.matmul %23, %24, %cst_15 {dimension_numbers = #tpu.dot_dimension_numbers<[1], [0], [0], [1], [0, 0, 1, 1], [], []>} : vector<128x128xbf16>, vector<128x16xbf16>, vector<128x16xf32> -> vector<128x16xf32>
    %26 = tpu.concatenate %20, %25 in 1 : vector<128x16xf32>, vector<128x16xf32> -> vector<128x32xf32>
    %c0_16 = arith.constant 0 : index
    %c0_17 = arith.constant 0 : index
    %27 = vector.load %arg6[%c0_16, %c0_17] : memref<128x32xf32, #tpu.memory_space<vmem>>, vector<128x32xf32>
    tpu.vector_store %arg6[%c0_16, %c0_17], %26 {strides = array<i32>} : memref<128x32xf32, #tpu.memory_space<vmem>>, vector<128x32xf32>,
    return
  }
  func.func @transform_0(%arg0: i32) -> (i32, i32) {
    %c0_i32 = arith.constant 0 : i32
    %c0_i32_0 = arith.constant 0 : i32
    return %arg0, %c0_i32 : i32, i32
  }
  func.func @transform_1(%arg0: i32) -> (i32, i32) {
    %c0_i32 = arith.constant 0 : i32
    %c0_i32_0 = arith.constant 0 : i32
    return %arg0, %c0_i32 : i32, i32
  }
  func.func @transform_2(%arg0: i32) -> (i32, i32) {
    %c0_i32 = arith.constant 0 : i32
    %c0_i32_0 = arith.constant 0 : i32
    %c0_i32_1 = arith.constant 0 : i32
    return %c0_i32, %c0_i32_0 : i32, i32
  }
  func.func @transform_3(%arg0: i32) -> (i32, i32) {
    %c0_i32 = arith.constant 0 : i32
    %c0_i32_0 = arith.constant 0 : i32
    %c0_i32_1 = arith.constant 0 : i32
    return %c0_i32, %c0_i32_0 : i32, i32
  }
  func.func @transform_4(%arg0: i32) -> (i32, i32) {
    %c0_i32 = arith.constant 0 : i32
    %c0_i32_0 = arith.constant 0 : i32
    %c0_i32_1 = arith.constant 0 : i32
    return %c0_i32, %c0_i32_0 : i32, i32
  }
  func.func @transform_5(%arg0: i32) -> (i32, i32) {
    %c0_i32 = arith.constant 0 : i32
    %c0_i32_0 = arith.constant 0 : i32
    return %arg0, %c0_i32 : i32, i32
  }
}

</mosaic_0001>

<llo_original>
// kernel: mossformer2_ss_forward.3
$region0: #{mossformer2_ss_forward.3}
  #allocation0 [shape = 'u32[]', space=smem, size = 0x4, offset = 0x4, fixed_abs, tag = 'smem constant byte address 0x4 - core index']
  #allocation1 [shape = 'u32[144,128]{1,0:T(1,128)}', space=vmem, size = 0x12000, scoped, tag = 'internal scratch']
  %s0 = inlined_call_operand.vmem [shape: bf16[256,16], index: 0, kind: input, shape index: {}]
  %s1 = inlined_call_operand.vmem [shape: bf16[16,128], index: 1, kind: input, shape index: {}]
  %s2 = inlined_call_operand.vmem [shape: f32[1,128], index: 2, kind: input, shape index: {}]
  %s3 = inlined_call_operand.vmem [shape: bf16[256,128], index: 3, kind: output, shape index: {}]
  %s4 = sld [smem:[#allocation0]]
  $region45: #{mossformer2_ss_forward.3} parent=0
    _
  %s6 = ssub.s32 1, %s4
  %s7 = scalar_select 0, %s6, %s4
  loop: start=0, step=1, limit=4
  $region2: #{mossformer2_ss_forward.3} parent=0 // loop_pre_header
    _
  $region3: #{mossformer2_ss_forward.3} parent=0 // loop_header
    %s9 = sphi 0, %s13
    %p10 = scmp.ge.s32.totalorder %s9, 4
    %s19 = sphi 0, %s21
    %s22 = sphi 0, %s19
    %s23 = sphi 0, %s22
    %s39 = sphi 0, %s23
    %s43 = sphi 0, %s43
    %s45 = sphi 0, %s43
    %s46 = sphi 0, %s45
    %s60 = sphi 0, %s46
    %s64 = sphi 0, %s64
    %s66 = sphi 0, %s64
    %s67 = sphi 0, %s66
    %s81 = sphi 0, %s67
    %s87 = sphi 0, %s89
    %s90 = sphi 0, %s87
    %s91 = sphi 0, %s90
    %s107 = sphi 0, %s91
  $region4: #{mossformer2_ss_forward.3} parent=0 // loop_header_branch
    %12 = sbr.rel (%p10) target = $region8
  $region5: #{mossformer2_ss_forward.3} parent=0 // loop_body
    %s14 = ssub.s32 %s9, 1
    %s15 = ssub.s32 %s9, 2
    %s16 = sadd.s32 %s9, 1
    %s17 = ssub.s32 %s9, %s16
    %p18 = scmp.eq.s32.totalorder %s17, 0
    %s20 = sadd.s32 %s19, 1
    %s21 = scalar_select %p18, %s19, %s20
    %p24 = pneg %p18
    %p25 = scmp.eq.s32.totalorder %s9, 1
    %p26 = por %p24, %p25
    %p27 = scmp.ne.s32.totalorder %s19, %s22
    %p28 = scmp.eq.s32.totalorder %s9, 0
    %p29 = por %p27, %p28
    %p30 = scmp.ne.s32.totalorder %s19, %s22
    %p31 = scmp.eq.s32.totalorder %s14, 1
    %p32 = por %p30, %p31
    %p33 = scmp.ne.s32.totalorder %s22, %s23
    %p34 = scmp.eq.s32.totalorder %s14, 0
    %p35 = por %p33, %p34
    %p36 = scmp.ne.s32.totalorder %s22, %s23
    %p37 = scmp.eq.s32.totalorder %s15, 1
    %p38 = por %p36, %p37
    %p40 = scmp.ne.s32.totalorder %s23, %s39
    %p41 = scmp.eq.s32.totalorder %s15, 0
    %p42 = por %p40, %p41
    %s44 = sadd.s32 %s43, 1
    %p47 = scmp.eq.s32.totalorder %s9, 1
    %p48 = scmp.ne.s32.totalorder %s43, %s45
    %p49 = scmp.eq.s32.totalorder %s9, 0
    %p50 = por %p48, %p49
    %p51 = scmp.ne.s32.totalorder %s43, %s45
    %p52 = scmp.eq.s32.totalorder %s14, 1
    %p53 = por %p51, %p52
    %p54 = scmp.ne.s32.totalorder %s45, %s46
    %p55 = scmp.eq.s32.totalorder %s14, 0
    %p56 = por %p54, %p55
    %p57 = scmp.ne.s32.totalorder %s45, %s46
    %p58 = scmp.eq.s32.totalorder %s15, 1
    %p59 = por %p57, %p58
    %p61 = scmp.ne.s32.totalorder %s46, %s60
    %p62 = scmp.eq.s32.totalorder %s15, 0
    %p63 = por %p61, %p62
    %s65 = sadd.s32 %s64, 1
    %p68 = scmp.eq.s32.totalorder %s9, 1
    %p69 = scmp.ne.s32.totalorder %s64, %s66
    %p70 = scmp.eq.s32.totalorder %s9, 0
    %p71 = por %p69, %p70
    %p72 = scmp.ne.s32.totalorder %s64, %s66
    %p73 = scmp.eq.s32.totalorder %s14, 1
    %p74 = por %p72, %p73
    %p75 = scmp.ne.s32.totalorder %s66, %s67
    %p76 = scmp.eq.s32.totalorder %s14, 0
    %p77 = por %p75, %p76
    %p78 = scmp.ne.s32.totalorder %s66, %s67
    %p79 = scmp.eq.s32.totalorder %s15, 1
    %p80 = por %p78, %p79
    %p82 = scmp.ne.s32.totalorder %s67, %s81
    %p83 = scmp.eq.s32.totalorder %s15, 0
    %p84 = por %p82, %p83
    %s85 = ssub.s32 %s9, %s16
    %p86 = scmp.eq.s32.totalorder %s85, 0
    %s88 = sadd.s32 %s87, 1
    %s89 = scalar_select %p86, %s87, %s88
    %p92 = pneg %p86
    %p93 = scmp.eq.s32.totalorder %s9, 1
    %p94 = por %p92, %p93
    %p95 = scmp.ne.s32.totalorder %s87, %s90
    %p96 = scmp.eq.s32.totalorder %s9, 0
    %p97 = por %p95, %p96
    %p98 = scmp.ne.s32.totalorder %s87, %s90
    %p99 = scmp.eq.s32.totalorder %s14, 1
    %p100 = por %p98, %p99
    %p101 = scmp.ne.s32.totalorder %s90, %s91
    %p102 = scmp.eq.s32.totalorder %s14, 0
    %p103 = por %p101, %p102
    %p104 = scmp.ne.s32.totalorder %s90, %s91
    %p105 = scmp.eq.s32.totalorder %s15, 1
    %p106 = por %p104, %p105
    %p108 = scmp.ne.s32.totalorder %s91, %s107
    %p109 = scmp.eq.s32.totalorder %s15, 0
    %p110 = por %p108, %p109
    %p111 = scmp.le.s32.totalorder 1, %s9
    %p112 = scmp.lt.s32.totalorder %s9, 3
    %p113 = pnand %p111, %p112
    %p114 = pneg %p113
    // Predicated region
    $region9: #{mossformer2_ss_forward.3} parent=5 // pred_check
      _
    $region10: #{mossformer2_ss_forward.3} parent=5 // pred_check_branch
      %116 = sbr.rel (%p113) target = $region12
    $region11: #{mossformer2_ss_forward.3} parent=5 // pred_region
      %s117 = ssub.s32 %s9, 1
      // Predicated region
      $region13: #{mossformer2_ss_forward.3} parent=11 // pred_check
        %p118 = pneg %p56
      $region14: #{mossformer2_ss_forward.3} parent=11 // pred_check_branch
        %120 = sbr.rel (%p118) target = $region16
      $region15: #{mossformer2_ss_forward.3} parent=11 // pred_region
        _
      $region16: #{mossformer2_ss_forward.3} parent=11 // pred_fallthru
        _
      // Predicated region
      $region17: #{mossformer2_ss_forward.3} parent=11 // pred_check
        %p121 = pneg %p77
      $region18: #{mossformer2_ss_forward.3} parent=11 // pred_check_branch
        %123 = sbr.rel (%p121) target = $region20
      $region19: #{mossformer2_ss_forward.3} parent=11 // pred_region
        _
      $region20: #{mossformer2_ss_forward.3} parent=11 // pred_fallthru
        _
    $region12: #{mossformer2_ss_forward.3} parent=5 // pred_fallthru
      _
    %p124 = scmp.lt.s32.totalorder %s9, 2
    // Predicated region
    $region21: #{mossformer2_ss_forward.3} parent=5 // pred_check
      %p125 = pneg %p124
    $region22: #{mossformer2_ss_forward.3} parent=5 // pred_check_branch
      %127 = sbr.rel (%p125) target = $region24
    $region23: #{mossformer2_ss_forward.3} parent=5 // pred_region
      // Predicated region
      $region25: #{mossformer2_ss_forward.3} parent=23 // pred_check
        %p128 = pneg %p29
      $region26: #{mossformer2_ss_forward.3} parent=23 // pred_check_branch
        %130 = sbr.rel (%p128) target = $region28
      $region27: #{mossformer2_ss_forward.3} parent=23 // pred_region
        %s131 = smul.u32 16, %s9
        %p132 = scmp.lt.s32.totalorder %s131, 31
        %s133 = scalar_select %p132, %s131, 31
        %s134 = smul.addr %s133, 4
        %s135 = scalar_lea.vmem %s0, %s134
        %s136 = smul.u32 16, %s9
      $region28: #{mossformer2_ss_forward.3} parent=23 // pred_fallthru
        _
    $region24: #{mossformer2_ss_forward.3} parent=5 // pred_fallthru
      _
    %p137 = scmp.le.s32.totalorder 1, %s9
    %p138 = scmp.lt.s32.totalorder %s9, 3
    %p139 = pnand %p137, %p138
    %p140 = pneg %p139
    // Predicated region
    $region29: #{mossformer2_ss_forward.3} parent=5 // pred_check
      _
    $region30: #{mossformer2_ss_forward.3} parent=5 // pred_check_branch
      %142 = sbr.rel (%p139) target = $region32
    $region31: #{mossformer2_ss_forward.3} parent=5 // pred_region
      %s143 = ssub.s32 %s9, 1
      %s144 = smul.u32 16, %s14
      %p145 = scmp.lt.s32.totalorder %s144, 31
      %s146 = scalar_select %p145, %s144, 31
      %s147 = smul.addr %s146, 4
      %s148 = scalar_lea.vmem %s0, %s147
      %p149 = pneg %p35
      %p150 = pneg %p32
      %p151 = pneg %p56
      %p152 = pneg %p53
      %p153 = pneg %p77
      %p154 = pneg %p74
      %p155 = pneg %p103
      %p156 = pneg %p100
      %s157 = smul.u32 16, %s14
      %p158 = scmp.lt.s32.totalorder %s157, 31
      %s159 = scalar_select %p158, %s157, 31
      %s160 = smul.addr %s159, 4
      %s161 = scalar_lea.vmem %s3, %s160
      %s162 = smul.u32 16, %s14
      %p163 = scmp.lt.s32.totalorder %s162, 31
      %s164 = scalar_select %p163, %s162, 31
      %s165 = smul.addr %s164, 4
      %s166 = scalar_lea.vmem %s0, %s165
      %s167 = smul.u32 16, %s14
      %s168 = smul.u32 16, %s14
      %p169 = scmp.lt.s32.totalorder %s168, 31
      %s170 = scalar_select %p169, %s168, 31
      %s171 = smul.addr %s170, 4
      %s172 = scalar_lea.vmem %s3, %s171
      %s173 = smul.u32 16, %s14
      %v175 = vld [vmem:[%s166] sm:$0xf]
      %v176 = vld [vmem:[%s166 + $0x4] sm:$0xf]
      %v177 = vld [vmem:[%s166 + $0x8] sm:$0xf]
      %v178 = vld [vmem:[%s166 + $0xc] sm:$0xf]
      %v179 = vld [vmem:[%s166 + $0x10] sm:$0xf]
      %v180 = vld [vmem:[%s166 + $0x14] sm:$0xf]
      %v181 = vld [vmem:[%s166 + $0x18] sm:$0xf]
      %v182 = vld [vmem:[%s166 + $0x1c] sm:$0xf]
      %v183 = vld [vmem:[%s166 + $0x20] sm:$0xf]
      %v184 = vld [vmem:[%s166 + $0x24] sm:$0xf]
      %v185 = vld [vmem:[%s166 + $0x28] sm:$0xf]
      %v186 = vld [vmem:[%s166 + $0x2c] sm:$0xf]
      %v187 = vld [vmem:[%s166 + $0x30] sm:$0xf]
      %v188 = vld [vmem:[%s166 + $0x34] sm:$0xf]
      %v189 = vld [vmem:[%s166 + $0x38] sm:$0xf]
      %v190 = vld [vmem:[%s166 + $0x3c] sm:$0xf]
      %v191 = vld [vmem:[%s1] sm:$0xf]
      %v192 = vld [vmem:[%s1 + $0x4] sm:$0xf]
      %v193 = vld [vmem:[%s2] sm:$0x1]
      %v195 = vlaneseq
      %v196 = vshrl.u32 %v195, 7
      %v197 = vsub.s32 0, %v196
      %v198 = vrot.slane %v193, %v197
      %v216 = vunpack.c.l.b16 %v175
      %v217 = vunpack.c.l.b16 %v176
      %v218 = vunpack.c.l.b16 %v177
      %v219 = vunpack.c.l.b16 %v178
      %v220 = vunpack.c.l.b16 %v179
      %v221 = vunpack.c.l.b16 %v180
      %v222 = vunpack.c.l.b16 %v181
      %v223 = vunpack.c.l.b16 %v182
      %v224 = vunpack.c.l.b16 %v183
      %v225 = vunpack.c.l.b16 %v184
      %v226 = vunpack.c.l.b16 %v185
      %v227 = vunpack.c.l.b16 %v186
      %v228 = vunpack.c.l.b16 %v187
      %v229 = vunpack.c.l.b16 %v188
      %v230 = vunpack.c.l.b16 %v189
      %v231 = vunpack.c.l.b16 %v190
      %v232 = vpack.c.b16 %v217, %v216
      %v233 = vpack.c.b16 %v219, %v218
      %v234 = vpack.c.b16 %v221, %v220
      %v235 = vpack.c.b16 %v223, %v222
      %v236 = vpack.c.b16 %v225, %v224
      %v237 = vpack.c.b16 %v227, %v226
      %v238 = vpack.c.b16 %v229, %v228
      %v239 = vpack.c.b16 %v231, %v230
      %v242 = vunpack.c.l.b16 %v191
      %v243 = vunpack.c.l.b16 %v192
      %v244 = vpack.c.b16 %v243, %v242
      %vm246 = vcmask 130048
      %v248 = vsel %vm246, %v232, 0
      %v251 = vsel %vm246, %v233, 0
      %v254 = vsel %vm246, %v234, 0
      %v257 = vsel %vm246, %v235, 0
      %v260 = vsel %vm246, %v236, 0
      %v263 = vsel %vm246, %v237, 0
      %v266 = vsel %vm246, %v238, 0
      %v269 = vsel %vm246, %v239, 0
      %271 = vmatprep.subr.bf16.mxu0 0
      %272 = vmatpush1.bf16.msra.mxu0 0
      %273 = vmatprep.subr.bf16.mxu0 0
      %274 = vmatpush1.bf16.msra.mxu0 0
      %275 = vmatprep.subr.bf16.mxu0 0
      %276 = vmatpush1.bf16.msra.mxu0 0
      %277 = vmatprep.subr.bf16.mxu0 0
      %278 = vmatpush1.bf16.msra.mxu0 0
      %279 = vmatprep.subr.bf16.mxu0 0
      %280 = vmatpush1.bf16.msra.mxu0 0
      %281 = vmatprep.subr.bf16.mxu0 0
      %282 = vmatpush1.bf16.msra.mxu0 0
      %283 = vmatprep.subr.bf16.mxu0 0
      %284 = vmatpush1.bf16.msra.mxu0 0
      %285 = vmatprep.subr.bf16.mxu0 0
      %286 = vmatpush1.bf16.msra.mxu0 %v244
      %287 = vmatprep.subr.bf16.mxu0 0
      %288 = vmatpush2.bf16.msra.mxu0 0
      %289 = vmatprep.subr.bf16.mxu0 0
      %290 = vmatpush2.bf16.msra.mxu0 0
      %291 = vmatprep.subr.bf16.mxu0 0
      %292 = vmatpush2.bf16.msra.mxu0 0
      %293 = vmatprep.subr.bf16.mxu0 0
      %294 = vmatpush2.bf16.msra.mxu0 0
      %295 = vmatprep.subr.bf16.mxu0 0
      %296 = vmatpush2.bf16.msra.mxu0 0
      %297 = vmatprep.subr.bf16.mxu0 0
      %298 = vmatpush2.bf16.msra.mxu0 0
      %299 = vmatprep.subr.bf16.mxu0 0
      %300 = vmatpush2.bf16.msra.mxu0 0
      %301 = vmatprep.subr.bf16.mxu0 0
      %302 = vmatpush2.bf16.msra.mxu0 0
      %303 = vmatprep.mubr.bf16.mxu0 0
      %304 = vmatmul.mubr.bf16.gmra.mxu0 %v248
      %v305 = vpop.f32.mrf.mxu0
      %v306 = vadd.f32 %v198, %v305
      %v307 = vpop.f32.mrf.mxu0
      %v308 = vpop.f32.mrf.mxu0
      %v309 = vadd.f32 %v198, %v308
      %v310 = vpop.f32.mrf.mxu0
      %311 = vmatprep.mubr.bf16.mxu0 0
      %312 = vmatmul.mubr.bf16.gmra.mxu0 %v251
      %v313 = vpop.f32.mrf.mxu0
      %v314 = vadd.f32 %v198, %v313
      %v315 = vpop.f32.mrf.mxu0
      %v316 = vpop.f32.mrf.mxu0
      %v317 = vadd.f32 %v198, %v316
      %v318 = vpop.f32.mrf.mxu0
      %319 = vmatprep.mubr.bf16.mxu0 0
      %320 = vmatmul.mubr.bf16.gmra.mxu0 %v254
      %v321 = vpop.f32.mrf.mxu0
      %v322 = vadd.f32 %v198, %v321
      %v323 = vpop.f32.mrf.mxu0
      %v324 = vpop.f32.mrf.mxu0
      %v325 = vadd.f32 %v198, %v324
      %v326 = vpop.f32.mrf.mxu0
      %327 = vmatprep.mubr.bf16.mxu0 0
      %328 = vmatmul.mubr.bf16.gmra.mxu0 %v257
      %v329 = vpop.f32.mrf.mxu0
      %v330 = vadd.f32 %v198, %v329
      %v331 = vpop.f32.mrf.mxu0
      %v332 = vpop.f32.mrf.mxu0
      %v333 = vadd.f32 %v198, %v332
      %v334 = vpop.f32.mrf.mxu0
      %335 = vmatprep.mubr.bf16.mxu0 0
      %336 = vmatmul.mubr.bf16.gmra.mxu0 %v260
      %v337 = vpop.f32.mrf.mxu0
      %v338 = vadd.f32 %v198, %v337
      %v339 = vpop.f32.mrf.mxu0
      %v340 = vpop.f32.mrf.mxu0
      %v341 = vadd.f32 %v198, %v340
      %v342 = vpop.f32.mrf.mxu0
      %343 = vmatprep.mubr.bf16.mxu0 0
      %344 = vmatmul.mubr.bf16.gmra.mxu0 %v263
      %v345 = vpop.f32.mrf.mxu0
      %v346 = vadd.f32 %v198, %v345
      %v347 = vpop.f32.mrf.mxu0
      %v348 = vpop.f32.mrf.mxu0
      %v349 = vadd.f32 %v198, %v348
      %v350 = vpop.f32.mrf.mxu0
      %351 = vmatprep.mubr.bf16.mxu0 0
      %352 = vmatmul.mubr.bf16.gmra.mxu0 %v266
      %v353 = vpop.f32.mrf.mxu0
      %v354 = vadd.f32 %v198, %v353
      %v355 = vpop.f32.mrf.mxu0
      %v356 = vpop.f32.mrf.mxu0
      %v357 = vadd.f32 %v198, %v356
      %v358 = vpop.f32.mrf.mxu0
      %359 = vmatprep.mubr.bf16.mxu0 0
      %360 = vmatmul.mubr.bf16.gmra.mxu0 %v269
      %v361 = vpop.f32.mrf.mxu0
      %v362 = vadd.f32 %v198, %v361
      %v363 = vpop.f32.mrf.mxu0
      %v364 = vpop.f32.mrf.mxu0
      %v365 = vadd.f32 %v198, %v364
      %v366 = vpop.f32.mrf.mxu0
      %367 = vdwg.mxu0
      %v368 = vmax.f32 %v306, 0.0
      %v369 = vmax.f32 %v309, 0.0
      %v370 = vmax.f32 %v314, 0.0
      %v371 = vmax.f32 %v317, 0.0
      %v372 = vmax.f32 %v322, 0.0
      %v373 = vmax.f32 %v325, 0.0
      %v374 = vmax.f32 %v330, 0.0
      %v375 = vmax.f32 %v333, 0.0
      %v376 = vmax.f32 %v338, 0.0
      %v377 = vmax.f32 %v341, 0.0
      %v378 = vmax.f32 %v346, 0.0
      %v379 = vmax.f32 %v349, 0.0
      %v380 = vmax.f32 %v354, 0.0
      %v381 = vmax.f32 %v357, 0.0
      %v382 = vmax.f32 %v362, 0.0
      %v383 = vmax.f32 %v365, 0.0
      %v384 = vpack.c.bf16 %v369, %v368
      %v385 = vpack.c.bf16 %v371, %v370
      %v386 = vpack.c.bf16 %v373, %v372
      %v387 = vpack.c.bf16 %v375, %v374
      %v388 = vpack.c.bf16 %v377, %v376
      %v389 = vpack.c.bf16 %v379, %v378
      %v390 = vpack.c.bf16 %v381, %v380
      %v391 = vpack.c.bf16 %v383, %v382
      %v400 = vunpack.c.l.b16 %v384
      %v401 = vunpack.c.h.b16 %v384
      %v402 = vunpack.c.l.b16 %v385
      %v403 = vunpack.c.h.b16 %v385
      %v404 = vunpack.c.l.b16 %v386
      %v405 = vunpack.c.h.b16 %v386
      %v406 = vunpack.c.l.b16 %v387
      %v407 = vunpack.c.h.b16 %v387
      %v408 = vunpack.c.l.b16 %v388
      %v409 = vunpack.c.h.b16 %v388
      %v410 = vunpack.c.l.b16 %v389
      %v411 = vunpack.c.h.b16 %v389
      %v412 = vunpack.c.l.b16 %v390
      %v413 = vunpack.c.h.b16 %v390
      %v414 = vunpack.c.l.b16 %v391
      %v415 = vunpack.c.h.b16 %v391
      %v416 = vpack.c.b16 %v400, %v400
      %v417 = vpack.c.b16 %v401, %v401
      %v418 = vpack.c.b16 %v402, %v402
      %v419 = vpack.c.b16 %v403, %v403
      %v420 = vpack.c.b16 %v404, %v404
      %v421 = vpack.c.b16 %v405, %v405
      %v422 = vpack.c.b16 %v406, %v406
      %v423 = vpack.c.b16 %v407, %v407
      %v424 = vpack.c.b16 %v408, %v408
      %v425 = vpack.c.b16 %v409, %v409
      %v426 = vpack.c.b16 %v410, %v410
      %v427 = vpack.c.b16 %v411, %v411
      %v428 = vpack.c.b16 %v412, %v412
      %v429 = vpack.c.b16 %v413, %v413
      %v430 = vpack.c.b16 %v414, %v414
      %v431 = vpack.c.b16 %v415, %v415
      %448 = vst [vmem:[%s172] sm:$0xf] %v416
      %449 = vst [vmem:[%s172 + $0x4] sm:$0xf] %v417
      %450 = vst [vmem:[%s172 + $0x8] sm:$0xf] %v418
      %451 = vst [vmem:[%s172 + $0xc] sm:$0xf] %v419
      %452 = vst [vmem:[%s172 + $0x10] sm:$0xf] %v420
      %453 = vst [vmem:[%s172 + $0x14] sm:$0xf] %v421
      %454 = vst [vmem:[%s172 + $0x18] sm:$0xf] %v422
      %455 = vst [vmem:[%s172 + $0x1c] sm:$0xf] %v423
      %456 = vst [vmem:[%s172 + $0x20] sm:$0xf] %v424
      %457 = vst [vmem:[%s172 + $0x24] sm:$0xf] %v425
      %458 = vst [vmem:[%s172 + $0x28] sm:$0xf] %v426
      %459 = vst [vmem:[%s172 + $0x2c] sm:$0xf] %v427
      %460 = vst [vmem:[%s172 + $0x30] sm:$0xf] %v428
      %461 = vst [vmem:[%s172 + $0x34] sm:$0xf] %v429
      %462 = vst [vmem:[%s172 + $0x38] sm:$0xf] %v430
      %463 = vst [vmem:[%s172 + $0x3c] sm:$0xf] %v431
      %s464 = smul.u32 16, %s14
      %p465 = scmp.lt.s32.totalorder %s464, 31
      %s466 = scalar_select %p465, %s464, 31
      %s467 = smul.addr %s466, 4
      %s468 = scalar_lea.vmem %s3, %s467
      // Predicated region
      $region33: #{mossformer2_ss_forward.3} parent=31 // pred_check
        %p469 = pneg %p100
      $region34: #{mossformer2_ss_forward.3} parent=31 // pred_check_branch
        %471 = sbr.rel (%p469) target = $region36
      $region35: #{mossformer2_ss_forward.3} parent=31 // pred_region
        %s472 = smul.u32 16, %s14
      $region36: #{mossformer2_ss_forward.3} parent=31 // pred_fallthru
        _
    $region32: #{mossformer2_ss_forward.3} parent=5 // pred_fallthru
      _
    %p473 = scmp.le.s32.totalorder 2, %s9
    // Predicated region
    $region37: #{mossformer2_ss_forward.3} parent=5 // pred_check
      %p474 = pneg %p473
    $region38: #{mossformer2_ss_forward.3} parent=5 // pred_check_branch
      %476 = sbr.rel (%p474) target = $region40
    $region39: #{mossformer2_ss_forward.3} parent=5 // pred_region
      %s477 = ssub.s32 %s9, 2
      // Predicated region
      $region41: #{mossformer2_ss_forward.3} parent=39 // pred_check
        %p478 = pneg %p106
      $region42: #{mossformer2_ss_forward.3} parent=39 // pred_check_branch
        %480 = sbr.rel (%p478) target = $region44
      $region43: #{mossformer2_ss_forward.3} parent=39 // pred_region
        %s481 = smul.u32 16, %s15
        %p482 = scmp.lt.s32.totalorder %s481, 31
        %s483 = scalar_select %p482, %s481, 31
        %s484 = smul.addr %s483, 4
        %s485 = scalar_lea.vmem %s3, %s484
      $region44: #{mossformer2_ss_forward.3} parent=39 // pred_fallthru
        _
    $region40: #{mossformer2_ss_forward.3} parent=5 // pred_fallthru
      _
  $region6: #{mossformer2_ss_forward.3} parent=0 // loop_footer
    %s13 = sadd.s32 1, %s9
  $region7: #{mossformer2_ss_forward.3} parent=0 // loop_footer_branch
    %8 = sbr.rel target = $region3
  $region8: #{mossformer2_ss_forward.3} parent=0 // loop_exit
    _

// kernel: mossformer2_ss_forward.4
$region0: #{mossformer2_ss_forward.4}
  #allocation0 [shape = 'u32[]', space=smem, size = 0x4, offset = 0x4, fixed_abs, tag = 'smem constant byte address 0x4 - core index']
  #allocation1 [shape = 'u32[144,128]{1,0:T(1,128)}', space=vmem, size = 0x12000, scoped, tag = 'internal scratch']
  #allocation2 [shape = 'bf16[64,128]{1,0:T(8,128)(2,1)}', space=vmem, size = 0x4000, scoped, tag = 'scratch operand']
  #allocation3 [shape = 'f32[64,1]{1,0:T(8,128)}', space=vmem, size = 0x8000, scoped, tag = 'scratch operand']
  #allocation4 [shape = 'f32[64,1]{1,0:T(8,128)}', space=vmem, size = 0x8000, scoped, tag = 'scratch operand']
  #allocation5 [shape = 'f32[64,128]{1,0:T(8,128)}', space=vmem, size = 0x8000, scoped, tag = 'scratch operand']
  %s0 = inlined_call_operand.vmem [shape: bf16[2,128,128], index: 0, kind: input, shape index: {}, may-alias: {0,1}]
  %s1 = inlined_call_operand.vmem [shape: bf16[2,128,128], index: 1, kind: input, shape index: {}, may-alias: {0,1}]
  %s2 = inlined_call_operand.vmem [shape: f32[1,128], index: 2, kind: input, shape index: {}]
  %s3 = inlined_call_operand.vmem [shape: f32[1,128], index: 3, kind: input, shape index: {}]
  %s4 = inlined_call_operand.vmem [shape: bf16[128,128], index: 4, kind: input, shape index: {}]
  %s5 = inlined_call_operand.vmem [shape: bf16[128,128], index: 5, kind: input, shape index: {}]
  %s6 = inlined_call_operand.vmem [shape: bf16[128,128], index: 6, kind: input, shape index: {}]
  %s7 = inlined_call_operand.vmem [shape: bf16[128,128], index: 7, kind: input, shape index: {}]
  %s8 = inlined_call_operand.vmem [shape: bf16[128,128], index: 8, kind: input, shape index: {}]
  %s9 = inlined_call_operand.vmem [shape: bf16[2,128,128], index: 9, kind: output, shape index: {}]
  %s10 = sld [smem:[#allocation0]]
  $region77: #{mossformer2_ss_forward.4} parent=0
    _
  %s12 = ssub.s32 1, %s10
  %s13 = scalar_select 0, %s12, %s10
  loop: start=0, step=1, limit=10
  $region2: #{mossformer2_ss_forward.4} parent=0 // loop_pre_header
    _
  $region3: #{mossformer2_ss_forward.4} parent=0 // loop_header
    %s15 = sphi 0, %s19
    %p16 = scmp.ge.s32.totalorder %s15, 10
    %s22 = sphi 0, %s41
    %s23 = sphi 0, %s37
    %s24 = sphi 0, %s33
    %s25 = sphi 0, %s22
    %s26 = sphi 0, %s23
    %s27 = sphi 0, %s24
    %s28 = sphi 0, %s25
    %s29 = sphi 0, %s26
    %s30 = sphi 0, %s27
    %s46 = sphi 0, %s48
    %s49 = sphi 0, %s46
    %s50 = sphi 0, %s49
    %s66 = sphi 0, %s50
    %s74 = sphi 0, %s76
    %s77 = sphi 0, %s74
    %s78 = sphi 0, %s77
    %s94 = sphi 0, %s78
    %s98 = sphi 0, %s98
    %s100 = sphi 0, %s98
    %s101 = sphi 0, %s100
    %s115 = sphi 0, %s101
    %s119 = sphi 0, %s119
    %s121 = sphi 0, %s119
    %s122 = sphi 0, %s121
    %s136 = sphi 0, %s122
    %s140 = sphi 0, %s140
    %s142 = sphi 0, %s140
    %s143 = sphi 0, %s142
    %s157 = sphi 0, %s143
    %s161 = sphi 0, %s161
    %s163 = sphi 0, %s161
    %s164 = sphi 0, %s163
    %s178 = sphi 0, %s164
    %s182 = sphi 0, %s182
    %s184 = sphi 0, %s182
    %s185 = sphi 0, %s184
    %s199 = sphi 0, %s185
    %s203 = sphi 0, %s203
    %s205 = sphi 0, %s203
    %s206 = sphi 0, %s205
    %s220 = sphi 0, %s206
    %s224 = sphi 0, %s224
    %s226 = sphi 0, %s224
    %s227 = sphi 0, %s226
    %s241 = sphi 0, %s227
    %s249 = sphi 0, %s251
    %s252 = sphi 0, %s249
    %s253 = sphi 0, %s252
    %s269 = sphi 0, %s253
  $region4: #{mossformer2_ss_forward.4} parent=0 // loop_header_branch
    %18 = sbr.rel (%p16) target = $region8
  $region5: #{mossformer2_ss_forward.4} parent=0 // loop_body
    %s20 = ssub.s32 %s15, 1
    %s21 = ssub.s32 %s15, 2
    %s31 = sadd.s32 1, %s24
    %p32 = scmp.ge.s32.totalorder %s31, 2
    %s33 = scalar_select %p32, 0, %s31
    %s34 = sadd.s32 1, %s23
    %s35 = scalar_select %p32, %s34, %s23
    %p36 = scmp.ge.s32.totalorder %s35, 2
    %s37 = scalar_select %p36, 0, %s35
    %s38 = sadd.s32 1, %s22
    %s39 = scalar_select %p36, %s38, %s22
    %p40 = scmp.ge.s32.totalorder %s39, 2
    %s41 = scalar_select %p40, 0, %s39
    %s42 = ssub.s32 %s22, %s41
    %s43 = ssub.s32 %s23, %s37
    %s44 = sor.u32 %s42, %s43
    %p45 = scmp.eq.s32.totalorder %s44, 0
    %s47 = sadd.s32 %s46, 1
    %s48 = scalar_select %p45, %s46, %s47
    %p51 = pneg %p45
    %p52 = scmp.eq.s32.totalorder %s15, 7
    %p53 = por %p51, %p52
    %p54 = scmp.ne.s32.totalorder %s46, %s49
    %p55 = scmp.eq.s32.totalorder %s15, 0
    %p56 = por %p54, %p55
    %p57 = scmp.ne.s32.totalorder %s46, %s49
    %p58 = scmp.eq.s32.totalorder %s20, 7
    %p59 = por %p57, %p58
    %p60 = scmp.ne.s32.totalorder %s49, %s50
    %p61 = scmp.eq.s32.totalorder %s20, 0
    %p62 = por %p60, %p61
    %p63 = scmp.ne.s32.totalorder %s49, %s50
    %p64 = scmp.eq.s32.totalorder %s21, 7
    %p65 = por %p63, %p64
    %p67 = scmp.ne.s32.totalorder %s50, %s66
    %p68 = scmp.eq.s32.totalorder %s21, 0
    %p69 = por %p67, %p68
    %s70 = ssub.s32 %s22, %s41
    %s71 = ssub.s32 %s24, %s33
    %s72 = sor.u32 %s70, %s71
    %p73 = scmp.eq.s32.totalorder %s72, 0
    %s75 = sadd.s32 %s74, 1
    %s76 = scalar_select %p73, %s74, %s75
    %p79 = pneg %p73
    %p80 = scmp.eq.s32.totalorder %s15, 7
    %p81 = por %p79, %p80
    %p82 = scmp.ne.s32.totalorder %s74, %s77
    %p83 = scmp.eq.s32.totalorder %s15, 0
    %p84 = por %p82, %p83
    %p85 = scmp.ne.s32.totalorder %s74, %s77
    %p86 = scmp.eq.s32.totalorder %s20, 7
    %p87 = por %p85, %p86
    %p88 = scmp.ne.s32.totalorder %s77, %s78
    %p89 = scmp.eq.s32.totalorder %s20, 0
    %p90 = por %p88, %p89
    %p91 = scmp.ne.s32.totalorder %s77, %s78
    %p92 = scmp.eq.s32.totalorder %s21, 7
    %p93 = por %p91, %p92
    %p95 = scmp.ne.s32.totalorder %s78, %s94
    %p96 = scmp.eq.s32.totalorder %s21, 0
    %p97 = por %p95, %p96
    %s99 = sadd.s32 %s98, 1
    %p102 = scmp.eq.s32.totalorder %s15, 7
    %p103 = scmp.ne.s32.totalorder %s98, %s100
    %p104 = scmp.eq.s32.totalorder %s15, 0
    %p105 = por %p103, %p104
    %p106 = scmp.ne.s32.totalorder %s98, %s100
    %p107 = scmp.eq.s32.totalorder %s20, 7
    %p108 = por %p106, %p107
    %p109 = scmp.ne.s32.totalorder %s100, %s101
    %p110 = scmp.eq.s32.totalorder %s20, 0
    %p111 = por %p109, %p110
    %p112 = scmp.ne.s32.totalorder %s100, %s101
    %p113 = scmp.eq.s32.totalorder %s21, 7
    %p114 = por %p112, %p113
    %p116 = scmp.ne.s32.totalorder %s101, %s115
    %p117 = scmp.eq.s32.totalorder %s21, 0
    %p118 = por %p116, %p117
    %s120 = sadd.s32 %s119, 1
    %p123 = scmp.eq.s32.totalorder %s15, 7
    %p124 = scmp.ne.s32.totalorder %s119, %s121
    %p125 = scmp.eq.s32.totalorder %s15, 0
    %p126 = por %p124, %p125
    %p127 = scmp.ne.s32.totalorder %s119, %s121
    %p128 = scmp.eq.s32.totalorder %s20, 7
    %p129 = por %p127, %p128
    %p130 = scmp.ne.s32.totalorder %s121, %s122
    %p131 = scmp.eq.s32.totalorder %s20, 0
    %p132 = por %p130, %p131
    %p133 = scmp.ne.s32.totalorder %s121, %s122
    %p134 = scmp.eq.s32.totalorder %s21, 7
    %p135 = por %p133, %p134
    %p137 = scmp.ne.s32.totalorder %s122, %s136
    %p138 = scmp.eq.s32.totalorder %s21, 0
    %p139 = por %p137, %p138
    %s141 = sadd.s32 %s140, 1
    %p144 = scmp.eq.s32.totalorder %s15, 7
    %p145 = scmp.ne.s32.totalorder %s140, %s142
    %p146 = scmp.eq.s32.totalorder %s15, 0
    %p147 = por %p145, %p146
    %p148 = scmp.ne.s32.totalorder %s140, %s142
    %p149 = scmp.eq.s32.totalorder %s20, 7
    %p150 = por %p148, %p149
    %p151 = scmp.ne.s32.totalorder %s142, %s143
    %p152 = scmp.eq.s32.totalorder %s20, 0
    %p153 = por %p151, %p152
    %p154 = scmp.ne.s32.totalorder %s142, %s143
    %p155 = scmp.eq.s32.totalorder %s21, 7
    %p156 = por %p154, %p155
    %p158 = scmp.ne.s32.totalorder %s143, %s157
    %p159 = scmp.eq.s32.totalorder %s21, 0
    %p160 = por %p158, %p159
    %s162 = sadd.s32 %s161, 1
    %p165 = scmp.eq.s32.totalorder %s15, 7
    %p166 = scmp.ne.s32.totalorder %s161, %s163
    %p167 = scmp.eq.s32.totalorder %s15, 0
    %p168 = por %p166, %p167
    %p169 = scmp.ne.s32.totalorder %s161, %s163
    %p170 = scmp.eq.s32.totalorder %s20, 7
    %p171 = por %p169, %p170
    %p172 = scmp.ne.s32.totalorder %s163, %s164
    %p173 = scmp.eq.s32.totalorder %s20, 0
    %p174 = por %p172, %p173
    %p175 = scmp.ne.s32.totalorder %s163, %s164
    %p176 = scmp.eq.s32.totalorder %s21, 7
    %p177 = por %p175, %p176
    %p179 = scmp.ne.s32.totalorder %s164, %s178
    %p180 = scmp.eq.s32.totalorder %s21, 0
    %p181 = por %p179, %p180
    %s183 = sadd.s32 %s182, 1
    %p186 = scmp.eq.s32.totalorder %s15, 7
    %p187 = scmp.ne.s32.totalorder %s182, %s184
    %p188 = scmp.eq.s32.totalorder %s15, 0
    %p189 = por %p187, %p188
    %p190 = scmp.ne.s32.totalorder %s182, %s184
    %p191 = scmp.eq.s32.totalorder %s20, 7
    %p192 = por %p190, %p191
    %p193 = scmp.ne.s32.totalorder %s184, %s185
    %p194 = scmp.eq.s32.totalorder %s20, 0
    %p195 = por %p193, %p194
    %p196 = scmp.ne.s32.totalorder %s184, %s185
    %p197 = scmp.eq.s32.totalorder %s21, 7
    %p198 = por %p196, %p197
    %p200 = scmp.ne.s32.totalorder %s185, %s199
    %p201 = scmp.eq.s32.totalorder %s21, 0
    %p202 = por %p200, %p201
    %s204 = sadd.s32 %s203, 1
    %p207 = scmp.eq.s32.totalorder %s15, 7
    %p208 = scmp.ne.s32.totalorder %s203, %s205
    %p209 = scmp.eq.s32.totalorder %s15, 0
    %p210 = por %p208, %p209
    %p211 = scmp.ne.s32.totalorder %s203, %s205
    %p212 = scmp.eq.s32.totalorder %s20, 7
    %p213 = por %p211, %p212
    %p214 = scmp.ne.s32.totalorder %s205, %s206
    %p215 = scmp.eq.s32.totalorder %s20, 0
    %p216 = por %p214, %p215
    %p217 = scmp.ne.s32.totalorder %s205, %s206
    %p218 = scmp.eq.s32.totalorder %s21, 7
    %p219 = por %p217, %p218
    %p221 = scmp.ne.s32.totalorder %s206, %s220
    %p222 = scmp.eq.s32.totalorder %s21, 0
    %p223 = por %p221, %p222
    %s225 = sadd.s32 %s224, 1
    %p228 = scmp.eq.s32.totalorder %s15, 7
    %p229 = scmp.ne.s32.totalorder %s224, %s226
    %p230 = scmp.eq.s32.totalorder %s15, 0
    %p231 = por %p229, %p230
    %p232 = scmp.ne.s32.totalorder %s224, %s226
    %p233 = scmp.eq.s32.totalorder %s20, 7
    %p234 = por %p232, %p233
    %p235 = scmp.ne.s32.totalorder %s226, %s227
    %p236 = scmp.eq.s32.totalorder %s20, 0
    %p237 = por %p235, %p236
    %p238 = scmp.ne.s32.totalorder %s226, %s227
    %p239 = scmp.eq.s32.totalorder %s21, 7
    %p240 = por %p238, %p239
    %p242 = scmp.ne.s32.totalorder %s227, %s241
    %p243 = scmp.eq.s32.totalorder %s21, 0
    %p244 = por %p242, %p243
    %s245 = ssub.s32 %s22, %s41
    %s246 = ssub.s32 %s23, %s37
    %s247 = sor.u32 %s245, %s246
    %p248 = scmp.eq.s32.totalorder %s247, 0
    %s250 = sadd.s32 %s249, 1
    %s251 = scalar_select %p248, %s249, %s250
    %p254 = pneg %p248
    %p255 = scmp.eq.s32.totalorder %s15, 7
    %p256 = por %p254, %p255
    %p257 = scmp.ne.s32.totalorder %s249, %s252
    %p258 = scmp.eq.s32.totalorder %s15, 0
    %p259 = por %p257, %p258
    %p260 = scmp.ne.s32.totalorder %s249, %s252
    %p261 = scmp.eq.s32.totalorder %s20, 7
    %p262 = por %p260, %p261
    %p263 = scmp.ne.s32.totalorder %s252, %s253
    %p264 = scmp.eq.s32.totalorder %s20, 0
    %p265 = por %p263, %p264
    %p266 = scmp.ne.s32.totalorder %s252, %s253
    %p267 = scmp.eq.s32.totalorder %s21, 7
    %p268 = por %p266, %p267
    %p270 = scmp.ne.s32.totalorder %s253, %s269
    %p271 = scmp.eq.s32.totalorder %s21, 0
    %p272 = por %p270, %p271
    %p273 = scmp.le.s32.totalorder 1, %s15
    %p274 = scmp.lt.s32.totalorder %s15, 9
    %p275 = pnand %p273, %p274
    %p276 = pneg %p275
    // Predicated region
    $region9: #{mossformer2_ss_forward.4} parent=5 // pred_check
      _
    $region10: #{mossformer2_ss_forward.4} parent=5 // pred_check_branch
      %278 = sbr.rel (%p275) target = $region12
    $region11: #{mossformer2_ss_forward.4} parent=5 // pred_region
      %s279 = ssub.s32 %s15, 1
      // Predicated region
      $region13: #{mossformer2_ss_forward.4} parent=11 // pred_check
        %p280 = pneg %p111
      $region14: #{mossformer2_ss_forward.4} parent=11 // pred_check_branch
        %282 = sbr.rel (%p280) target = $region16
      $region15: #{mossformer2_ss_forward.4} parent=11 // pred_region
        _
      $region16: #{mossformer2_ss_forward.4} parent=11 // pred_fallthru
        _
      // Predicated region
      $region17: #{mossformer2_ss_forward.4} parent=11 // pred_check
        %p283 = pneg %p132
      $region18: #{mossformer2_ss_forward.4} parent=11 // pred_check_branch
        %285 = sbr.rel (%p283) target = $region20
      $region19: #{mossformer2_ss_forward.4} parent=11 // pred_region
        _
      $region20: #{mossformer2_ss_forward.4} parent=11 // pred_fallthru
        _
      // Predicated region
      $region21: #{mossformer2_ss_forward.4} parent=11 // pred_check
        %p286 = pneg %p153
      $region22: #{mossformer2_ss_forward.4} parent=11 // pred_check_branch
        %288 = sbr.rel (%p286) target = $region24
      $region23: #{mossformer2_ss_forward.4} parent=11 // pred_region
        _
      $region24: #{mossformer2_ss_forward.4} parent=11 // pred_fallthru
        _
      // Predicated region
      $region25: #{mossformer2_ss_forward.4} parent=11 // pred_check
        %p289 = pneg %p174
      $region26: #{mossformer2_ss_forward.4} parent=11 // pred_check_branch
        %291 = sbr.rel (%p289) target = $region28
      $region27: #{mossformer2_ss_forward.4} parent=11 // pred_region
        _
      $region28: #{mossformer2_ss_forward.4} parent=11 // pred_fallthru
        _
      // Predicated region
      $region29: #{mossformer2_ss_forward.4} parent=11 // pred_check
        %p292 = pneg %p195
      $region30: #{mossformer2_ss_forward.4} parent=11 // pred_check_branch
        %294 = sbr.rel (%p292) target = $region32
      $region31: #{mossformer2_ss_forward.4} parent=11 // pred_region
        _
      $region32: #{mossformer2_ss_forward.4} parent=11 // pred_fallthru
        _
      // Predicated region
      $region33: #{mossformer2_ss_forward.4} parent=11 // pred_check
        %p295 = pneg %p216
      $region34: #{mossformer2_ss_forward.4} parent=11 // pred_check_branch
        %297 = sbr.rel (%p295) target = $region36
      $region35: #{mossformer2_ss_forward.4} parent=11 // pred_region
        _
      $region36: #{mossformer2_ss_forward.4} parent=11 // pred_fallthru
        _
      // Predicated region
      $region37: #{mossformer2_ss_forward.4} parent=11 // pred_check
        %p298 = pneg %p237
      $region38: #{mossformer2_ss_forward.4} parent=11 // pred_check_branch
        %300 = sbr.rel (%p298) target = $region40
      $region39: #{mossformer2_ss_forward.4} parent=11 // pred_region
        _
      $region40: #{mossformer2_ss_forward.4} parent=11 // pred_fallthru
        _
    $region12: #{mossformer2_ss_forward.4} parent=5 // pred_fallthru
      _
    %p301 = scmp.lt.s32.totalorder %s15, 8
    // Predicated region
    $region41: #{mossformer2_ss_forward.4} parent=5 // pred_check
      %p302 = pneg %p301
    $region42: #{mossformer2_ss_forward.4} parent=5 // pred_check_branch
      %304 = sbr.rel (%p302) target = $region44
    $region43: #{mossformer2_ss_forward.4} parent=5 // pred_region
      // Predicated region
      $region45: #{mossformer2_ss_forward.4} parent=43 // pred_check
        %p305 = pneg %p56
      $region46: #{mossformer2_ss_forward.4} parent=43 // pred_check_branch
        %307 = sbr.rel (%p305) target = $region48
      $region47: #{mossformer2_ss_forward.4} parent=43 // pred_region
        %s308 = smul.u32 8, %s23
        %p309 = scmp.lt.s32.totalorder %s22, 1
        %s310 = scalar_select %p309, %s22, 1
        %p311 = scmp.lt.s32.totalorder %s308, 15
        %s312 = scalar_select %p311, %s308, 15
        %s313 = smul.addr %s310, 16
        %s314 = sadd.s32 %s312, %s313
        %s315 = smul.addr %s314, 4
        %s316 = scalar_lea.vmem %s0, %s315
        %s317 = smul.u32 8, %s23
      $region48: #{mossformer2_ss_forward.4} parent=43 // pred_fallthru
        _
      // Predicated region
      $region49: #{mossformer2_ss_forward.4} parent=43 // pred_check
        %p318 = pneg %p84
      $region50: #{mossformer2_ss_forward.4} parent=43 // pred_check_branch
        %320 = sbr.rel (%p318) target = $region52
      $region51: #{mossformer2_ss_forward.4} parent=43 // pred_region
        %s321 = smul.u32 8, %s24
        %p322 = scmp.lt.s32.totalorder %s22, 1
        %s323 = scalar_select %p322, %s22, 1
        %p324 = scmp.lt.s32.totalorder %s321, 15
        %s325 = scalar_select %p324, %s321, 15
        %s326 = smul.addr %s323, 16
        %s327 = sadd.s32 %s325, %s326
        %s328 = smul.addr %s327, 4
        %s329 = scalar_lea.vmem %s1, %s328
        %s330 = smul.u32 8, %s24
      $region52: #{mossformer2_ss_forward.4} parent=43 // pred_fallthru
        _
    $region44: #{mossformer2_ss_forward.4} parent=5 // pred_fallthru
      _
    %p331 = scmp.le.s32.totalorder 1, %s15
    %p332 = scmp.lt.s32.totalorder %s15, 9
    %p333 = pnand %p331, %p332
    %p334 = pneg %p333
    // Predicated region
    $region53: #{mossformer2_ss_forward.4} parent=5 // pred_check
      _
    $region54: #{mossformer2_ss_forward.4} parent=5 // pred_check_branch
      %336 = sbr.rel (%p333) target = $region56
    $region55: #{mossformer2_ss_forward.4} parent=5 // pred_region
      %s337 = ssub.s32 %s15, 1
      %s338 = smul.u32 8, %s26
      %p339 = scmp.lt.s32.totalorder %s25, 1
      %s340 = scalar_select %p339, %s25, 1
      %p341 = scmp.lt.s32.totalorder %s338, 15
      %s342 = scalar_select %p341, %s338, 15
      %s343 = smul.addr %s340, 16
      %s344 = sadd.s32 %s342, %s343
      %s345 = smul.addr %s344, 4
      %s346 = scalar_lea.vmem %s0, %s345
      %p347 = pneg %p62
      %p348 = pneg %p59
      %s349 = smul.u32 8, %s27
      %p350 = scmp.lt.s32.totalorder %s25, 1
      %s351 = scalar_select %p350, %s25, 1
      %p352 = scmp.lt.s32.totalorder %s349, 15
      %s353 = scalar_select %p352, %s349, 15
      %s354 = smul.addr %s351, 16
      %s355 = sadd.s32 %s353, %s354
      %s356 = smul.addr %s355, 4
      %s357 = scalar_lea.vmem %s1, %s356
      %p358 = pneg %p90
      %p359 = pneg %p87
      %p360 = pneg %p111
      %p361 = pneg %p108
      %p362 = pneg %p132
      %p363 = pneg %p129
      %p364 = pneg %p153
      %p365 = pneg %p150
      %p366 = pneg %p174
      %p367 = pneg %p171
      %p368 = pneg %p195
      %p369 = pneg %p192
      %p370 = pneg %p216
      %p371 = pneg %p213
      %p372 = pneg %p237
      %p373 = pneg %p234
      %p374 = pneg %p265
      %p375 = pneg %p262
      %s376 = smul.u32 8, %s26
      %p377 = scmp.lt.s32.totalorder %s25, 1
      %s378 = scalar_select %p377, %s25, 1
      %p379 = scmp.lt.s32.totalorder %s376, 15
      %s380 = scalar_select %p379, %s376, 15
      %s381 = smul.addr %s378, 16
      %s382 = sadd.s32 %s380, %s381
      %s383 = smul.addr %s382, 4
      %s384 = scalar_lea.vmem %s9, %s383
      %s385 = smul.u32 8, %s26
      %p386 = scmp.lt.s32.totalorder %s25, 1
      %s387 = scalar_select %p386, %s25, 1
      %p388 = scmp.lt.s32.totalorder %s385, 15
      %s389 = scalar_select %p388, %s385, 15
      %s390 = smul.addr %s387, 16
      %s391 = sadd.s32 %s389, %s390
      %s392 = smul.addr %s391, 4
      %s393 = scalar_lea.vmem %s0, %s392
      %s394 = smul.u32 8, %s26
      %s395 = smul.u32 8, %s27
      %p396 = scmp.lt.s32.totalorder %s25, 1
      %s397 = scalar_select %p396, %s25, 1
      %p398 = scmp.lt.s32.totalorder %s395, 15
      %s399 = scalar_select %p398, %s395, 15
      %s400 = smul.addr %s397, 16
      %s401 = sadd.s32 %s399, %s400
      %s402 = smul.addr %s401, 4
      %s403 = scalar_lea.vmem %s1, %s402
      %s404 = smul.u32 8, %s27
      %s405 = smul.u32 8, %s26
      %p406 = scmp.lt.s32.totalorder %s25, 1
      %s407 = scalar_select %p406, %s25, 1
      %p408 = scmp.lt.s32.totalorder %s405, 15
      %s409 = scalar_select %p408, %s405, 15
      %s410 = smul.addr %s407, 16
      %s411 = sadd.s32 %s409, %s410
      %s412 = smul.addr %s411, 4
      %s413 = scalar_lea.vmem %s9, %s412
      %s414 = smul.u32 8, %s26
      %v416 = vld [vmem:[%s393] sm:$0xf]
      %v417 = vld [vmem:[%s393 + $0x4] sm:$0xf]
      %v418 = vld [vmem:[%s393 + $0x8] sm:$0xf]
      %v419 = vld [vmem:[%s393 + $0xc] sm:$0xf]
      %v420 = vld [vmem:[%s393 + $0x10] sm:$0xf]
      %v421 = vld [vmem:[%s393 + $0x14] sm:$0xf]
      %v422 = vld [vmem:[%s393 + $0x18] sm:$0xf]
      %v423 = vld [vmem:[%s393 + $0x1c] sm:$0xf]
      %v424 = vunpack.c.l.bf16 %v416
      %v425 = vunpack.c.l.bf16 %v417
      %v426 = vunpack.c.l.bf16 %v418
      %v427 = vunpack.c.l.bf16 %v419
      %v428 = vunpack.c.l.bf16 %v420
      %v429 = vunpack.c.l.bf16 %v421
      %v430 = vunpack.c.l.bf16 %v422
      %v431 = vunpack.c.l.bf16 %v423
      %v432 = vld [vmem:[%s2] sm:$0x1]
      %v433 = vld [vmem:[%s3] sm:$0x1]
      %p434 = scmp.eq.s32.totalorder %s27, 0
      // Predicated region
      $region57: #{mossformer2_ss_forward.4} parent=55 // pred_check
        %p435 = pneg %p434
      $region58: #{mossformer2_ss_forward.4} parent=55 // pred_check_branch
        %437 = sbr.rel (%p435) target = $region60
      $region59: #{mossformer2_ss_forward.4} parent=55 // pred_region
        %438 = vadd.xlane.f32.xlu0 %v424
        %v439 = vpop.xlane.xlu0 %438
        %440 = vadd.xlane.f32.xlu0 %v425
        %v441 = vpop.xlane.xlu0 %440
        %442 = vadd.xlane.f32.xlu0 %v426
        %v443 = vpop.xlane.xlu0 %442
        %444 = vadd.xlane.f32.xlu0 %v427
        %v445 = vpop.xlane.xlu0 %444
        %446 = vadd.xlane.f32.xlu0 %v428
        %v447 = vpop.xlane.xlu0 %446
        %448 = vadd.xlane.f32.xlu0 %v429
        %v449 = vpop.xlane.xlu0 %448
        %450 = vadd.xlane.f32.xlu0 %v430
        %v451 = vpop.xlane.xlu0 %450
        %452 = vadd.xlane.f32.xlu0 %v431
        %v453 = vpop.xlane.xlu0 %452
        %v454 = vrcp.pop 128.0
        %v455 = vmul.f32 %v439, %v454
        %v456 = vmul.f32 %v441, %v454
        %v457 = vmul.f32 %v443, %v454
        %v458 = vmul.f32 %v445, %v454
        %v459 = vmul.f32 %v447, %v454
        %v460 = vmul.f32 %v449, %v454
        %v461 = vmul.f32 %v451, %v454
        %v462 = vmul.f32 %v453, %v454
        %v463 = vsub.f32 %v424, %v455
        %v464 = vsub.f32 %v425, %v456
        %v465 = vsub.f32 %v426, %v457
        %v466 = vsub.f32 %v427, %v458
        %v467 = vsub.f32 %v428, %v459
        %v468 = vsub.f32 %v429, %v460
        %v469 = vsub.f32 %v430, %v461
        %v470 = vsub.f32 %v431, %v462
        %v471 = vmul.f32 %v463, %v463
        %v472 = vmul.f32 %v464, %v464
        %v473 = vmul.f32 %v465, %v465
        %v474 = vmul.f32 %v466, %v466
        %v475 = vmul.f32 %v467, %v467
        %v476 = vmul.f32 %v468, %v468
        %v477 = vmul.f32 %v469, %v469
        %v478 = vmul.f32 %v470, %v470
        %479 = vadd.xlane.f32.xlu0 %v471
        %v480 = vpop.xlane.xlu0 %479
        %481 = vadd.xlane.f32.xlu0 %v472
        %v482 = vpop.xlane.xlu0 %481
        %483 = vadd.xlane.f32.xlu0 %v473
        %v484 = vpop.xlane.xlu0 %483
        %485 = vadd.xlane.f32.xlu0 %v474
        %v486 = vpop.xlane.xlu0 %485
        %487 = vadd.xlane.f32.xlu0 %v475
        %v488 = vpop.xlane.xlu0 %487
        %489 = vadd.xlane.f32.xlu0 %v476
        %v490 = vpop.xlane.xlu0 %489
        %491 = vadd.xlane.f32.xlu0 %v477
        %v492 = vpop.xlane.xlu0 %491
        %493 = vadd.xlane.f32.xlu0 %v478
        %v494 = vpop.xlane.xlu0 %493
        %v495 = vmul.f32 %v480, %v454
        %v496 = vmul.f32 %v482, %v454
        %v497 = vmul.f32 %v484, %v454
        %v498 = vmul.f32 %v486, %v454
        %v499 = vmul.f32 %v488, %v454
        %v500 = vmul.f32 %v490, %v454
        %v501 = vmul.f32 %v492, %v454
        %v502 = vmul.f32 %v494, %v454
        %v503 = vadd.f32 %v495, 1e-05
        %v504 = vadd.f32 %v496, 1e-05
        %v505 = vadd.f32 %v497, 1e-05
        %v506 = vadd.f32 %v498, 1e-05
        %v507 = vadd.f32 %v499, 1e-05
        %v508 = vadd.f32 %v500, 1e-05
        %v509 = vadd.f32 %v501, 1e-05
        %v510 = vadd.f32 %v502, 1e-05
        %v511 = vrsqrt.pop %v503
        %v512 = vrsqrt.pop %v504
        %v513 = vrsqrt.pop %v505
        %v514 = vrsqrt.pop %v506
        %v515 = vrsqrt.pop %v507
        %v516 = vrsqrt.pop %v508
        %v517 = vrsqrt.pop %v509
        %v518 = vrsqrt.pop %v510
        %v519 = vmul.f32 %v463, %v511
        %v520 = vmul.f32 %v464, %v512
        %v521 = vmul.f32 %v465, %v513
        %v522 = vmul.f32 %v466, %v514
        %v523 = vmul.f32 %v467, %v515
        %v524 = vmul.f32 %v468, %v516
        %v525 = vmul.f32 %v469, %v517
        %v526 = vmul.f32 %v470, %v518
        %v528 = vlaneseq
        %v529 = vshrl.u32 %v528, 7
        %v530 = vsub.s32 0, %v529
        %v531 = vrot.slane %v432, %v530
        %v533 = vmul.f32 %v519, %v531
        %v534 = vmul.f32 %v520, %v531
        %v535 = vmul.f32 %v521, %v531
        %v536 = vmul.f32 %v522, %v531
        %v537 = vmul.f32 %v523, %v531
        %v538 = vmul.f32 %v524, %v531
        %v539 = vmul.f32 %v525, %v531
        %v540 = vmul.f32 %v526, %v531
        %v542 = vlaneseq
        %v543 = vshrl.u32 %v542, 7
        %v544 = vsub.s32 0, %v543
        %v545 = vrot.slane %v433, %v544
        %v547 = vadd.f32 %v533, %v545
        %v548 = vadd.f32 %v534, %v545
        %v549 = vadd.f32 %v535, %v545
        %v550 = vadd.f32 %v536, %v545
        %v551 = vadd.f32 %v537, %v545
        %v552 = vadd.f32 %v538, %v545
        %v553 = vadd.f32 %v539, %v545
        %v554 = vadd.f32 %v540, %v545
        %v555 = vpack.c.bf16 %v548, %v547
        %v556 = vpack.c.bf16 %v550, %v549
        %v557 = vpack.c.bf16 %v552, %v551
        %v558 = vpack.c.bf16 %v554, %v553
        %v559 = vld [vmem:[%s4] sm:$0xf]
        %v560 = vld [vmem:[%s4 + $0x4] sm:$0xf]
        %v561 = vld [vmem:[%s4 + $0x8] sm:$0xf]
        %v562 = vld [vmem:[%s4 + $0xc] sm:$0xf]
        %v563 = vld [vmem:[%s4 + $0x10] sm:$0xf]
        %v564 = vld [vmem:[%s4 + $0x14] sm:$0xf]
        %v565 = vld [vmem:[%s4 + $0x18] sm:$0xf]
        %v566 = vld [vmem:[%s4 + $0x1c] sm:$0xf]
        %v567 = vld [vmem:[%s4 + $0x20] sm:$0xf]
        %v568 = vld [vmem:[%s4 + $0x24] sm:$0xf]
        %v569 = vld [vmem:[%s4 + $0x28] sm:$0xf]
        %v570 = vld [vmem:[%s4 + $0x2c] sm:$0xf]
        %v571 = vld [vmem:[%s4 + $0x30] sm:$0xf]
        %v572 = vld [vmem:[%s4 + $0x34] sm:$0xf]
        %v573 = vld [vmem:[%s4 + $0x38] sm:$0xf]
        %v574 = vld [vmem:[%s4 + $0x3c] sm:$0xf]
        %v591 = vunpack.c.l.b16 %v559
        %v592 = vunpack.c.l.b16 %v560
        %v593 = vunpack.c.l.b16 %v561
        %v594 = vunpack.c.l.b16 %v562
        %v595 = vunpack.c.l.b16 %v563
        %v596 = vunpack.c.l.b16 %v564
        %v597 = vunpack.c.l.b16 %v565
        %v598 = vunpack.c.l.b16 %v566
        %v599 = vunpack.c.l.b16 %v567
        %v600 = vunpack.c.l.b16 %v568
        %v601 = vunpack.c.l.b16 %v569
        %v602 = vunpack.c.l.b16 %v570
        %v603 = vunpack.c.l.b16 %v571
        %v604 = vunpack.c.l.b16 %v572
        %v605 = vunpack.c.l.b16 %v573
        %v606 = vunpack.c.l.b16 %v574
        %v607 = vpack.c.b16 %v592, %v591
        %v608 = vpack.c.b16 %v594, %v593
        %v609 = vpack.c.b16 %v596, %v595
        %v610 = vpack.c.b16 %v598, %v597
        %v611 = vpack.c.b16 %v600, %v599
        %v612 = vpack.c.b16 %v602, %v601
        %v613 = vpack.c.b16 %v604, %v603
        %v614 = vpack.c.b16 %v606, %v605
        %623 = vmatprep.subr.bf16.mxu0 0
        %624 = vmatpush1.bf16.msra.mxu0 %v614
        %625 = vmatprep.subr.bf16.mxu0 0
        %626 = vmatpush1.bf16.msra.mxu0 %v613
        %627 = vmatprep.subr.bf16.mxu0 0
        %628 = vmatpush1.bf16.msra.mxu0 %v612
        %629 = vmatprep.subr.bf16.mxu0 0
        %630 = vmatpush1.bf16.msra.mxu0 %v611
        %631 = vmatprep.subr.bf16.mxu0 0
        %632 = vmatpush1.bf16.msra.mxu0 %v610
        %633 = vmatprep.subr.bf16.mxu0 0
        %634 = vmatpush1.bf16.msra.mxu0 %v609
        %635 = vmatprep.subr.bf16.mxu0 0
        %636 = vmatpush1.bf16.msra.mxu0 %v608
        %637 = vmatprep.subr.bf16.mxu0 0
        %638 = vmatpush1.bf16.msra.mxu0 %v607
        %639 = vmatprep.subr.bf16.mxu0 0
        %640 = vmatpush2.bf16.msra.mxu0 0
        %641 = vmatprep.subr.bf16.mxu0 0
        %642 = vmatpush2.bf16.msra.mxu0 0
        %643 = vmatprep.subr.bf16.mxu0 0
        %644 = vmatpush2.bf16.msra.mxu0 0
        %645 = vmatprep.subr.bf16.mxu0 0
        %646 = vmatpush2.bf16.msra.mxu0 0
        %647 = vmatprep.subr.bf16.mxu0 0
        %648 = vmatpush2.bf16.msra.mxu0 0
        %649 = vmatprep.subr.bf16.mxu0 0
        %650 = vmatpush2.bf16.msra.mxu0 0
        %651 = vmatprep.subr.bf16.mxu0 0
        %652 = vmatpush2.bf16.msra.mxu0 0
        %653 = vmatprep.subr.bf16.mxu0 0
        %654 = vmatpush2.bf16.msra.mxu0 0
        %655 = vmatprep.mubr.bf16.mxu0 0
        %656 = vmatmul.mubr.bf16.gmra.mxu0 %v555
        %v657 = vpop.f32.mrf.mxu0
        %v658 = vadd.f32 0.0, %v657
        %v659 = vpop.f32.mrf.mxu0
        %v660 = vpop.f32.mrf.mxu0
        %v661 = vadd.f32 0.0, %v660
        %v662 = vpop.f32.mrf.mxu0
        %663 = vmatprep.mubr.bf16.mxu0 0
        %664 = vmatmul.mubr.bf16.gmra.mxu0 %v556
        %v665 = vpop.f32.mrf.mxu0
        %v666 = vadd.f32 0.0, %v665
        %v667 = vpop.f32.mrf.mxu0
        %v668 = vpop.f32.mrf.mxu0
        %v669 = vadd.f32 0.0, %v668
        %v670 = vpop.f32.mrf.mxu0
        %671 = vmatprep.mubr.bf16.mxu0 0
        %672 = vmatmul.mubr.bf16.gmra.mxu0 %v557
        %v673 = vpop.f32.mrf.mxu0
        %v674 = vadd.f32 0.0, %v673
        %v675 = vpop.f32.mrf.mxu0
        %v676 = vpop.f32.mrf.mxu0
        %v677 = vadd.f32 0.0, %v676
        %v678 = vpop.f32.mrf.mxu0
        %679 = vmatprep.mubr.bf16.mxu0 0
        %680 = vmatmul.mubr.bf16.gmra.mxu0 %v558
        %v681 = vpop.f32.mrf.mxu0
        %v682 = vadd.f32 0.0, %v681
        %v683 = vpop.f32.mrf.mxu0
        %v684 = vpop.f32.mrf.mxu0
        %v685 = vadd.f32 0.0, %v684
        %v686 = vpop.f32.mrf.mxu0
        %687 = vdwg.mxu0
        %v688 = vmul.f32 %v658, 0.088388346
        %v689 = vmul.f32 %v661, 0.088388346
        %v690 = vmul.f32 %v666, 0.088388346
        %v691 = vmul.f32 %v669, 0.088388346
        %v692 = vmul.f32 %v674, 0.088388346
        %v693 = vmul.f32 %v677, 0.088388346
        %v694 = vmul.f32 %v682, 0.088388346
        %v695 = vmul.f32 %v685, 0.088388346
        %v696 = vpack.c.bf16 %v689, %v688
        %v697 = vpack.c.bf16 %v691, %v690
        %v698 = vpack.c.bf16 %v693, %v692
        %v699 = vpack.c.bf16 %v695, %v694
        %v704 = vunpack.c.l.b16 %v696
        %v705 = vunpack.c.h.b16 %v696
        %v706 = vunpack.c.l.b16 %v697
        %v707 = vunpack.c.h.b16 %v697
        %v708 = vunpack.c.l.b16 %v698
        %v709 = vunpack.c.h.b16 %v698
        %v710 = vunpack.c.l.b16 %v699
        %v711 = vunpack.c.h.b16 %v699
        %v712 = vpack.c.b16 %v704, %v704
        %v713 = vpack.c.b16 %v705, %v705
        %v714 = vpack.c.b16 %v706, %v706
        %v715 = vpack.c.b16 %v707, %v707
        %v716 = vpack.c.b16 %v708, %v708
        %v717 = vpack.c.b16 %v709, %v709
        %v718 = vpack.c.b16 %v710, %v710
        %v719 = vpack.c.b16 %v711, %v711
        %728 = vst [vmem:[#allocation2] sm:$0xf] %v712
        %729 = vst [vmem:[#allocation2 + $0x4] sm:$0xf] %v713
        %730 = vst [vmem:[#allocation2 + $0x8] sm:$0xf] %v714
        %731 = vst [vmem:[#allocation2 + $0xc] sm:$0xf] %v715
        %732 = vst [vmem:[#allocation2 + $0x10] sm:$0xf] %v716
        %733 = vst [vmem:[#allocation2 + $0x14] sm:$0xf] %v717
        %734 = vst [vmem:[#allocation2 + $0x18] sm:$0xf] %v718
        %735 = vst [vmem:[#allocation2 + $0x1c] sm:$0xf] %v719
        %vm736 = vcmask 7168
        %737 = vst.msk [vmem:[#allocation3] sm:$0xff] %vm736, -inf
        %738 = vst.msk [vmem:[#allocation3 + $0x8] sm:$0xff] %vm736, -inf
        %739 = vst.msk [vmem:[#allocation3 + $0x10] sm:$0xff] %vm736, -inf
        %740 = vst.msk [vmem:[#allocation3 + $0x18] sm:$0xff] %vm736, -inf
        %741 = vst.msk [vmem:[#allocation3 + $0x20] sm:$0xff] %vm736, -inf
        %742 = vst.msk [vmem:[#allocation3 + $0x28] sm:$0xff] %vm736, -inf
        %743 = vst.msk [vmem:[#allocation3 + $0x30] sm:$0xff] %vm736, -inf
        %744 = vst.msk [vmem:[#allocation3 + $0x38] sm:$0xff] %vm736, -inf
        %745 = vst.msk [vmem:[#allocation4] sm:$0xff] %vm736, 0.0
        %746 = vst.msk [vmem:[#allocation4 + $0x8] sm:$0xff] %vm736, 0.0
        %747 = vst.msk [vmem:[#allocation4 + $0x10] sm:$0xff] %vm736, 0.0
        %748 = vst.msk [vmem:[#allocation4 + $0x18] sm:$0xff] %vm736, 0.0
        %749 = vst.msk [vmem:[#allocation4 + $0x20] sm:$0xff] %vm736, 0.0
        %750 = vst.msk [vmem:[#allocation4 + $0x28] sm:$0xff] %vm736, 0.0
        %751 = vst.msk [vmem:[#allocation4 + $0x30] sm:$0xff] %vm736, 0.0
        %752 = vst.msk [vmem:[#allocation4 + $0x38] sm:$0xff] %vm736, 0.0
        %753 = vst [vmem:[#allocation5] sm:$0xff] 0.0
        %754 = vst [vmem:[#allocation5 + $0x8] sm:$0xff] 0.0
        %755 = vst [vmem:[#allocation5 + $0x10] sm:$0xff] 0.0
        %756 = vst [vmem:[#allocation5 + $0x18] sm:$0xff] 0.0
        %757 = vst [vmem:[#allocation5 + $0x20] sm:$0xff] 0.0
        %758 = vst [vmem:[#allocation5 + $0x28] sm:$0xff] 0.0
        %759 = vst [vmem:[#allocation5 + $0x30] sm:$0xff] 0.0
        %760 = vst [vmem:[#allocation5 + $0x38] sm:$0xff] 0.0
      $region60: #{mossformer2_ss_forward.4} parent=55 // pred_fallthru
        _
      %v761 = vld [vmem:[%s403] sm:$0xf]
      %v762 = vld [vmem:[%s403 + $0x4] sm:$0xf]
      %v763 = vld [vmem:[%s403 + $0x8] sm:$0xf]
      %v764 = vld [vmem:[%s403 + $0xc] sm:$0xf]
      %v765 = vld [vmem:[%s403 + $0x10] sm:$0xf]
      %v766 = vld [vmem:[%s403 + $0x14] sm:$0xf]
      %v767 = vld [vmem:[%s403 + $0x18] sm:$0xf]
      %v768 = vld [vmem:[%s403 + $0x1c] sm:$0xf]
      %v769 = vunpack.c.l.bf16 %v761
      %v770 = vunpack.c.l.bf16 %v762
      %v771 = vunpack.c.l.bf16 %v763
      %v772 = vunpack.c.l.bf16 %v764
      %v773 = vunpack.c.l.bf16 %v765
      %v774 = vunpack.c.l.bf16 %v766
      %v775 = vunpack.c.l.bf16 %v767
      %v776 = vunpack.c.l.bf16 %v768
      %777 = vadd.xlane.f32.xlu0 %v769
      %v778 = vpop.xlane.xlu0 %777
      %779 = vadd.xlane.f32.xlu0 %v770
      %v780 = vpop.xlane.xlu0 %779
      %781 = vadd.xlane.f32.xlu0 %v771
      %v782 = vpop.xlane.xlu0 %781
      %783 = vadd.xlane.f32.xlu0 %v772
      %v784 = vpop.xlane.xlu0 %783
      %785 = vadd.xlane.f32.xlu0 %v773
      %v786 = vpop.xlane.xlu0 %785
      %787 = vadd.xlane.f32.xlu0 %v774
      %v788 = vpop.xlane.xlu0 %787
      %789 = vadd.xlane.f32.xlu0 %v775
      %v790 = vpop.xlane.xlu0 %789
      %791 = vadd.xlane.f32.xlu0 %v776
      %v792 = vpop.xlane.xlu0 %791
      %v793 = vrcp.pop 128.0
      %v794 = vmul.f32 %v778, %v793
      %v795 = vmul.f32 %v780, %v793
      %v796 = vmul.f32 %v782, %v793
      %v797 = vmul.f32 %v784, %v793
      %v798 = vmul.f32 %v786, %v793
      %v799 = vmul.f32 %v788, %v793
      %v800 = vmul.f32 %v790, %v793
      %v801 = vmul.f32 %v792, %v793
      %v802 = vsub.f32 %v769, %v794
      %v803 = vsub.f32 %v770, %v795
      %v804 = vsub.f32 %v771, %v796
      %v805 = vsub.f32 %v772, %v797
      %v806 = vsub.f32 %v773, %v798
      %v807 = vsub.f32 %v774, %v799
      %v808 = vsub.f32 %v775, %v800
      %v809 = vsub.f32 %v776, %v801
      %v810 = vmul.f32 %v802, %v802
      %v811 = vmul.f32 %v803, %v803
      %v812 = vmul.f32 %v804, %v804
      %v813 = vmul.f32 %v805, %v805
      %v814 = vmul.f32 %v806, %v806
      %v815 = vmul.f32 %v807, %v807
      %v816 = vmul.f32 %v808, %v808
      %v817 = vmul.f32 %v809, %v809
      %818 = vadd.xlane.f32.xlu0 %v810
      %v819 = vpop.xlane.xlu0 %818
      %820 = vadd.xlane.f32.xlu0 %v811
      %v821 = vpop.xlane.xlu0 %820
      %822 = vadd.xlane.f32.xlu0 %v812
      %v823 = vpop.xlane.xlu0 %822
      %824 = vadd.xlane.f32.xlu0 %v813
      %v825 = vpop.xlane.xlu0 %824
      %826 = vadd.xlane.f32.xlu0 %v814
      %v827 = vpop.xlane.xlu0 %826
      %828 = vadd.xlane.f32.xlu0 %v815
      %v829 = vpop.xlane.xlu0 %828
      %830 = vadd.xlane.f32.xlu0 %v816
      %v831 = vpop.xlane.xlu0 %830
      %832 = vadd.xlane.f32.xlu0 %v817
      %v833 = vpop.xlane.xlu0 %832
      %v834 = vmul.f32 %v819, %v793
      %v835 = vmul.f32 %v821, %v793
      %v836 = vmul.f32 %v823, %v793
      %v837 = vmul.f32 %v825, %v793
      %v838 = vmul.f32 %v827, %v793
      %v839 = vmul.f32 %v829, %v793
      %v840 = vmul.f32 %v831, %v793
      %v841 = vmul.f32 %v833, %v793
      %v842 = vadd.f32 %v834, 1e-05
      %v843 = vadd.f32 %v835, 1e-05
      %v844 = vadd.f32 %v836, 1e-05
      %v845 = vadd.f32 %v837, 1e-05
      %v846 = vadd.f32 %v838, 1e-05
      %v847 = vadd.f32 %v839, 1e-05
      %v848 = vadd.f32 %v840, 1e-05
      %v849 = vadd.f32 %v841, 1e-05
      %v850 = vrsqrt.pop %v842
      %v851 = vrsqrt.pop %v843
      %v852 = vrsqrt.pop %v844
      %v853 = vrsqrt.pop %v845
      %v854 = vrsqrt.pop %v846
      %v855 = vrsqrt.pop %v847
      %v856 = vrsqrt.pop %v848
      %v857 = vrsqrt.pop %v849
      %v858 = vmul.f32 %v802, %v850
      %v859 = vmul.f32 %v803, %v851
      %v860 = vmul.f32 %v804, %v852
      %v861 = vmul.f32 %v805, %v853
      %v862 = vmul.f32 %v806, %v854
      %v863 = vmul.f32 %v807, %v855
      %v864 = vmul.f32 %v808, %v856
      %v865 = vmul.f32 %v809, %v857
      %v867 = vlaneseq
      %v868 = vshrl.u32 %v867, 7
      %v869 = vsub.s32 0, %v868
      %v870 = vrot.slane %v432, %v869
      %v872 = vmul.f32 %v858, %v870
      %v873 = vmul.f32 %v859, %v870
      %v874 = vmul.f32 %v860, %v870
      %v875 = vmul.f32 %v861, %v870
      %v876 = vmul.f32 %v862, %v870
      %v877 = vmul.f32 %v863, %v870
      %v878 = vmul.f32 %v864, %v870
      %v879 = vmul.f32 %v865, %v870
      %v881 = vlaneseq
      %v882 = vshrl.u32 %v881, 7
      %v883 = vsub.s32 0, %v882
      %v884 = vrot.slane %v433, %v883
      %v886 = vadd.f32 %v872, %v884
      %v887 = vadd.f32 %v873, %v884
      %v888 = vadd.f32 %v874, %v884
      %v889 = vadd.f32 %v875, %v884
      %v890 = vadd.f32 %v876, %v884
      %v891 = vadd.f32 %v877, %v884
      %v892 = vadd.f32 %v878, %v884
      %v893 = vadd.f32 %v879, %v884
      %v894 = vpack.c.bf16 %v887, %v886
      %v895 = vpack.c.bf16 %v889, %v888
      %v896 = vpack.c.bf16 %v891, %v890
      %v897 = vpack.c.bf16 %v893, %v892
      %v898 = vld [vmem:[%s5] sm:$0xf]
      %v899 = vld [vmem:[%s5 + $0x4] sm:$0xf]
      %v900 = vld [vmem:[%s5 + $0x8] sm:$0xf]
      %v901 = vld [vmem:[%s5 + $0xc] sm:$0xf]
      %v902 = vld [vmem:[%s5 + $0x10] sm:$0xf]
      %v903 = vld [vmem:[%s5 + $0x14] sm:$0xf]
      %v904 = vld [vmem:[%s5 + $0x18] sm:$0xf]
      %v905 = vld [vmem:[%s5 + $0x1c] sm:$0xf]
      %v906 = vld [vmem:[%s5 + $0x20] sm:$0xf]
      %v907 = vld [vmem:[%s5 + $0x24] sm:$0xf]
      %v908 = vld [vmem:[%s5 + $0x28] sm:$0xf]
      %v909 = vld [vmem:[%s5 + $0x2c] sm:$0xf]
      %v910 = vld [vmem:[%s5 + $0x30] sm:$0xf]
      %v911 = vld [vmem:[%s5 + $0x34] sm:$0xf]
      %v912 = vld [vmem:[%s5 + $0x38] sm:$0xf]
      %v913 = vld [vmem:[%s5 + $0x3c] sm:$0xf]
      %v930 = vunpack.c.l.b16 %v898
      %v931 = vunpack.c.l.b16 %v899
      %v932 = vunpack.c.l.b16 %v900
      %v933 = vunpack.c.l.b16 %v901
      %v934 = vunpack.c.l.b16 %v902
      %v935 = vunpack.c.l.b16 %v903
      %v936 = vunpack.c.l.b16 %v904
      %v937 = vunpack.c.l.b16 %v905
      %v938 = vunpack.c.l.b16 %v906
      %v939 = vunpack.c.l.b16 %v907
      %v940 = vunpack.c.l.b16 %v908
      %v941 = vunpack.c.l.b16 %v909
      %v942 = vunpack.c.l.b16 %v910
      %v943 = vunpack.c.l.b16 %v911
      %v944 = vunpack.c.l.b16 %v912
      %v945 = vunpack.c.l.b16 %v913
      %v946 = vpack.c.b16 %v931, %v930
      %v947 = vpack.c.b16 %v933, %v932
      %v948 = vpack.c.b16 %v935, %v934
      %v949 = vpack.c.b16 %v937, %v936
      %v950 = vpack.c.b16 %v939, %v938
      %v951 = vpack.c.b16 %v941, %v940
      %v952 = vpack.c.b16 %v943, %v942
      %v953 = vpack.c.b16 %v945, %v944
      %962 = vmatprep.subr.bf16.mxu0 0
      %963 = vmatpush1.bf16.msra.mxu0 %v953
      %964 = vmatprep.subr.bf16.mxu0 0
      %965 = vmatpush1.bf16.msra.mxu0 %v952
      %966 = vmatprep.subr.bf16.mxu0 0
      %967 = vmatpush1.bf16.msra.mxu0 %v951
      %968 = vmatprep.subr.bf16.mxu0 0
      %969 = vmatpush1.bf16.msra.mxu0 %v950
      %970 = vmatprep.subr.bf16.mxu0 0
      %971 = vmatpush1.bf16.msra.mxu0 %v949
      %972 = vmatprep.subr.bf16.mxu0 0
      %973 = vmatpush1.bf16.msra.mxu0 %v948
      %974 = vmatprep.subr.bf16.mxu0 0
      %975 = vmatpush1.bf16.msra.mxu0 %v947
      %976 = vmatprep.subr.bf16.mxu0 0
      %977 = vmatpush1.bf16.msra.mxu0 %v946
      %978 = vmatprep.subr.bf16.mxu0 0
      %979 = vmatpush2.bf16.msra.mxu0 0
      %980 = vmatprep.subr.bf16.mxu0 0
      %981 = vmatpush2.bf16.msra.mxu0 0
      %982 = vmatprep.subr.bf16.mxu0 0
      %983 = vmatpush2.bf16.msra.mxu0 0
      %984 = vmatprep.subr.bf16.mxu0 0
      %985 = vmatpush2.bf16.msra.mxu0 0
      %986 = vmatprep.subr.bf16.mxu0 0
      %987 = vmatpush2.bf16.msra.mxu0 0
      %988 = vmatprep.subr.bf16.mxu0 0
      %989 = vmatpush2.bf16.msra.mxu0 0
      %990 = vmatprep.subr.bf16.mxu0 0
      %991 = vmatpush2.bf16.msra.mxu0 0
      %992 = vmatprep.subr.bf16.mxu0 0
      %993 = vmatpush2.bf16.msra.mxu0 0
      %994 = vmatprep.mubr.bf16.mxu0 0
      %995 = vmatmul.mubr.bf16.gmra.mxu0 %v894
      %v996 = vpop.f32.mrf.mxu0
      %v997 = vadd.f32 0.0, %v996
      %v998 = vpop.f32.mrf.mxu0
      %v999 = vpop.f32.mrf.mxu0
      %v1000 = vadd.f32 0.0, %v999
      %v1001 = vpop.f32.mrf.mxu0
      %1002 = vmatprep.mubr.bf16.mxu0 0
      %1003 = vmatmul.mubr.bf16.gmra.mxu0 %v895
      %v1004 = vpop.f32.mrf.mxu0
      %v1005 = vadd.f32 0.0, %v1004
      %v1006 = vpop.f32.mrf.mxu0
      %v1007 = vpop.f32.mrf.mxu0
      %v1008 = vadd.f32 0.0, %v1007
      %v1009 = vpop.f32.mrf.mxu0
      %1010 = vmatprep.mubr.bf16.mxu0 0
      %1011 = vmatmul.mubr.bf16.gmra.mxu0 %v896
      %v1012 = vpop.f32.mrf.mxu0
      %v1013 = vadd.f32 0.0, %v1012
      %v1014 = vpop.f32.mrf.mxu0
      %v1015 = vpop.f32.mrf.mxu0
      %v1016 = vadd.f32 0.0, %v1015
      %v1017 = vpop.f32.mrf.mxu0
      %1018 = vmatprep.mubr.bf16.mxu0 0
      %1019 = vmatmul.mubr.bf16.gmra.mxu0 %v897
      %v1020 = vpop.f32.mrf.mxu0
      %v1021 = vadd.f32 0.0, %v1020
      %v1022 = vpop.f32.mrf.mxu0
      %v1023 = vpop.f32.mrf.mxu0
      %v1024 = vadd.f32 0.0, %v1023
      %v1025 = vpop.f32.mrf.mxu0
      %1026 = vdwg.mxu0
      %v1027 = vld [vmem:[%s6] sm:$0xf]
      %v1028 = vld [vmem:[%s6 + $0x4] sm:$0xf]
      %v1029 = vld [vmem:[%s6 + $0x8] sm:$0xf]
      %v1030 = vld [vmem:[%s6 + $0xc] sm:$0xf]
      %v1031 = vld [vmem:[%s6 + $0x10] sm:$0xf]
      %v1032 = vld [vmem:[%s6 + $0x14] sm:$0xf]
      %v1033 = vld [vmem:[%s6 + $0x18] sm:$0xf]
      %v1034 = vld [vmem:[%s6 + $0x1c] sm:$0xf]
      %v1035 = vld [vmem:[%s6 + $0x20] sm:$0xf]
      %v1036 = vld [vmem:[%s6 + $0x24] sm:$0xf]
      %v1037 = vld [vmem:[%s6 + $0x28] sm:$0xf]
      %v1038 = vld [vmem:[%s6 + $0x2c] sm:$0xf]
      %v1039 = vld [vmem:[%s6 + $0x30] sm:$0xf]
      %v1040 = vld [vmem:[%s6 + $0x34] sm:$0xf]
      %v1041 = vld [vmem:[%s6 + $0x38] sm:$0xf]
      %v1042 = vld [vmem:[%s6 + $0x3c] sm:$0xf]
      %v1059 = vunpack.c.l.b16 %v1027
      %v1060 = vunpack.c.l.b16 %v1028
      %v1061 = vunpack.c.l.b16 %v1029
      %v1062 = vunpack.c.l.b16 %v1030
      %v1063 = vunpack.c.l.b16 %v1031
      %v1064 = vunpack.c.l.b16 %v1032
      %v1065 = vunpack.c.l.b16 %v1033
      %v1066 = vunpack.c.l.b16 %v1034
      %v1067 = vunpack.c.l.b16 %v1035
      %v1068 = vunpack.c.l.b16 %v1036
      %v1069 = vunpack.c.l.b16 %v1037
      %v1070 = vunpack.c.l.b16 %v1038
      %v1071 = vunpack.c.l.b16 %v1039
      %v1072 = vunpack.c.l.b16 %v1040
      %v1073 = vunpack.c.l.b16 %v1041
      %v1074 = vunpack.c.l.b16 %v1042
      %v1075 = vpack.c.b16 %v1060, %v1059
      %v1076 = vpack.c.b16 %v1062, %v1061
      %v1077 = vpack.c.b16 %v1064, %v1063
      %v1078 = vpack.c.b16 %v1066, %v1065
      %v1079 = vpack.c.b16 %v1068, %v1067
      %v1080 = vpack.c.b16 %v1070, %v1069
      %v1081 = vpack.c.b16 %v1072, %v1071
      %v1082 = vpack.c.b16 %v1074, %v1073
      %1091 = vmatprep.subr.bf16.mxu0 0
      %1092 = vmatpush1.bf16.msra.mxu0 %v1082
      %1093 = vmatprep.subr.bf16.mxu0 0
      %1094 = vmatpush1.bf16.msra.mxu0 %v1081
      %1095 = vmatprep.subr.bf16.mxu0 0
      %1096 = vmatpush1.bf16.msra.mxu0 %v1080
      %1097 = vmatprep.subr.bf16.mxu0 0
      %1098 = vmatpush1.bf16.msra.mxu0 %v1079
      %1099 = vmatprep.subr.bf16.mxu0 0
      %1100 = vmatpush1.bf16.msra.mxu0 %v1078
      %1101 = vmatprep.subr.bf16.mxu0 0
      %1102 = vmatpush1.bf16.msra.mxu0 %v1077
      %1103 = vmatprep.subr.bf16.mxu0 0
      %1104 = vmatpush1.bf16.msra.mxu0 %v1076
      %1105 = vmatprep.subr.bf16.mxu0 0
      %1106 = vmatpush1.bf16.msra.mxu0 %v1075
      %1107 = vmatprep.subr.bf16.mxu0 0
      %1108 = vmatpush2.bf16.msra.mxu0 0
      %1109 = vmatprep.subr.bf16.mxu0 0
      %1110 = vmatpush2.bf16.msra.mxu0 0
      %1111 = vmatprep.subr.bf16.mxu0 0
      %1112 = vmatpush2.bf16.msra.mxu0 0
      %1113 = vmatprep.subr.bf16.mxu0 0
      %1114 = vmatpush2.bf16.msra.mxu0 0
      %1115 = vmatprep.subr.bf16.mxu0 0
      %1116 = vmatpush2.bf16.msra.mxu0 0
      %1117 = vmatprep.subr.bf16.mxu0 0
      %1118 = vmatpush2.bf16.msra.mxu0 0
      %1119 = vmatprep.subr.bf16.mxu0 0
      %1120 = vmatpush2.bf16.msra.mxu0 0
      %1121 = vmatprep.subr.bf16.mxu0 0
      %1122 = vmatpush2.bf16.msra.mxu0 0
      %1123 = vmatprep.mubr.bf16.mxu0 0
      %1124 = vmatmul.mubr.bf16.gmra.mxu0 %v894
      %v1125 = vpop.f32.mrf.mxu0
      %v1126 = vadd.f32 0.0, %v1125
      %v1127 = vpop.f32.mrf.mxu0
      %v1128 = vpop.f32.mrf.mxu0
      %v1129 = vadd.f32 0.0, %v1128
      %v1130 = vpop.f32.mrf.mxu0
      %1131 = vmatprep.mubr.bf16.mxu0 0
      %1132 = vmatmul.mubr.bf16.gmra.mxu0 %v895
      %v1133 = vpop.f32.mrf.mxu0
      %v1134 = vadd.f32 0.0, %v1133
      %v1135 = vpop.f32.mrf.mxu0
      %v1136 = vpop.f32.mrf.mxu0
      %v1137 = vadd.f32 0.0, %v1136
      %v1138 = vpop.f32.mrf.mxu0
      %1139 = vmatprep.mubr.bf16.mxu0 0
      %1140 = vmatmul.mubr.bf16.gmra.mxu0 %v896
      %v1141 = vpop.f32.mrf.mxu0
      %v1142 = vadd.f32 0.0, %v1141
      %v1143 = vpop.f32.mrf.mxu0
      %v1144 = vpop.f32.mrf.mxu0
      %v1145 = vadd.f32 0.0, %v1144
      %v1146 = vpop.f32.mrf.mxu0
      %1147 = vmatprep.mubr.bf16.mxu0 0
      %1148 = vmatmul.mubr.bf16.gmra.mxu0 %v897
      %v1149 = vpop.f32.mrf.mxu0
      %v1150 = vadd.f32 0.0, %v1149
      %v1151 = vpop.f32.mrf.mxu0
      %v1152 = vpop.f32.mrf.mxu0
      %v1153 = vadd.f32 0.0, %v1152
      %v1154 = vpop.f32.mrf.mxu0
      %1155 = vdwg.mxu0
      %v1156 = vld [vmem:[#allocation2] sm:$0xf]
      %v1157 = vld [vmem:[#allocation2 + $0x4] sm:$0xf]
      %v1158 = vld [vmem:[#allocation2 + $0x8] sm:$0xf]
      %v1159 = vld [vmem:[#allocation2 + $0xc] sm:$0xf]
      %v1160 = vld [vmem:[#allocation2 + $0x10] sm:$0xf]
      %v1161 = vld [vmem:[#allocation2 + $0x14] sm:$0xf]
      %v1162 = vld [vmem:[#allocation2 + $0x18] sm:$0xf]
      %v1163 = vld [vmem:[#allocation2 + $0x1c] sm:$0xf]
      %v1164 = vpack.c.bf16 %v1000, %v997
      %v1165 = vpack.c.bf16 %v1008, %v1005
      %v1166 = vpack.c.bf16 %v1016, %v1013
      %v1167 = vpack.c.bf16 %v1024, %v1021
      %v1176 = vunpack.c.l.b16 %v1156
      %v1177 = vunpack.c.l.b16 %v1157
      %v1178 = vunpack.c.l.b16 %v1158
      %v1179 = vunpack.c.l.b16 %v1159
      %v1180 = vunpack.c.l.b16 %v1160
      %v1181 = vunpack.c.l.b16 %v1161
      %v1182 = vunpack.c.l.b16 %v1162
      %v1183 = vunpack.c.l.b16 %v1163
      %v1184 = vpack.c.b16 %v1177, %v1176
      %v1185 = vpack.c.b16 %v1179, %v1178
      %v1186 = vpack.c.b16 %v1181, %v1180
      %v1187 = vpack.c.b16 %v1183, %v1182
      %1192 = vmatprep.subr.bf16.mxu0 0
      %1193 = vmatpush1.bf16.xpose.msra.mxu0 0
      %1194 = vmatprep.subr.bf16.mxu0 0
      %1195 = vmatpush1.bf16.xpose.msra.mxu0 0
      %1196 = vmatprep.subr.bf16.mxu0 0
      %1197 = vmatpush1.bf16.xpose.msra.mxu0 0
      %1198 = vmatprep.subr.bf16.mxu0 0
      %1199 = vmatpush1.bf16.xpose.msra.mxu0 0
      %1200 = vmatprep.subr.bf16.mxu0 0
      %1201 = vmatpush1.bf16.xpose.msra.mxu0 %v1167
      %1202 = vmatprep.subr.bf16.mxu0 0
      %1203 = vmatpush1.bf16.xpose.msra.mxu0 %v1166
      %1204 = vmatprep.subr.bf16.mxu0 0
      %1205 = vmatpush1.bf16.xpose.msra.mxu0 %v1165
      %1206 = vmatprep.subr.bf16.mxu0 0
      %1207 = vmatpush1.bf16.xpose.msra.mxu0 %v1164
      %1208 = vmatprep.subr.bf16.mxu0 0
      %1209 = vmatpush2.bf16.xpose.msra.mxu0 0
      %1210 = vmatprep.subr.bf16.mxu0 0
      %1211 = vmatpush2.bf16.xpose.msra.mxu0 0
      %1212 = vmatprep.subr.bf16.mxu0 0
      %1213 = vmatpush2.bf16.xpose.msra.mxu0 0
      %1214 = vmatprep.subr.bf16.mxu0 0
      %1215 = vmatpush2.bf16.xpose.msra.mxu0 0
      %1216 = vmatprep.subr.bf16.mxu0 0
      %1217 = vmatpush2.bf16.xpose.msra.mxu0 0
      %1218 = vmatprep.subr.bf16.mxu0 0
      %1219 = vmatpush2.bf16.xpose.msra.mxu0 0
      %1220 = vmatprep.subr.bf16.mxu0 0
      %1221 = vmatpush2.bf16.xpose.msra.mxu0 0
      %1222 = vmatprep.subr.bf16.mxu0 0
      %1223 = vmatpush2.bf16.xpose.msra.mxu0 0
      %1224 = vmatprep.mubr.bf16.mxu0 0
      %1225 = vmatmul.mubr.bf16.gmra.mxu0 %v1184
      %v1226 = vpop.f32.mrf.mxu0
      %v1227 = vadd.f32 0.0, %v1226
      %v1228 = vpop.f32.mrf.mxu0
      %v1229 = vpop.f32.mrf.mxu0
      %v1230 = vadd.f32 0.0, %v1229
      %v1231 = vpop.f32.mrf.mxu0
      %1232 = vmatprep.mubr.bf16.mxu0 0
      %1233 = vmatmul.mubr.bf16.gmra.mxu0 %v1185
      %v1234 = vpop.f32.mrf.mxu0
      %v1235 = vadd.f32 0.0, %v1234
      %v1236 = vpop.f32.mrf.mxu0
      %v1237 = vpop.f32.mrf.mxu0
      %v1238 = vadd.f32 0.0, %v1237
      %v1239 = vpop.f32.mrf.mxu0
      %1240 = vmatprep.mubr.bf16.mxu0 0
      %1241 = vmatmul.mubr.bf16.gmra.mxu0 %v1186
      %v1242 = vpop.f32.mrf.mxu0
      %v1243 = vadd.f32 0.0, %v1242
      %v1244 = vpop.f32.mrf.mxu0
      %v1245 = vpop.f32.mrf.mxu0
      %v1246 = vadd.f32 0.0, %v1245
      %v1247 = vpop.f32.mrf.mxu0
      %1248 = vmatprep.mubr.bf16.mxu0 0
      %1249 = vmatmul.mubr.bf16.gmra.mxu0 %v1187
      %v1250 = vpop.f32.mrf.mxu0
      %v1251 = vadd.f32 0.0, %v1250
      %v1252 = vpop.f32.mrf.mxu0
      %v1253 = vpop.f32.mrf.mxu0
      %v1254 = vadd.f32 0.0, %v1253
      %v1255 = vpop.f32.mrf.mxu0
      %1256 = vdwg.mxu0
      %v1257 = vld [vmem:[#allocation3] sm:$0xff]
      %v1258 = vld [vmem:[#allocation3 + $0x8] sm:$0xff]
      %v1259 = vld [vmem:[#allocation3 + $0x10] sm:$0xff]
      %v1260 = vld [vmem:[#allocation3 + $0x18] sm:$0xff]
      %v1261 = vld [vmem:[#allocation3 + $0x20] sm:$0xff]
      %v1262 = vld [vmem:[#allocation3 + $0x28] sm:$0xff]
      %v1263 = vld [vmem:[#allocation3 + $0x30] sm:$0xff]
      %v1264 = vld [vmem:[#allocation3 + $0x38] sm:$0xff]
      %vm1265 = vcmask 523264
      %v1266 = vsel %vm1265, %v1227, -inf
      %1267 = vmax.xlane.f32.xlu0 %v1266
      %v1268 = vpop.xlane.xlu0 %1267
      %v1269 = vsel %vm1265, %v1230, -inf
      %1270 = vmax.xlane.f32.xlu0 %v1269
      %v1271 = vpop.xlane.xlu0 %1270
      %v1272 = vsel %vm1265, %v1235, -inf
      %1273 = vmax.xlane.f32.xlu0 %v1272
      %v1274 = vpop.xlane.xlu0 %1273
      %v1275 = vsel %vm1265, %v1238, -inf
      %1276 = vmax.xlane.f32.xlu0 %v1275
      %v1277 = vpop.xlane.xlu0 %1276
      %v1278 = vsel %vm1265, %v1243, -inf
      %1279 = vmax.xlane.f32.xlu0 %v1278
      %v1280 = vpop.xlane.xlu0 %1279
      %v1281 = vsel %vm1265, %v1246, -inf
      %1282 = vmax.xlane.f32.xlu0 %v1281
      %v1283 = vpop.xlane.xlu0 %1282
      %v1284 = vsel %vm1265, %v1251, -inf
      %1285 = vmax.xlane.f32.xlu0 %v1284
      %v1286 = vpop.xlane.xlu0 %1285
      %v1287 = vsel %vm1265, %v1254, -inf
      %1288 = vmax.xlane.f32.xlu0 %v1287
      %v1289 = vpop.xlane.xlu0 %1288
      %v1290 = vmax.f32 %v1257, %v1268
      %v1291 = vmax.f32 %v1258, %v1271
      %v1292 = vmax.f32 %v1259, %v1274
      %v1293 = vmax.f32 %v1260, %v1277
      %v1294 = vmax.f32 %v1261, %v1280
      %v1295 = vmax.f32 %v1262, %v1283
      %v1296 = vmax.f32 %v1263, %v1286
      %v1297 = vmax.f32 %v1264, %v1289
      %v1298 = vsub.f32 %v1257, %v1290
      %v1299 = vsub.f32 %v1258, %v1291
      %v1300 = vsub.f32 %v1259, %v1292
      %v1301 = vsub.f32 %v1260, %v1293
      %v1302 = vsub.f32 %v1261, %v1294
      %v1303 = vsub.f32 %v1262, %v1295
      %v1304 = vsub.f32 %v1263, %v1296
      %v1305 = vsub.f32 %v1264, %v1297
      %v1306 = vmul.f32 %v1298, 1.442695
      %v1307 = vpow.pop %v1306
      %v1308 = vmul.f32 %v1299, 1.442695
      %v1309 = vpow.pop %v1308
      %v1310 = vmul.f32 %v1300, 1.442695
      %v1311 = vpow.pop %v1310
      %v1312 = vmul.f32 %v1301, 1.442695
      %v1313 = vpow.pop %v1312
      %v1314 = vmul.f32 %v1302, 1.442695
      %v1315 = vpow.pop %v1314
      %v1316 = vmul.f32 %v1303, 1.442695
      %v1317 = vpow.pop %v1316
      %v1318 = vmul.f32 %v1304, 1.442695
      %v1319 = vpow.pop %v1318
      %v1320 = vmul.f32 %v1305, 1.442695
      %v1321 = vpow.pop %v1320
      %1323 = vset.pattern.permute.xlu0 0
      %1324 = vperm.xlu0 %1323, %v1290
      %v1325 = vpop.permute.xlu0 %1324
      %1328 = vset.pattern.permute.xlu0 0
      %1329 = vperm.xlu0 %1328, %v1291
      %v1330 = vpop.permute.xlu0 %1329
      %1333 = vset.pattern.permute.xlu0 0
      %1334 = vperm.xlu0 %1333, %v1292
      %v1335 = vpop.permute.xlu0 %1334
      %1338 = vset.pattern.permute.xlu0 0
      %1339 = vperm.xlu0 %1338, %v1293
      %v1340 = vpop.permute.xlu0 %1339
      %1343 = vset.pattern.permute.xlu0 0
      %1344 = vperm.xlu0 %1343, %v1294
      %v1345 = vpop.permute.xlu0 %1344
      %1348 = vset.pattern.permute.xlu0 0
      %1349 = vperm.xlu0 %1348, %v1295
      %v1350 = vpop.permute.xlu0 %1349
      %1353 = vset.pattern.permute.xlu0 0
      %1354 = vperm.xlu0 %1353, %v1296
      %v1355 = vpop.permute.xlu0 %1354
      %1358 = vset.pattern.permute.xlu0 0
      %1359 = vperm.xlu0 %1358, %v1297
      %v1360 = vpop.permute.xlu0 %1359
      %v1362 = vsub.f32 %v1227, %v1325
      %v1363 = vsub.f32 %v1230, %v1330
      %v1364 = vsub.f32 %v1235, %v1335
      %v1365 = vsub.f32 %v1238, %v1340
      %v1366 = vsub.f32 %v1243, %v1345
      %v1367 = vsub.f32 %v1246, %v1350
      %v1368 = vsub.f32 %v1251, %v1355
      %v1369 = vsub.f32 %v1254, %v1360
      %v1370 = vmul.f32 %v1362, 1.442695
      %v1371 = vpow.pop %v1370
      %v1372 = vmul.f32 %v1363, 1.442695
      %v1373 = vpow.pop %v1372
      %v1374 = vmul.f32 %v1364, 1.442695
      %v1375 = vpow.pop %v1374
      %v1376 = vmul.f32 %v1365, 1.442695
      %v1377 = vpow.pop %v1376
      %v1378 = vmul.f32 %v1366, 1.442695
      %v1379 = vpow.pop %v1378
      %v1380 = vmul.f32 %v1367, 1.442695
      %v1381 = vpow.pop %v1380
      %v1382 = vmul.f32 %v1368, 1.442695
      %v1383 = vpow.pop %v1382
      %v1384 = vmul.f32 %v1369, 1.442695
      %v1385 = vpow.pop %v1384
      %v1386 = vld [vmem:[#allocation4] sm:$0xff]
      %v1387 = vld [vmem:[#allocation4 + $0x8] sm:$0xff]
      %v1388 = vld [vmem:[#allocation4 + $0x10] sm:$0xff]
      %v1389 = vld [vmem:[#allocation4 + $0x18] sm:$0xff]
      %v1390 = vld [vmem:[#allocation4 + $0x20] sm:$0xff]
      %v1391 = vld [vmem:[#allocation4 + $0x28] sm:$0xff]
      %v1392 = vld [vmem:[#allocation4 + $0x30] sm:$0xff]
      %v1393 = vld [vmem:[#allocation4 + $0x38] sm:$0xff]
      %v1394 = vmul.f32 %v1307, %v1386
      %v1395 = vmul.f32 %v1309, %v1387
      %v1396 = vmul.f32 %v1311, %v1388
      %v1397 = vmul.f32 %v1313, %v1389
      %v1398 = vmul.f32 %v1315, %v1390
      %v1399 = vmul.f32 %v1317, %v1391
      %v1400 = vmul.f32 %v1319, %v1392
      %v1401 = vmul.f32 %v1321, %v1393
      %v1402 = vsel %vm1265, %v1371, 0.0
      %1403 = vadd.xlane.f32.xlu0 %v1402
      %v1404 = vpop.xlane.xlu0 %1403
      %v1405 = vsel %vm1265, %v1373, 0.0
      %1406 = vadd.xlane.f32.xlu0 %v1405
      %v1407 = vpop.xlane.xlu0 %1406
      %v1408 = vsel %vm1265, %v1375, 0.0
      %1409 = vadd.xlane.f32.xlu0 %v1408
      %v1410 = vpop.xlane.xlu0 %1409
      %v1411 = vsel %vm1265, %v1377, 0.0
      %1412 = vadd.xlane.f32.xlu0 %v1411
      %v1413 = vpop.xlane.xlu0 %1412
      %v1414 = vsel %vm1265, %v1379, 0.0
      %1415 = vadd.xlane.f32.xlu0 %v1414
      %v1416 = vpop.xlane.xlu0 %1415
      %v1417 = vsel %vm1265, %v1381, 0.0
      %1418 = vadd.xlane.f32.xlu0 %v1417
      %v1419 = vpop.xlane.xlu0 %1418
      %v1420 = vsel %vm1265, %v1383, 0.0
      %1421 = vadd.xlane.f32.xlu0 %v1420
      %v1422 = vpop.xlane.xlu0 %1421
      %v1423 = vsel %vm1265, %v1385, 0.0
      %1424 = vadd.xlane.f32.xlu0 %v1423
      %v1425 = vpop.xlane.xlu0 %1424
      %v1426 = vadd.f32 %v1394, %v1404
      %v1427 = vadd.f32 %v1395, %v1407
      %v1428 = vadd.f32 %v1396, %v1410
      %v1429 = vadd.f32 %v1397, %v1413
      %v1430 = vadd.f32 %v1398, %v1416
      %v1431 = vadd.f32 %v1399, %v1419
      %v1432 = vadd.f32 %v1400, %v1422
      %v1433 = vadd.f32 %v1401, %v1425
      %vm1434 = vcmask 7168
      %1435 = vst.msk [vmem:[#allocation4] sm:$0xff] %vm1434, %v1426
      %1436 = vst.msk [vmem:[#allocation4 + $0x8] sm:$0xff] %vm1434, %v1427
      %1437 = vst.msk [vmem:[#allocation4 + $0x10] sm:$0xff] %vm1434, %v1428
      %1438 = vst.msk [vmem:[#allocation4 + $0x18] sm:$0xff] %vm1434, %v1429
      %1439 = vst.msk [vmem:[#allocation4 + $0x20] sm:$0xff] %vm1434, %v1430
      %1440 = vst.msk [vmem:[#allocation4 + $0x28] sm:$0xff] %vm1434, %v1431
      %1441 = vst.msk [vmem:[#allocation4 + $0x30] sm:$0xff] %vm1434, %v1432
      %1442 = vst.msk [vmem:[#allocation4 + $0x38] sm:$0xff] %vm1434, %v1433
      %v1443 = vld [vmem:[#allocation5] sm:$0xff]
      %v1444 = vld [vmem:[#allocation5 + $0x8] sm:$0xff]
      %v1445 = vld [vmem:[#allocation5 + $0x10] sm:$0xff]
      %v1446 = vld [vmem:[#allocation5 + $0x18] sm:$0xff]
      %v1447 = vld [vmem:[#allocation5 + $0x20] sm:$0xff]
      %v1448 = vld [vmem:[#allocation5 + $0x28] sm:$0xff]
      %v1449 = vld [vmem:[#allocation5 + $0x30] sm:$0xff]
      %v1450 = vld [vmem:[#allocation5 + $0x38] sm:$0xff]
      %1452 = vset.pattern.permute.xlu0 0
      %1453 = vperm.xlu0 %1452, %v1307
      %v1454 = vpop.permute.xlu0 %1453
      %1457 = vset.pattern.permute.xlu0 0
      %1458 = vperm.xlu0 %1457, %v1309
      %v1459 = vpop.permute.xlu0 %1458
      %1462 = vset.pattern.permute.xlu0 0
      %1463 = vperm.xlu0 %1462, %v1311
      %v1464 = vpop.permute.xlu0 %1463
      %1467 = vset.pattern.permute.xlu0 0
      %1468 = vperm.xlu0 %1467, %v1313
      %v1469 = vpop.permute.xlu0 %1468
      %1472 = vset.pattern.permute.xlu0 0
      %1473 = vperm.xlu0 %1472, %v1315
      %v1474 = vpop.permute.xlu0 %1473
      %1477 = vset.pattern.permute.xlu0 0
      %1478 = vperm.xlu0 %1477, %v1317
      %v1479 = vpop.permute.xlu0 %1478
      %1482 = vset.pattern.permute.xlu0 0
      %1483 = vperm.xlu0 %1482, %v1319
      %v1484 = vpop.permute.xlu0 %1483
      %1487 = vset.pattern.permute.xlu0 0
      %1488 = vperm.xlu0 %1487, %v1321
      %v1489 = vpop.permute.xlu0 %1488
      %v1491 = vmul.f32 %v1454, %v1443
      %v1492 = vmul.f32 %v1459, %v1444
      %v1493 = vmul.f32 %v1464, %v1445
      %v1494 = vmul.f32 %v1469, %v1446
      %v1495 = vmul.f32 %v1474, %v1447
      %v1496 = vmul.f32 %v1479, %v1448
      %v1497 = vmul.f32 %v1484, %v1449
      %v1498 = vmul.f32 %v1489, %v1450
      %v1499 = vpack.c.bf16 %v1373, %v1371
      %v1500 = vpack.c.bf16 %v1377, %v1375
      %v1501 = vpack.c.bf16 %v1381, %v1379
      %v1502 = vpack.c.bf16 %v1385, %v1383
      %v1503 = vpack.c.bf16 %v1129, %v1126
      %v1504 = vpack.c.bf16 %v1137, %v1134
      %v1505 = vpack.c.bf16 %v1145, %v1142
      %v1506 = vpack.c.bf16 %v1153, %v1150
      %v1508 = vsel %vm1265, %v1499, 0
      %v1511 = vsel %vm1265, %v1500, 0
      %v1514 = vsel %vm1265, %v1501, 0
      %v1517 = vsel %vm1265, %v1502, 0
      %1519 = vmatprep.subr.bf16.mxu0 0
      %1520 = vmatpush1.bf16.msra.mxu0 0
      %1521 = vmatprep.subr.bf16.mxu0 0
      %1522 = vmatpush1.bf16.msra.mxu0 0
      %1523 = vmatprep.subr.bf16.mxu0 0
      %1524 = vmatpush1.bf16.msra.mxu0 0
      %1525 = vmatprep.subr.bf16.mxu0 0
      %1526 = vmatpush1.bf16.msra.mxu0 0
      %1527 = vmatprep.subr.bf16.mxu0 0
      %1528 = vmatpush1.bf16.msra.mxu0 %v1506
      %1529 = vmatprep.subr.bf16.mxu0 0
      %1530 = vmatpush1.bf16.msra.mxu0 %v1505
      %1531 = vmatprep.subr.bf16.mxu0 0
      %1532 = vmatpush1.bf16.msra.mxu0 %v1504
      %1533 = vmatprep.subr.bf16.mxu0 0
      %1534 = vmatpush1.bf16.msra.mxu0 %v1503
      %1535 = vmatprep.subr.bf16.mxu0 0
      %1536 = vmatpush2.bf16.msra.mxu0 0
      %1537 = vmatprep.subr.bf16.mxu0 0
      %1538 = vmatpush2.bf16.msra.mxu0 0
      %1539 = vmatprep.subr.bf16.mxu0 0
      %1540 = vmatpush2.bf16.msra.mxu0 0
      %1541 = vmatprep.subr.bf16.mxu0 0
      %1542 = vmatpush2.bf16.msra.mxu0 0
      %1543 = vmatprep.subr.bf16.mxu0 0
      %1544 = vmatpush2.bf16.msra.mxu0 0
      %1545 = vmatprep.subr.bf16.mxu0 0
      %1546 = vmatpush2.bf16.msra.mxu0 0
      %1547 = vmatprep.subr.bf16.mxu0 0
      %1548 = vmatpush2.bf16.msra.mxu0 0
      %1549 = vmatprep.subr.bf16.mxu0 0
      %1550 = vmatpush2.bf16.msra.mxu0 0
      %1551 = vmatprep.mubr.bf16.mxu0 0
      %1552 = vmatmul.mubr.bf16.gmra.mxu0 %v1508
      %v1553 = vpop.f32.mrf.mxu0
      %v1554 = vadd.f32 0.0, %v1553
      %v1555 = vpop.f32.mrf.mxu0
      %v1556 = vpop.f32.mrf.mxu0
      %v1557 = vadd.f32 0.0, %v1556
      %v1558 = vpop.f32.mrf.mxu0
      %1559 = vmatprep.mubr.bf16.mxu0 0
      %1560 = vmatmul.mubr.bf16.gmra.mxu0 %v1511
      %v1561 = vpop.f32.mrf.mxu0
      %v1562 = vadd.f32 0.0, %v1561
      %v1563 = vpop.f32.mrf.mxu0
      %v1564 = vpop.f32.mrf.mxu0
      %v1565 = vadd.f32 0.0, %v1564
      %v1566 = vpop.f32.mrf.mxu0
      %1567 = vmatprep.mubr.bf16.mxu0 0
      %1568 = vmatmul.mubr.bf16.gmra.mxu0 %v1514
      %v1569 = vpop.f32.mrf.mxu0
      %v1570 = vadd.f32 0.0, %v1569
      %v1571 = vpop.f32.mrf.mxu0
      %v1572 = vpop.f32.mrf.mxu0
      %v1573 = vadd.f32 0.0, %v1572
      %v1574 = vpop.f32.mrf.mxu0
      %1575 = vmatprep.mubr.bf16.mxu0 0
      %1576 = vmatmul.mubr.bf16.gmra.mxu0 %v1517
      %v1577 = vpop.f32.mrf.mxu0
      %v1578 = vadd.f32 0.0, %v1577
      %v1579 = vpop.f32.mrf.mxu0
      %v1580 = vpop.f32.mrf.mxu0
      %v1581 = vadd.f32 0.0, %v1580
      %v1582 = vpop.f32.mrf.mxu0
      %1583 = vdwg.mxu0
      %v1584 = vadd.f32 %v1491, %v1554
      %v1585 = vadd.f32 %v1492, %v1557
      %v1586 = vadd.f32 %v1493, %v1562
      %v1587 = vadd.f32 %v1494, %v1565
      %v1588 = vadd.f32 %v1495, %v1570
      %v1589 = vadd.f32 %v1496, %v1573
      %v1590 = vadd.f32 %v1497, %v1578
      %v1591 = vadd.f32 %v1498, %v1581
      %1592 = vst [vmem:[#allocation5] sm:$0xff] %v1584
      %1593 = vst [vmem:[#allocation5 + $0x8] sm:$0xff] %v1585
      %1594 = vst [vmem:[#allocation5 + $0x10] sm:$0xff] %v1586
      %1595 = vst [vmem:[#allocation5 + $0x18] sm:$0xff] %v1587
      %1596 = vst [vmem:[#allocation5 + $0x20] sm:$0xff] %v1588
      %1597 = vst [vmem:[#allocation5 + $0x28] sm:$0xff] %v1589
      %1598 = vst [vmem:[#allocation5 + $0x30] sm:$0xff] %v1590
      %1599 = vst [vmem:[#allocation5 + $0x38] sm:$0xff] %v1591
      %1600 = vst.msk [vmem:[#allocation3] sm:$0xff] %vm1434, %v1290
      %1601 = vst.msk [vmem:[#allocation3 + $0x8] sm:$0xff] %vm1434, %v1291
      %1602 = vst.msk [vmem:[#allocation3 + $0x10] sm:$0xff] %vm1434, %v1292
      %1603 = vst.msk [vmem:[#allocation3 + $0x18] sm:$0xff] %vm1434, %v1293
      %1604 = vst.msk [vmem:[#allocation3 + $0x20] sm:$0xff] %vm1434, %v1294
      %1605 = vst.msk [vmem:[#allocation3 + $0x28] sm:$0xff] %vm1434, %v1295
      %1606 = vst.msk [vmem:[#allocation3 + $0x30] sm:$0xff] %vm1434, %v1296
      %1607 = vst.msk [vmem:[#allocation3 + $0x38] sm:$0xff] %vm1434, %v1297
      %p1608 = scmp.eq.s32.totalorder %s27, 1
      // Predicated region
      $region61: #{mossformer2_ss_forward.4} parent=55 // pred_check
        %p1609 = pneg %p1608
      $region62: #{mossformer2_ss_forward.4} parent=55 // pred_check_branch
        %1611 = sbr.rel (%p1609) target = $region64
      $region63: #{mossformer2_ss_forward.4} parent=55 // pred_region
        %1612 = vadd.xlane.f32.xlu0 %v424
        %v1613 = vpop.xlane.xlu0 %1612
        %1614 = vadd.xlane.f32.xlu0 %v425
        %v1615 = vpop.xlane.xlu0 %1614
        %1616 = vadd.xlane.f32.xlu0 %v426
        %v1617 = vpop.xlane.xlu0 %1616
        %1618 = vadd.xlane.f32.xlu0 %v427
        %v1619 = vpop.xlane.xlu0 %1618
        %1620 = vadd.xlane.f32.xlu0 %v428
        %v1621 = vpop.xlane.xlu0 %1620
        %1622 = vadd.xlane.f32.xlu0 %v429
        %v1623 = vpop.xlane.xlu0 %1622
        %1624 = vadd.xlane.f32.xlu0 %v430
        %v1625 = vpop.xlane.xlu0 %1624
        %1626 = vadd.xlane.f32.xlu0 %v431
        %v1627 = vpop.xlane.xlu0 %1626
        %v1628 = vmul.f32 %v1613, %v793
        %v1629 = vmul.f32 %v1615, %v793
        %v1630 = vmul.f32 %v1617, %v793
        %v1631 = vmul.f32 %v1619, %v793
        %v1632 = vmul.f32 %v1621, %v793
        %v1633 = vmul.f32 %v1623, %v793
        %v1634 = vmul.f32 %v1625, %v793
        %v1635 = vmul.f32 %v1627, %v793
        %v1636 = vsub.f32 %v424, %v1628
        %v1637 = vsub.f32 %v425, %v1629
        %v1638 = vsub.f32 %v426, %v1630
        %v1639 = vsub.f32 %v427, %v1631
        %v1640 = vsub.f32 %v428, %v1632
        %v1641 = vsub.f32 %v429, %v1633
        %v1642 = vsub.f32 %v430, %v1634
        %v1643 = vsub.f32 %v431, %v1635
        %v1644 = vmul.f32 %v1636, %v1636
        %v1645 = vmul.f32 %v1637, %v1637
        %v1646 = vmul.f32 %v1638, %v1638
        %v1647 = vmul.f32 %v1639, %v1639
        %v1648 = vmul.f32 %v1640, %v1640
        %v1649 = vmul.f32 %v1641, %v1641
        %v1650 = vmul.f32 %v1642, %v1642
        %v1651 = vmul.f32 %v1643, %v1643
        %1652 = vadd.xlane.f32.xlu0 %v1644
        %v1653 = vpop.xlane.xlu0 %1652
        %1654 = vadd.xlane.f32.xlu0 %v1645
        %v1655 = vpop.xlane.xlu0 %1654
        %1656 = vadd.xlane.f32.xlu0 %v1646
        %v1657 = vpop.xlane.xlu0 %1656
        %1658 = vadd.xlane.f32.xlu0 %v1647
        %v1659 = vpop.xlane.xlu0 %1658
        %1660 = vadd.xlane.f32.xlu0 %v1648
        %v1661 = vpop.xlane.xlu0 %1660
        %1662 = vadd.xlane.f32.xlu0 %v1649
        %v1663 = vpop.xlane.xlu0 %1662
        %1664 = vadd.xlane.f32.xlu0 %v1650
        %v1665 = vpop.xlane.xlu0 %1664
        %1666 = vadd.xlane.f32.xlu0 %v1651
        %v1667 = vpop.xlane.xlu0 %1666
        %v1668 = vmul.f32 %v1653, %v793
        %v1669 = vmul.f32 %v1655, %v793
        %v1670 = vmul.f32 %v1657, %v793
        %v1671 = vmul.f32 %v1659, %v793
        %v1672 = vmul.f32 %v1661, %v793
        %v1673 = vmul.f32 %v1663, %v793
        %v1674 = vmul.f32 %v1665, %v793
        %v1675 = vmul.f32 %v1667, %v793
        %v1676 = vadd.f32 %v1668, 1e-05
        %v1677 = vadd.f32 %v1669, 1e-05
        %v1678 = vadd.f32 %v1670, 1e-05
        %v1679 = vadd.f32 %v1671, 1e-05
        %v1680 = vadd.f32 %v1672, 1e-05
        %v1681 = vadd.f32 %v1673, 1e-05
        %v1682 = vadd.f32 %v1674, 1e-05
        %v1683 = vadd.f32 %v1675, 1e-05
        %v1684 = vrsqrt.pop %v1676
        %v1685 = vrsqrt.pop %v1677
        %v1686 = vrsqrt.pop %v1678
        %v1687 = vrsqrt.pop %v1679
        %v1688 = vrsqrt.pop %v1680
        %v1689 = vrsqrt.pop %v1681
        %v1690 = vrsqrt.pop %v1682
        %v1691 = vrsqrt.pop %v1683
        %v1692 = vmul.f32 %v1636, %v1684
        %v1693 = vmul.f32 %v1637, %v1685
        %v1694 = vmul.f32 %v1638, %v1686
        %v1695 = vmul.f32 %v1639, %v1687
        %v1696 = vmul.f32 %v1640, %v1688
        %v1697 = vmul.f32 %v1641, %v1689
        %v1698 = vmul.f32 %v1642, %v1690
        %v1699 = vmul.f32 %v1643, %v1691
        %v1700 = vmul.f32 %v1692, %v870
        %v1701 = vmul.f32 %v1693, %v870
        %v1702 = vmul.f32 %v1694, %v870
        %v1703 = vmul.f32 %v1695, %v870
        %v1704 = vmul.f32 %v1696, %v870
        %v1705 = vmul.f32 %v1697, %v870
        %v1706 = vmul.f32 %v1698, %v870
        %v1707 = vmul.f32 %v1699, %v870
        %v1708 = vadd.f32 %v1700, %v884
        %v1709 = vadd.f32 %v1701, %v884
        %v1710 = vadd.f32 %v1702, %v884
        %v1711 = vadd.f32 %v1703, %v884
        %v1712 = vadd.f32 %v1704, %v884
        %v1713 = vadd.f32 %v1705, %v884
        %v1714 = vadd.f32 %v1706, %v884
        %v1715 = vadd.f32 %v1707, %v884
        %v1716 = vpack.c.bf16 %v1709, %v1708
        %v1717 = vpack.c.bf16 %v1711, %v1710
        %v1718 = vpack.c.bf16 %v1713, %v1712
        %v1719 = vpack.c.bf16 %v1715, %v1714
        %v1720 = vld [vmem:[%s7] sm:$0xf]
        %v1721 = vld [vmem:[%s7 + $0x4] sm:$0xf]
        %v1722 = vld [vmem:[%s7 + $0x8] sm:$0xf]
        %v1723 = vld [vmem:[%s7 + $0xc] sm:$0xf]
        %v1724 = vld [vmem:[%s7 + $0x10] sm:$0xf]
        %v1725 = vld [vmem:[%s7 + $0x14] sm:$0xf]
        %v1726 = vld [vmem:[%s7 + $0x18] sm:$0xf]
        %v1727 = vld [vmem:[%s7 + $0x1c] sm:$0xf]
        %v1728 = vld [vmem:[%s7 + $0x20] sm:$0xf]
        %v1729 = vld [vmem:[%s7 + $0x24] sm:$0xf]
        %v1730 = vld [vmem:[%s7 + $0x28] sm:$0xf]
        %v1731 = vld [vmem:[%s7 + $0x2c] sm:$0xf]
        %v1732 = vld [vmem:[%s7 + $0x30] sm:$0xf]
        %v1733 = vld [vmem:[%s7 + $0x34] sm:$0xf]
        %v1734 = vld [vmem:[%s7 + $0x38] sm:$0xf]
        %v1735 = vld [vmem:[%s7 + $0x3c] sm:$0xf]
        %v1752 = vunpack.c.l.b16 %v1720
        %v1753 = vunpack.c.l.b16 %v1721
        %v1754 = vunpack.c.l.b16 %v1722
        %v1755 = vunpack.c.l.b16 %v1723
        %v1756 = vunpack.c.l.b16 %v1724
        %v1757 = vunpack.c.l.b16 %v1725
        %v1758 = vunpack.c.l.b16 %v1726
        %v1759 = vunpack.c.l.b16 %v1727
        %v1760 = vunpack.c.l.b16 %v1728
        %v1761 = vunpack.c.l.b16 %v1729
        %v1762 = vunpack.c.l.b16 %v1730
        %v1763 = vunpack.c.l.b16 %v1731
        %v1764 = vunpack.c.l.b16 %v1732
        %v1765 = vunpack.c.l.b16 %v1733
        %v1766 = vunpack.c.l.b16 %v1734
        %v1767 = vunpack.c.l.b16 %v1735
        %v1768 = vpack.c.b16 %v1753, %v1752
        %v1769 = vpack.c.b16 %v1755, %v1754
        %v1770 = vpack.c.b16 %v1757, %v1756
        %v1771 = vpack.c.b16 %v1759, %v1758
        %v1772 = vpack.c.b16 %v1761, %v1760
        %v1773 = vpack.c.b16 %v1763, %v1762
        %v1774 = vpack.c.b16 %v1765, %v1764
        %v1775 = vpack.c.b16 %v1767, %v1766
        %1784 = vmatprep.subr.bf16.mxu0 0
        %1785 = vmatpush1.bf16.msra.mxu0 %v1775
        %1786 = vmatprep.subr.bf16.mxu0 0
        %1787 = vmatpush1.bf16.msra.mxu0 %v1774
        %1788 = vmatprep.subr.bf16.mxu0 0
        %1789 = vmatpush1.bf16.msra.mxu0 %v1773
        %1790 = vmatprep.subr.bf16.mxu0 0
        %1791 = vmatpush1.bf16.msra.mxu0 %v1772
        %1792 = vmatprep.subr.bf16.mxu0 0
        %1793 = vmatpush1.bf16.msra.mxu0 %v1771
        %1794 = vmatprep.subr.bf16.mxu0 0
        %1795 = vmatpush1.bf16.msra.mxu0 %v1770
        %1796 = vmatprep.subr.bf16.mxu0 0
        %1797 = vmatpush1.bf16.msra.mxu0 %v1769
        %1798 = vmatprep.subr.bf16.mxu0 0
        %1799 = vmatpush1.bf16.msra.mxu0 %v1768
        %1800 = vmatprep.subr.bf16.mxu0 0
        %1801 = vmatpush2.bf16.msra.mxu0 0
        %1802 = vmatprep.subr.bf16.mxu0 0
        %1803 = vmatpush2.bf16.msra.mxu0 0
        %1804 = vmatprep.subr.bf16.mxu0 0
        %1805 = vmatpush2.bf16.msra.mxu0 0
        %1806 = vmatprep.subr.bf16.mxu0 0
        %1807 = vmatpush2.bf16.msra.mxu0 0
        %1808 = vmatprep.subr.bf16.mxu0 0
        %1809 = vmatpush2.bf16.msra.mxu0 0
        %1810 = vmatprep.subr.bf16.mxu0 0
        %1811 = vmatpush2.bf16.msra.mxu0 0
        %1812 = vmatprep.subr.bf16.mxu0 0
        %1813 = vmatpush2.bf16.msra.mxu0 0
        %1814 = vmatprep.subr.bf16.mxu0 0
        %1815 = vmatpush2.bf16.msra.mxu0 0
        %1816 = vmatprep.mubr.bf16.mxu0 0
        %1817 = vmatmul.mubr.bf16.gmra.mxu0 %v1716
        %v1818 = vpop.f32.mrf.mxu0
        %v1819 = vadd.f32 0.0, %v1818
        %v1820 = vpop.f32.mrf.mxu0
        %v1821 = vpop.f32.mrf.mxu0
        %v1822 = vadd.f32 0.0, %v1821
        %v1823 = vpop.f32.mrf.mxu0
        %1824 = vmatprep.mubr.bf16.mxu0 0
        %1825 = vmatmul.mubr.bf16.gmra.mxu0 %v1717
        %v1826 = vpop.f32.mrf.mxu0
        %v1827 = vadd.f32 0.0, %v1826
        %v1828 = vpop.f32.mrf.mxu0
        %v1829 = vpop.f32.mrf.mxu0
        %v1830 = vadd.f32 0.0, %v1829
        %v1831 = vpop.f32.mrf.mxu0
        %1832 = vmatprep.mubr.bf16.mxu0 0
        %1833 = vmatmul.mubr.bf16.gmra.mxu0 %v1718
        %v1834 = vpop.f32.mrf.mxu0
        %v1835 = vadd.f32 0.0, %v1834
        %v1836 = vpop.f32.mrf.mxu0
        %v1837 = vpop.f32.mrf.mxu0
        %v1838 = vadd.f32 0.0, %v1837
        %v1839 = vpop.f32.mrf.mxu0
        %1840 = vmatprep.mubr.bf16.mxu0 0
        %1841 = vmatmul.mubr.bf16.gmra.mxu0 %v1719
        %v1842 = vpop.f32.mrf.mxu0
        %v1843 = vadd.f32 0.0, %v1842
        %v1844 = vpop.f32.mrf.mxu0
        %v1845 = vpop.f32.mrf.mxu0
        %v1846 = vadd.f32 0.0, %v1845
        %v1847 = vpop.f32.mrf.mxu0
        %1848 = vdwg.mxu0
        %v1849 = vld [vmem:[#allocation5] sm:$0xff]
        %v1850 = vld [vmem:[#allocation5 + $0x8] sm:$0xff]
        %v1851 = vld [vmem:[#allocation5 + $0x10] sm:$0xff]
        %v1852 = vld [vmem:[#allocation5 + $0x18] sm:$0xff]
        %v1853 = vld [vmem:[#allocation5 + $0x20] sm:$0xff]
        %v1854 = vld [vmem:[#allocation5 + $0x28] sm:$0xff]
        %v1855 = vld [vmem:[#allocation5 + $0x30] sm:$0xff]
        %v1856 = vld [vmem:[#allocation5 + $0x38] sm:$0xff]
        %v1857 = vld [vmem:[#allocation4] sm:$0xff]
        %v1858 = vld [vmem:[#allocation4 + $0x8] sm:$0xff]
        %v1859 = vld [vmem:[#allocation4 + $0x10] sm:$0xff]
        %v1860 = vld [vmem:[#allocation4 + $0x18] sm:$0xff]
        %v1861 = vld [vmem:[#allocation4 + $0x20] sm:$0xff]
        %v1862 = vld [vmem:[#allocation4 + $0x28] sm:$0xff]
        %v1863 = vld [vmem:[#allocation4 + $0x30] sm:$0xff]
        %v1864 = vld [vmem:[#allocation4 + $0x38] sm:$0xff]
        %v1865 = vrcp.pop %v1857
        %v1866 = vrcp.pop %v1858
        %v1867 = vrcp.pop %v1859
        %v1868 = vrcp.pop %v1860
        %v1869 = vrcp.pop %v1861
        %v1870 = vrcp.pop %v1862
        %v1871 = vrcp.pop %v1863
        %v1872 = vrcp.pop %v1864
        %1874 = vset.pattern.permute.xlu0 0
        %1875 = vperm.xlu0 %1874, %v1865
        %v1876 = vpop.permute.xlu0 %1875
        %1879 = vset.pattern.permute.xlu0 0
        %1880 = vperm.xlu0 %1879, %v1866
        %v1881 = vpop.permute.xlu0 %1880
        %1884 = vset.pattern.permute.xlu0 0
        %1885 = vperm.xlu0 %1884, %v1867
        %v1886 = vpop.permute.xlu0 %1885
        %1889 = vset.pattern.permute.xlu0 0
        %1890 = vperm.xlu0 %1889, %v1868
        %v1891 = vpop.permute.xlu0 %1890
        %1894 = vset.pattern.permute.xlu0 0
        %1895 = vperm.xlu0 %1894, %v1869
        %v1896 = vpop.permute.xlu0 %1895
        %1899 = vset.pattern.permute.xlu0 0
        %1900 = vperm.xlu0 %1899, %v1870
        %v1901 = vpop.permute.xlu0 %1900
        %1904 = vset.pattern.permute.xlu0 0
        %1905 = vperm.xlu0 %1904, %v1871
        %v1906 = vpop.permute.xlu0 %1905
        %1909 = vset.pattern.permute.xlu0 0
        %1910 = vperm.xlu0 %1909, %v1872
        %v1911 = vpop.permute.xlu0 %1910
        %v1913 = vmul.f32 %v1849, %v1876
        %v1914 = vmul.f32 %v1850, %v1881
        %v1915 = vmul.f32 %v1851, %v1886
        %v1916 = vmul.f32 %v1852, %v1891
        %v1917 = vmul.f32 %v1853, %v1896
        %v1918 = vmul.f32 %v1854, %v1901
        %v1919 = vmul.f32 %v1855, %v1906
        %v1920 = vmul.f32 %v1856, %v1911
        %v1921 = vxor.u32 %v1819, 2147483648
        %v1922 = vxor.u32 %v1822, 2147483648
        %v1923 = vxor.u32 %v1827, 2147483648
        %v1924 = vxor.u32 %v1830, 2147483648
        %v1925 = vxor.u32 %v1835, 2147483648
        %v1926 = vxor.u32 %v1838, 2147483648
        %v1927 = vxor.u32 %v1843, 2147483648
        %v1928 = vxor.u32 %v1846, 2147483648
        %v1929 = vmul.f32 %v1921, 1.442695
        %v1930 = vpow.pop %v1929
        %v1931 = vmul.f32 %v1922, 1.442695
        %v1932 = vpow.pop %v1931
        %v1933 = vmul.f32 %v1923, 1.442695
        %v1934 = vpow.pop %v1933
        %v1935 = vmul.f32 %v1924, 1.442695
        %v1936 = vpow.pop %v1935
        %v1937 = vmul.f32 %v1925, 1.442695
        %v1938 = vpow.pop %v1937
        %v1939 = vmul.f32 %v1926, 1.442695
        %v1940 = vpow.pop %v1939
        %v1941 = vmul.f32 %v1927, 1.442695
        %v1942 = vpow.pop %v1941
        %v1943 = vmul.f32 %v1928, 1.442695
        %v1944 = vpow.pop %v1943
        %v1945 = vadd.f32 %v1930, 1.0
        %v1946 = vadd.f32 %v1932, 1.0
        %v1947 = vadd.f32 %v1934, 1.0
        %v1948 = vadd.f32 %v1936, 1.0
        %v1949 = vadd.f32 %v1938, 1.0
        %v1950 = vadd.f32 %v1940, 1.0
        %v1951 = vadd.f32 %v1942, 1.0
        %v1952 = vadd.f32 %v1944, 1.0
        %v1953 = vrcp.pop %v1945
        %v1954 = vmul.f32 1.0, %v1953
        %v1955 = vrcp.pop %v1946
        %v1956 = vmul.f32 1.0, %v1955
        %v1957 = vrcp.pop %v1947
        %v1958 = vmul.f32 1.0, %v1957
        %v1959 = vrcp.pop %v1948
        %v1960 = vmul.f32 1.0, %v1959
        %v1961 = vrcp.pop %v1949
        %v1962 = vmul.f32 1.0, %v1961
        %v1963 = vrcp.pop %v1950
        %v1964 = vmul.f32 1.0, %v1963
        %v1965 = vrcp.pop %v1951
        %v1966 = vmul.f32 1.0, %v1965
        %v1967 = vrcp.pop %v1952
        %v1968 = vmul.f32 1.0, %v1967
        %v1969 = vmul.f32 %v1913, %v1954
        %v1970 = vmul.f32 %v1914, %v1956
        %v1971 = vmul.f32 %v1915, %v1958
        %v1972 = vmul.f32 %v1916, %v1960
        %v1973 = vmul.f32 %v1917, %v1962
        %v1974 = vmul.f32 %v1918, %v1964
        %v1975 = vmul.f32 %v1919, %v1966
        %v1976 = vmul.f32 %v1920, %v1968
        %v1977 = vpack.c.bf16 %v1970, %v1969
        %v1978 = vpack.c.bf16 %v1972, %v1971
        %v1979 = vpack.c.bf16 %v1974, %v1973
        %v1980 = vpack.c.bf16 %v1976, %v1975
        %v1981 = vld [vmem:[%s8] sm:$0xf]
        %v1982 = vld [vmem:[%s8 + $0x4] sm:$0xf]
        %v1983 = vld [vmem:[%s8 + $0x8] sm:$0xf]
        %v1984 = vld [vmem:[%s8 + $0xc] sm:$0xf]
        %v1985 = vld [vmem:[%s8 + $0x10] sm:$0xf]
        %v1986 = vld [vmem:[%s8 + $0x14] sm:$0xf]
        %v1987 = vld [vmem:[%s8 + $0x18] sm:$0xf]
        %v1988 = vld [vmem:[%s8 + $0x1c] sm:$0xf]
        %v1989 = vld [vmem:[%s8 + $0x20] sm:$0xf]
        %v1990 = vld [vmem:[%s8 + $0x24] sm:$0xf]
        %v1991 = vld [vmem:[%s8 + $0x28] sm:$0xf]
        %v1992 = vld [vmem:[%s8 + $0x2c] sm:$0xf]
        %v1993 = vld [vmem:[%s8 + $0x30] sm:$0xf]
        %v1994 = vld [vmem:[%s8 + $0x34] sm:$0xf]
        %v1995 = vld [vmem:[%s8 + $0x38] sm:$0xf]
        %v1996 = vld [vmem:[%s8 + $0x3c] sm:$0xf]
        %v2013 = vunpack.c.l.b16 %v1981
        %v2014 = vunpack.c.l.b16 %v1982
        %v2015 = vunpack.c.l.b16 %v1983
        %v2016 = vunpack.c.l.b16 %v1984
        %v2017 = vunpack.c.l.b16 %v1985
        %v2018 = vunpack.c.l.b16 %v1986
        %v2019 = vunpack.c.l.b16 %v1987
        %v2020 = vunpack.c.l.b16 %v1988
        %v2021 = vunpack.c.l.b16 %v1989
        %v2022 = vunpack.c.l.b16 %v1990
        %v2023 = vunpack.c.l.b16 %v1991
        %v2024 = vunpack.c.l.b16 %v1992
        %v2025 = vunpack.c.l.b16 %v1993
        %v2026 = vunpack.c.l.b16 %v1994
        %v2027 = vunpack.c.l.b16 %v1995
        %v2028 = vunpack.c.l.b16 %v1996
        %v2029 = vpack.c.b16 %v2014, %v2013
        %v2030 = vpack.c.b16 %v2016, %v2015
        %v2031 = vpack.c.b16 %v2018, %v2017
        %v2032 = vpack.c.b16 %v2020, %v2019
        %v2033 = vpack.c.b16 %v2022, %v2021
        %v2034 = vpack.c.b16 %v2024, %v2023
        %v2035 = vpack.c.b16 %v2026, %v2025
        %v2036 = vpack.c.b16 %v2028, %v2027
        %2045 = vmatprep.subr.bf16.mxu0 0
        %2046 = vmatpush1.bf16.msra.mxu0 %v2036
        %2047 = vmatprep.subr.bf16.mxu0 0
        %2048 = vmatpush1.bf16.msra.mxu0 %v2035
        %2049 = vmatprep.subr.bf16.mxu0 0
        %2050 = vmatpush1.bf16.msra.mxu0 %v2034
        %2051 = vmatprep.subr.bf16.mxu0 0
        %2052 = vmatpush1.bf16.msra.mxu0 %v2033
        %2053 = vmatprep.subr.bf16.mxu0 0
        %2054 = vmatpush1.bf16.msra.mxu0 %v2032
        %2055 = vmatprep.subr.bf16.mxu0 0
        %2056 = vmatpush1.bf16.msra.mxu0 %v2031
        %2057 = vmatprep.subr.bf16.mxu0 0
        %2058 = vmatpush1.bf16.msra.mxu0 %v2030
        %2059 = vmatprep.subr.bf16.mxu0 0
        %2060 = vmatpush1.bf16.msra.mxu0 %v2029
        %2061 = vmatprep.subr.bf16.mxu0 0
        %2062 = vmatpush2.bf16.msra.mxu0 0
        %2063 = vmatprep.subr.bf16.mxu0 0
        %2064 = vmatpush2.bf16.msra.mxu0 0
        %2065 = vmatprep.subr.bf16.mxu0 0
        %2066 = vmatpush2.bf16.msra.mxu0 0
        %2067 = vmatprep.subr.bf16.mxu0 0
        %2068 = vmatpush2.bf16.msra.mxu0 0
        %2069 = vmatprep.subr.bf16.mxu0 0
        %2070 = vmatpush2.bf16.msra.mxu0 0
        %2071 = vmatprep.subr.bf16.mxu0 0
        %2072 = vmatpush2.bf16.msra.mxu0 0
        %2073 = vmatprep.subr.bf16.mxu0 0
        %2074 = vmatpush2.bf16.msra.mxu0 0
        %2075 = vmatprep.subr.bf16.mxu0 0
        %2076 = vmatpush2.bf16.msra.mxu0 0
        %2077 = vmatprep.mubr.bf16.mxu0 0
        %2078 = vmatmul.mubr.bf16.gmra.mxu0 %v1977
        %v2079 = vpop.f32.mrf.mxu0
        %v2080 = vadd.f32 0.0, %v2079
        %v2081 = vpop.f32.mrf.mxu0
        %v2082 = vpop.f32.mrf.mxu0
        %v2083 = vadd.f32 0.0, %v2082
        %v2084 = vpop.f32.mrf.mxu0
        %2085 = vmatprep.mubr.bf16.mxu0 0
        %2086 = vmatmul.mubr.bf16.gmra.mxu0 %v1978
        %v2087 = vpop.f32.mrf.mxu0
        %v2088 = vadd.f32 0.0, %v2087
        %v2089 = vpop.f32.mrf.mxu0
        %v2090 = vpop.f32.mrf.mxu0
        %v2091 = vadd.f32 0.0, %v2090
        %v2092 = vpop.f32.mrf.mxu0
        %2093 = vmatprep.mubr.bf16.mxu0 0
        %2094 = vmatmul.mubr.bf16.gmra.mxu0 %v1979
        %v2095 = vpop.f32.mrf.mxu0
        %v2096 = vadd.f32 0.0, %v2095
        %v2097 = vpop.f32.mrf.mxu0
        %v2098 = vpop.f32.mrf.mxu0
        %v2099 = vadd.f32 0.0, %v2098
        %v2100 = vpop.f32.mrf.mxu0
        %2101 = vmatprep.mubr.bf16.mxu0 0
        %2102 = vmatmul.mubr.bf16.gmra.mxu0 %v1980
        %v2103 = vpop.f32.mrf.mxu0
        %v2104 = vadd.f32 0.0, %v2103
        %v2105 = vpop.f32.mrf.mxu0
        %v2106 = vpop.f32.mrf.mxu0
        %v2107 = vadd.f32 0.0, %v2106
        %v2108 = vpop.f32.mrf.mxu0
        %2109 = vdwg.mxu0
        %v2110 = vadd.f32 %v424, %v2080
        %v2111 = vadd.f32 %v425, %v2083
        %v2112 = vadd.f32 %v426, %v2088
        %v2113 = vadd.f32 %v427, %v2091
        %v2114 = vadd.f32 %v428, %v2096
        %v2115 = vadd.f32 %v429, %v2099
        %v2116 = vadd.f32 %v430, %v2104
        %v2117 = vadd.f32 %v431, %v2107
        %v2118 = vpack.c.bf16 %v2111, %v2110
        %v2119 = vpack.c.bf16 %v2113, %v2112
        %v2120 = vpack.c.bf16 %v2115, %v2114
        %v2121 = vpack.c.bf16 %v2117, %v2116
        %v2126 = vunpack.c.l.b16 %v2118
        %v2127 = vunpack.c.h.b16 %v2118
        %v2128 = vunpack.c.l.b16 %v2119
        %v2129 = vunpack.c.h.b16 %v2119
        %v2130 = vunpack.c.l.b16 %v2120
        %v2131 = vunpack.c.h.b16 %v2120
        %v2132 = vunpack.c.l.b16 %v2121
        %v2133 = vunpack.c.h.b16 %v2121
        %v2134 = vpack.c.b16 %v2126, %v2126
        %v2135 = vpack.c.b16 %v2127, %v2127
        %v2136 = vpack.c.b16 %v2128, %v2128
        %v2137 = vpack.c.b16 %v2129, %v2129
        %v2138 = vpack.c.b16 %v2130, %v2130
        %v2139 = vpack.c.b16 %v2131, %v2131
        %v2140 = vpack.c.b16 %v2132, %v2132
        %v2141 = vpack.c.b16 %v2133, %v2133
        %2150 = vst [vmem:[%s413] sm:$0xf] %v2134
        %2151 = vst [vmem:[%s413 + $0x4] sm:$0xf] %v2135
        %2152 = vst [vmem:[%s413 + $0x8] sm:$0xf] %v2136
        %2153 = vst [vmem:[%s413 + $0xc] sm:$0xf] %v2137
        %2154 = vst [vmem:[%s413 + $0x10] sm:$0xf] %v2138
        %2155 = vst [vmem:[%s413 + $0x14] sm:$0xf] %v2139
        %2156 = vst [vmem:[%s413 + $0x18] sm:$0xf] %v2140
        %2157 = vst [vmem:[%s413 + $0x1c] sm:$0xf] %v2141
      $region64: #{mossformer2_ss_forward.4} parent=55 // pred_fallthru
        _
      %s2158 = smul.u32 8, %s26
      %p2159 = scmp.lt.s32.totalorder %s25, 1
      %s2160 = scalar_select %p2159, %s25, 1
      %p2161 = scmp.lt.s32.totalorder %s2158, 15
      %s2162 = scalar_select %p2161, %s2158, 15
      %s2163 = smul.addr %s2160, 16
      %s2164 = sadd.s32 %s2162, %s2163
      %s2165 = smul.addr %s2164, 4
      %s2166 = scalar_lea.vmem %s9, %s2165
      // Predicated region
      $region65: #{mossformer2_ss_forward.4} parent=55 // pred_check
        %p2167 = pneg %p262
      $region66: #{mossformer2_ss_forward.4} parent=55 // pred_check_branch
        %2169 = sbr.rel (%p2167) target = $region68
      $region67: #{mossformer2_ss_forward.4} parent=55 // pred_region
        %s2170 = smul.u32 8, %s26
      $region68: #{mossformer2_ss_forward.4} parent=55 // pred_fallthru
        _
    $region56: #{mossformer2_ss_forward.4} parent=5 // pred_fallthru
      _
    %p2171 = scmp.le.s32.totalorder 2, %s15
    // Predicated region
    $region69: #{mossformer2_ss_forward.4} parent=5 // pred_check
      %p2172 = pneg %p2171
    $region70: #{mossformer2_ss_forward.4} parent=5 // pred_check_branch
      %2174 = sbr.rel (%p2172) target = $region72
    $region71: #{mossformer2_ss_forward.4} parent=5 // pred_region
      %s2175 = ssub.s32 %s15, 2
      // Predicated region
      $region73: #{mossformer2_ss_forward.4} parent=71 // pred_check
        %p2176 = pneg %p268
      $region74: #{mossformer2_ss_forward.4} parent=71 // pred_check_branch
        %2178 = sbr.rel (%p2176) target = $region76
      $region75: #{mossformer2_ss_forward.4} parent=71 // pred_region
        %s2179 = smul.u32 8, %s29
        %p2180 = scmp.lt.s32.totalorder %s28, 1
        %s2181 = scalar_select %p2180, %s28, 1
        %p2182 = scmp.lt.s32.totalorder %s2179, 15
        %s2183 = scalar_select %p2182, %s2179, 15
        %s2184 = smul.addr %s2181, 16
        %s2185 = sadd.s32 %s2183, %s2184
        %s2186 = smul.addr %s2185, 4
        %s2187 = scalar_lea.vmem %s9, %s2186
      $region76: #{mossformer2_ss_forward.4} parent=71 // pred_fallthru
        _
    $region72: #{mossformer2_ss_forward.4} parent=5 // pred_fallthru
      _
  $region6: #{mossformer2_ss_forward.4} parent=0 // loop_footer
    %s19 = sadd.s32 1, %s15
  $region7: #{mossformer2_ss_forward.4} parent=0 // loop_footer_branch
    %14 = sbr.rel target = $region3
  $region8: #{mossformer2_ss_forward.4} parent=0 // loop_exit
    _

// kernel: mossformer2_ss_forward.5
$region0: #{mossformer2_ss_forward.5}
  #allocation0 [shape = 'u32[]', space=smem, size = 0x4, offset = 0x4, fixed_abs, tag = 'smem constant byte address 0x4 - core index']
  #allocation1 [shape = 'u32[144,128]{1,0:T(1,128)}', space=vmem, size = 0x12000, scoped, tag = 'internal scratch']
  %s0 = inlined_call_operand.vmem [shape: bf16[256,128], index: 0, kind: input, shape index: {}]
  %s1 = inlined_call_operand.vmem [shape: bf16[256,128], index: 1, kind: input, shape index: {}]
  %s2 = inlined_call_operand.vmem [shape: bf16[128,256], index: 2, kind: input, shape index: {}]
  %s3 = inlined_call_operand.vmem [shape: bf16[128,256], index: 3, kind: input, shape index: {}]
  %s4 = inlined_call_operand.vmem [shape: bf16[128,16], index: 4, kind: input, shape index: {}]
  %s5 = inlined_call_operand.vmem [shape: f32[256,32], index: 5, kind: output, shape index: {}]
  %s6 = sld [smem:[#allocation0]]
  $region53: #{mossformer2_ss_forward.5} parent=0
    _
  %s8 = ssub.s32 1, %s6
  %s9 = scalar_select 0, %s8, %s6
  loop: start=0, step=1, limit=4
  $region2: #{mossformer2_ss_forward.5} parent=0 // loop_pre_header
    _
  $region3: #{mossformer2_ss_forward.5} parent=0 // loop_header
    %s11 = sphi 0, %s15
    %p12 = scmp.ge.s32.totalorder %s11, 4
    %s21 = sphi 0, %s23
    %s24 = sphi 0, %s21
    %s25 = sphi 0, %s24
    %s41 = sphi 0, %s25
    %s47 = sphi 0, %s49
    %s50 = sphi 0, %s47
    %s51 = sphi 0, %s50
    %s67 = sphi 0, %s51
    %s71 = sphi 0, %s71
    %s73 = sphi 0, %s71
    %s74 = sphi 0, %s73
    %s88 = sphi 0, %s74
    %s92 = sphi 0, %s92
    %s94 = sphi 0, %s92
    %s95 = sphi 0, %s94
    %s109 = sphi 0, %s95
    %s113 = sphi 0, %s113
    %s115 = sphi 0, %s113
    %s116 = sphi 0, %s115
    %s130 = sphi 0, %s116
    %s136 = sphi 0, %s138
    %s139 = sphi 0, %s136
    %s140 = sphi 0, %s139
    %s156 = sphi 0, %s140
  $region4: #{mossformer2_ss_forward.5} parent=0 // loop_header_branch
    %14 = sbr.rel (%p12) target = $region8
  $region5: #{mossformer2_ss_forward.5} parent=0 // loop_body
    %s16 = ssub.s32 %s11, 1
    %s17 = ssub.s32 %s11, 2
    %s18 = sadd.s32 %s11, 1
    %s19 = ssub.s32 %s11, %s18
    %p20 = scmp.eq.s32.totalorder %s19, 0
    %s22 = sadd.s32 %s21, 1
    %s23 = scalar_select %p20, %s21, %s22
    %p26 = pneg %p20
    %p27 = scmp.eq.s32.totalorder %s11, 1
    %p28 = por %p26, %p27
    %p29 = scmp.ne.s32.totalorder %s21, %s24
    %p30 = scmp.eq.s32.totalorder %s11, 0
    %p31 = por %p29, %p30
    %p32 = scmp.ne.s32.totalorder %s21, %s24
    %p33 = scmp.eq.s32.totalorder %s16, 1
    %p34 = por %p32, %p33
    %p35 = scmp.ne.s32.totalorder %s24, %s25
    %p36 = scmp.eq.s32.totalorder %s16, 0
    %p37 = por %p35, %p36
    %p38 = scmp.ne.s32.totalorder %s24, %s25
    %p39 = scmp.eq.s32.totalorder %s17, 1
    %p40 = por %p38, %p39
    %p42 = scmp.ne.s32.totalorder %s25, %s41
    %p43 = scmp.eq.s32.totalorder %s17, 0
    %p44 = por %p42, %p43
    %s45 = ssub.s32 %s11, %s18
    %p46 = scmp.eq.s32.totalorder %s45, 0
    %s48 = sadd.s32 %s47, 1
    %s49 = scalar_select %p46, %s47, %s48
    %p52 = pneg %p46
    %p53 = scmp.eq.s32.totalorder %s11, 1
    %p54 = por %p52, %p53
    %p55 = scmp.ne.s32.totalorder %s47, %s50
    %p56 = scmp.eq.s32.totalorder %s11, 0
    %p57 = por %p55, %p56
    %p58 = scmp.ne.s32.totalorder %s47, %s50
    %p59 = scmp.eq.s32.totalorder %s16, 1
    %p60 = por %p58, %p59
    %p61 = scmp.ne.s32.totalorder %s50, %s51
    %p62 = scmp.eq.s32.totalorder %s16, 0
    %p63 = por %p61, %p62
    %p64 = scmp.ne.s32.totalorder %s50, %s51
    %p65 = scmp.eq.s32.totalorder %s17, 1
    %p66 = por %p64, %p65
    %p68 = scmp.ne.s32.totalorder %s51, %s67
    %p69 = scmp.eq.s32.totalorder %s17, 0
    %p70 = por %p68, %p69
    %s72 = sadd.s32 %s71, 1
    %p75 = scmp.eq.s32.totalorder %s11, 1
    %p76 = scmp.ne.s32.totalorder %s71, %s73
    %p77 = scmp.eq.s32.totalorder %s11, 0
    %p78 = por %p76, %p77
    %p79 = scmp.ne.s32.totalorder %s71, %s73
    %p80 = scmp.eq.s32.totalorder %s16, 1
    %p81 = por %p79, %p80
    %p82 = scmp.ne.s32.totalorder %s73, %s74
    %p83 = scmp.eq.s32.totalorder %s16, 0
    %p84 = por %p82, %p83
    %p85 = scmp.ne.s32.totalorder %s73, %s74
    %p86 = scmp.eq.s32.totalorder %s17, 1
    %p87 = por %p85, %p86
    %p89 = scmp.ne.s32.totalorder %s74, %s88
    %p90 = scmp.eq.s32.totalorder %s17, 0
    %p91 = por %p89, %p90
    %s93 = sadd.s32 %s92, 1
    %p96 = scmp.eq.s32.totalorder %s11, 1
    %p97 = scmp.ne.s32.totalorder %s92, %s94
    %p98 = scmp.eq.s32.totalorder %s11, 0
    %p99 = por %p97, %p98
    %p100 = scmp.ne.s32.totalorder %s92, %s94
    %p101 = scmp.eq.s32.totalorder %s16, 1
    %p102 = por %p100, %p101
    %p103 = scmp.ne.s32.totalorder %s94, %s95
    %p104 = scmp.eq.s32.totalorder %s16, 0
    %p105 = por %p103, %p104
    %p106 = scmp.ne.s32.totalorder %s94, %s95
    %p107 = scmp.eq.s32.totalorder %s17, 1
    %p108 = por %p106, %p107
    %p110 = scmp.ne.s32.totalorder %s95, %s109
    %p111 = scmp.eq.s32.totalorder %s17, 0
    %p112 = por %p110, %p111
    %s114 = sadd.s32 %s113, 1
    %p117 = scmp.eq.s32.totalorder %s11, 1
    %p118 = scmp.ne.s32.totalorder %s113, %s115
    %p119 = scmp.eq.s32.totalorder %s11, 0
    %p120 = por %p118, %p119
    %p121 = scmp.ne.s32.totalorder %s113, %s115
    %p122 = scmp.eq.s32.totalorder %s16, 1
    %p123 = por %p121, %p122
    %p124 = scmp.ne.s32.totalorder %s115, %s116
    %p125 = scmp.eq.s32.totalorder %s16, 0
    %p126 = por %p124, %p125
    %p127 = scmp.ne.s32.totalorder %s115, %s116
    %p128 = scmp.eq.s32.totalorder %s17, 1
    %p129 = por %p127, %p128
    %p131 = scmp.ne.s32.totalorder %s116, %s130
    %p132 = scmp.eq.s32.totalorder %s17, 0
    %p133 = por %p131, %p132
    %s134 = ssub.s32 %s11, %s18
    %p135 = scmp.eq.s32.totalorder %s134, 0
    %s137 = sadd.s32 %s136, 1
    %s138 = scalar_select %p135, %s136, %s137
    %p141 = pneg %p135
    %p142 = scmp.eq.s32.totalorder %s11, 1
    %p143 = por %p141, %p142
    %p144 = scmp.ne.s32.totalorder %s136, %s139
    %p145 = scmp.eq.s32.totalorder %s11, 0
    %p146 = por %p144, %p145
    %p147 = scmp.ne.s32.totalorder %s136, %s139
    %p148 = scmp.eq.s32.totalorder %s16, 1
    %p149 = por %p147, %p148
    %p150 = scmp.ne.s32.totalorder %s139, %s140
    %p151 = scmp.eq.s32.totalorder %s16, 0
    %p152 = por %p150, %p151
    %p153 = scmp.ne.s32.totalorder %s139, %s140
    %p154 = scmp.eq.s32.totalorder %s17, 1
    %p155 = por %p153, %p154
    %p157 = scmp.ne.s32.totalorder %s140, %s156
    %p158 = scmp.eq.s32.totalorder %s17, 0
    %p159 = por %p157, %p158
    %p160 = scmp.le.s32.totalorder 1, %s11
    %p161 = scmp.lt.s32.totalorder %s11, 3
    %p162 = pnand %p160, %p161
    %p163 = pneg %p162
    // Predicated region
    $region9: #{mossformer2_ss_forward.5} parent=5 // pred_check
      _
    $region10: #{mossformer2_ss_forward.5} parent=5 // pred_check_branch
      %165 = sbr.rel (%p162) target = $region12
    $region11: #{mossformer2_ss_forward.5} parent=5 // pred_region
      %s166 = ssub.s32 %s11, 1
      // Predicated region
      $region13: #{mossformer2_ss_forward.5} parent=11 // pred_check
        %p167 = pneg %p84
      $region14: #{mossformer2_ss_forward.5} parent=11 // pred_check_branch
        %169 = sbr.rel (%p167) target = $region16
      $region15: #{mossformer2_ss_forward.5} parent=11 // pred_region
        _
      $region16: #{mossformer2_ss_forward.5} parent=11 // pred_fallthru
        _
      // Predicated region
      $region17: #{mossformer2_ss_forward.5} parent=11 // pred_check
        %p170 = pneg %p105
      $region18: #{mossformer2_ss_forward.5} parent=11 // pred_check_branch
        %172 = sbr.rel (%p170) target = $region20
      $region19: #{mossformer2_ss_forward.5} parent=11 // pred_region
        _
      $region20: #{mossformer2_ss_forward.5} parent=11 // pred_fallthru
        _
      // Predicated region
      $region21: #{mossformer2_ss_forward.5} parent=11 // pred_check
        %p173 = pneg %p126
      $region22: #{mossformer2_ss_forward.5} parent=11 // pred_check_branch
        %175 = sbr.rel (%p173) target = $region24
      $region23: #{mossformer2_ss_forward.5} parent=11 // pred_region
        _
      $region24: #{mossformer2_ss_forward.5} parent=11 // pred_fallthru
        _
    $region12: #{mossformer2_ss_forward.5} parent=5 // pred_fallthru
      _
    %p176 = scmp.lt.s32.totalorder %s11, 2
    // Predicated region
    $region25: #{mossformer2_ss_forward.5} parent=5 // pred_check
      %p177 = pneg %p176
    $region26: #{mossformer2_ss_forward.5} parent=5 // pred_check_branch
      %179 = sbr.rel (%p177) target = $region28
    $region27: #{mossformer2_ss_forward.5} parent=5 // pred_region
      // Predicated region
      $region29: #{mossformer2_ss_forward.5} parent=27 // pred_check
        %p180 = pneg %p31
      $region30: #{mossformer2_ss_forward.5} parent=27 // pred_check_branch
        %182 = sbr.rel (%p180) target = $region32
      $region31: #{mossformer2_ss_forward.5} parent=27 // pred_region
        %s183 = smul.u32 16, %s11
        %p184 = scmp.lt.s32.totalorder %s183, 31
        %s185 = scalar_select %p184, %s183, 31
        %s186 = smul.addr %s185, 4
        %s187 = scalar_lea.vmem %s0, %s186
        %s188 = smul.u32 16, %s11
      $region32: #{mossformer2_ss_forward.5} parent=27 // pred_fallthru
        _
      // Predicated region
      $region33: #{mossformer2_ss_forward.5} parent=27 // pred_check
        %p189 = pneg %p57
      $region34: #{mossformer2_ss_forward.5} parent=27 // pred_check_branch
        %191 = sbr.rel (%p189) target = $region36
      $region35: #{mossformer2_ss_forward.5} parent=27 // pred_region
        %s192 = smul.u32 16, %s11
        %p193 = scmp.lt.s32.totalorder %s192, 31
        %s194 = scalar_select %p193, %s192, 31
        %s195 = smul.addr %s194, 4
        %s196 = scalar_lea.vmem %s1, %s195
        %s197 = smul.u32 16, %s11
      $region36: #{mossformer2_ss_forward.5} parent=27 // pred_fallthru
        _
    $region28: #{mossformer2_ss_forward.5} parent=5 // pred_fallthru
      _
    %p198 = scmp.le.s32.totalorder 1, %s11
    %p199 = scmp.lt.s32.totalorder %s11, 3
    %p200 = pnand %p198, %p199
    %p201 = pneg %p200
    // Predicated region
    $region37: #{mossformer2_ss_forward.5} parent=5 // pred_check
      _
    $region38: #{mossformer2_ss_forward.5} parent=5 // pred_check_branch
      %203 = sbr.rel (%p200) target = $region40
    $region39: #{mossformer2_ss_forward.5} parent=5 // pred_region
      %s204 = ssub.s32 %s11, 1
      %s205 = smul.u32 16, %s16
      %p206 = scmp.lt.s32.totalorder %s205, 31
      %s207 = scalar_select %p206, %s205, 31
      %s208 = smul.addr %s207, 4
      %s209 = scalar_lea.vmem %s0, %s208
      %p210 = pneg %p37
      %p211 = pneg %p34
      %s212 = smul.u32 16, %s16
      %p213 = scmp.lt.s32.totalorder %s212, 31
      %s214 = scalar_select %p213, %s212, 31
      %s215 = smul.addr %s214, 4
      %s216 = scalar_lea.vmem %s1, %s215
      %p217 = pneg %p63
      %p218 = pneg %p60
      %p219 = pneg %p84
      %p220 = pneg %p81
      %p221 = pneg %p105
      %p222 = pneg %p102
      %p223 = pneg %p126
      %p224 = pneg %p123
      %p225 = pneg %p152
      %p226 = pneg %p149
      %s227 = smul.u32 16, %s16
      %p228 = scmp.lt.s32.totalorder %s227, 31
      %s229 = scalar_select %p228, %s227, 31
      %s230 = smul.addr %s229, 8
      %s231 = scalar_lea.vmem %s5, %s230
      %s232 = smul.u32 16, %s16
      %p233 = scmp.lt.s32.totalorder %s232, 31
      %s234 = scalar_select %p233, %s232, 31
      %s235 = smul.addr %s234, 4
      %s236 = scalar_lea.vmem %s0, %s235
      %s237 = smul.u32 16, %s16
      %s238 = smul.u32 16, %s16
      %p239 = scmp.lt.s32.totalorder %s238, 31
      %s240 = scalar_select %p239, %s238, 31
      %s241 = smul.addr %s240, 4
      %s242 = scalar_lea.vmem %s1, %s241
      %s243 = smul.u32 16, %s16
      %s244 = smul.u32 16, %s16
      %p245 = scmp.lt.s32.totalorder %s244, 31
      %s246 = scalar_select %p245, %s244, 31
      %s247 = smul.addr %s246, 8
      %s248 = scalar_lea.vmem %s5, %s247
      %s249 = smul.u32 16, %s16
      %v251 = vld [vmem:[%s236] sm:$0xf]
      %v252 = vld [vmem:[%s236 + $0x4] sm:$0xf]
      %v253 = vld [vmem:[%s236 + $0x8] sm:$0xf]
      %v254 = vld [vmem:[%s236 + $0xc] sm:$0xf]
      %v255 = vld [vmem:[%s236 + $0x10] sm:$0xf]
      %v256 = vld [vmem:[%s236 + $0x14] sm:$0xf]
      %v257 = vld [vmem:[%s236 + $0x18] sm:$0xf]
      %v258 = vld [vmem:[%s236 + $0x1c] sm:$0xf]
      %v259 = vld [vmem:[%s236 + $0x20] sm:$0xf]
      %v260 = vld [vmem:[%s236 + $0x24] sm:$0xf]
      %v261 = vld [vmem:[%s236 + $0x28] sm:$0xf]
      %v262 = vld [vmem:[%s236 + $0x2c] sm:$0xf]
      %v263 = vld [vmem:[%s236 + $0x30] sm:$0xf]
      %v264 = vld [vmem:[%s236 + $0x34] sm:$0xf]
      %v265 = vld [vmem:[%s236 + $0x38] sm:$0xf]
      %v266 = vld [vmem:[%s236 + $0x3c] sm:$0xf]
      %v267 = vld [vmem:[%s2] sm:$0xff]
      %v268 = vld [vmem:[%s2 + $0x8] sm:$0xff]
      %v269 = vld [vmem:[%s2 + $0x10] sm:$0xff]
      %v270 = vld [vmem:[%s2 + $0x18] sm:$0xff]
      %v271 = vld [vmem:[%s2 + $0x20] sm:$0xff]
      %v272 = vld [vmem:[%s2 + $0x28] sm:$0xff]
      %v273 = vld [vmem:[%s2 + $0x30] sm:$0xff]
      %v274 = vld [vmem:[%s2 + $0x38] sm:$0xff]
      %v275 = vld [vmem:[%s2 + $0x40] sm:$0xff]
      %v276 = vld [vmem:[%s2 + $0x48] sm:$0xff]
      %v277 = vld [vmem:[%s2 + $0x50] sm:$0xff]
      %v278 = vld [vmem:[%s2 + $0x58] sm:$0xff]
      %v279 = vld [vmem:[%s2 + $0x60] sm:$0xff]
      %v280 = vld [vmem:[%s2 + $0x68] sm:$0xff]
      %v281 = vld [vmem:[%s2 + $0x70] sm:$0xff]
      %v282 = vld [vmem:[%s2 + $0x78] sm:$0xff]
      %v299 = vunpack.c.l.b16 %v251
      %v300 = vunpack.c.l.b16 %v252
      %v301 = vunpack.c.l.b16 %v253
      %v302 = vunpack.c.l.b16 %v254
      %v303 = vunpack.c.l.b16 %v255
      %v304 = vunpack.c.l.b16 %v256
      %v305 = vunpack.c.l.b16 %v257
      %v306 = vunpack.c.l.b16 %v258
      %v307 = vunpack.c.l.b16 %v259
      %v308 = vunpack.c.l.b16 %v260
      %v309 = vunpack.c.l.b16 %v261
      %v310 = vunpack.c.l.b16 %v262
      %v311 = vunpack.c.l.b16 %v263
      %v312 = vunpack.c.l.b16 %v264
      %v313 = vunpack.c.l.b16 %v265
      %v314 = vunpack.c.l.b16 %v266
      %v315 = vpack.c.b16 %v300, %v299
      %v316 = vpack.c.b16 %v302, %v301
      %v317 = vpack.c.b16 %v304, %v303
      %v318 = vpack.c.b16 %v306, %v305
      %v319 = vpack.c.b16 %v308, %v307
      %v320 = vpack.c.b16 %v310, %v309
      %v321 = vpack.c.b16 %v312, %v311
      %v322 = vpack.c.b16 %v314, %v313
      %v347 = vunpack.c.l.b16 %v267
      %v348 = vunpack.c.h.b16 %v267
      %v349 = vunpack.c.l.b16 %v268
      %v350 = vunpack.c.h.b16 %v268
      %v351 = vunpack.c.l.b16 %v269
      %v352 = vunpack.c.h.b16 %v269
      %v353 = vunpack.c.l.b16 %v270
      %v354 = vunpack.c.h.b16 %v270
      %v355 = vunpack.c.l.b16 %v271
      %v356 = vunpack.c.h.b16 %v271
      %v357 = vunpack.c.l.b16 %v272
      %v358 = vunpack.c.h.b16 %v272
      %v359 = vunpack.c.l.b16 %v273
      %v360 = vunpack.c.h.b16 %v273
      %v361 = vunpack.c.l.b16 %v274
      %v362 = vunpack.c.h.b16 %v274
      %v363 = vunpack.c.l.b16 %v275
      %v364 = vunpack.c.h.b16 %v275
      %v365 = vunpack.c.l.b16 %v276
      %v366 = vunpack.c.h.b16 %v276
      %v367 = vunpack.c.l.b16 %v277
      %v368 = vunpack.c.h.b16 %v277
      %v369 = vunpack.c.l.b16 %v278
      %v370 = vunpack.c.h.b16 %v278
      %v371 = vunpack.c.l.b16 %v279
      %v372 = vunpack.c.h.b16 %v279
      %v373 = vunpack.c.l.b16 %v280
      %v374 = vunpack.c.h.b16 %v280
      %v375 = vunpack.c.l.b16 %v281
      %v376 = vunpack.c.h.b16 %v281
      %v377 = vunpack.c.l.b16 %v282
      %v378 = vunpack.c.h.b16 %v282
      %v379 = vpack.c.b16 %v349, %v347
      %v380 = vpack.c.b16 %v350, %v348
      %v381 = vpack.c.b16 %v353, %v351
      %v382 = vpack.c.b16 %v354, %v352
      %v383 = vpack.c.b16 %v357, %v355
      %v384 = vpack.c.b16 %v358, %v356
      %v385 = vpack.c.b16 %v361, %v359
      %v386 = vpack.c.b16 %v362, %v360
      %v387 = vpack.c.b16 %v365, %v363
      %v388 = vpack.c.b16 %v366, %v364
      %v389 = vpack.c.b16 %v369, %v367
      %v390 = vpack.c.b16 %v370, %v368
      %v391 = vpack.c.b16 %v373, %v371
      %v392 = vpack.c.b16 %v374, %v372
      %v393 = vpack.c.b16 %v377, %v375
      %v394 = vpack.c.b16 %v378, %v376
      %411 = vmatprep.subr.bf16.mxu0 %v394
      %412 = vmatpush1.bf16.msra.mxu0 %v393
      %413 = vmatprep.subr.bf16.mxu0 %v392
      %414 = vmatpush1.bf16.msra.mxu0 %v391
      %415 = vmatprep.subr.bf16.mxu0 %v390
      %416 = vmatpush1.bf16.msra.mxu0 %v389
      %417 = vmatprep.subr.bf16.mxu0 %v388
      %418 = vmatpush1.bf16.msra.mxu0 %v387
      %419 = vmatprep.subr.bf16.mxu0 %v386
      %420 = vmatpush1.bf16.msra.mxu0 %v385
      %421 = vmatprep.subr.bf16.mxu0 %v384
      %422 = vmatpush1.bf16.msra.mxu0 %v383
      %423 = vmatprep.subr.bf16.mxu0 %v382
      %424 = vmatpush1.bf16.msra.mxu0 %v381
      %425 = vmatprep.subr.bf16.mxu0 %v380
      %426 = vmatpush1.bf16.msra.mxu0 %v379
      %427 = vmatprep.subr.bf16.mxu0 0
      %428 = vmatpush2.bf16.msra.mxu0 0
      %429 = vmatprep.subr.bf16.mxu0 0
      %430 = vmatpush2.bf16.msra.mxu0 0
      %431 = vmatprep.subr.bf16.mxu0 0
      %432 = vmatpush2.bf16.msra.mxu0 0
      %433 = vmatprep.subr.bf16.mxu0 0
      %434 = vmatpush2.bf16.msra.mxu0 0
      %435 = vmatprep.subr.bf16.mxu0 0
      %436 = vmatpush2.bf16.msra.mxu0 0
      %437 = vmatprep.subr.bf16.mxu0 0
      %438 = vmatpush2.bf16.msra.mxu0 0
      %439 = vmatprep.subr.bf16.mxu0 0
      %440 = vmatpush2.bf16.msra.mxu0 0
      %441 = vmatprep.subr.bf16.mxu0 0
      %442 = vmatpush2.bf16.msra.mxu0 0
      %443 = vmatprep.mubr.bf16.mxu0 0
      %444 = vmatmul.mubr.bf16.gmra.mxu0 %v315
      %v445 = vpop.f32.mrf.mxu0
      %v446 = vadd.f32 0.0, %v445
      %v447 = vpop.f32.mrf.mxu0
      %v448 = vadd.f32 0.0, %v447
      %v449 = vpop.f32.mrf.mxu0
      %v450 = vadd.f32 0.0, %v449
      %v451 = vpop.f32.mrf.mxu0
      %v452 = vadd.f32 0.0, %v451
      %453 = vmatprep.mubr.bf16.mxu0 0
      %454 = vmatmul.mubr.bf16.gmra.mxu0 %v316
      %v455 = vpop.f32.mrf.mxu0
      %v456 = vadd.f32 0.0, %v455
      %v457 = vpop.f32.mrf.mxu0
      %v458 = vadd.f32 0.0, %v457
      %v459 = vpop.f32.mrf.mxu0
      %v460 = vadd.f32 0.0, %v459
      %v461 = vpop.f32.mrf.mxu0
      %v462 = vadd.f32 0.0, %v461
      %463 = vmatprep.mubr.bf16.mxu0 0
      %464 = vmatmul.mubr.bf16.gmra.mxu0 %v317
      %v465 = vpop.f32.mrf.mxu0
      %v466 = vadd.f32 0.0, %v465
      %v467 = vpop.f32.mrf.mxu0
      %v468 = vadd.f32 0.0, %v467
      %v469 = vpop.f32.mrf.mxu0
      %v470 = vadd.f32 0.0, %v469
      %v471 = vpop.f32.mrf.mxu0
      %v472 = vadd.f32 0.0, %v471
      %473 = vmatprep.mubr.bf16.mxu0 0
      %474 = vmatmul.mubr.bf16.gmra.mxu0 %v318
      %v475 = vpop.f32.mrf.mxu0
      %v476 = vadd.f32 0.0, %v475
      %v477 = vpop.f32.mrf.mxu0
      %v478 = vadd.f32 0.0, %v477
      %v479 = vpop.f32.mrf.mxu0
      %v480 = vadd.f32 0.0, %v479
      %v481 = vpop.f32.mrf.mxu0
      %v482 = vadd.f32 0.0, %v481
      %483 = vmatprep.mubr.bf16.mxu0 0
      %484 = vmatmul.mubr.bf16.gmra.mxu0 %v319
      %v485 = vpop.f32.mrf.mxu0
      %v486 = vadd.f32 0.0, %v485
      %v487 = vpop.f32.mrf.mxu0
      %v488 = vadd.f32 0.0, %v487
      %v489 = vpop.f32.mrf.mxu0
      %v490 = vadd.f32 0.0, %v489
      %v491 = vpop.f32.mrf.mxu0
      %v492 = vadd.f32 0.0, %v491
      %493 = vmatprep.mubr.bf16.mxu0 0
      %494 = vmatmul.mubr.bf16.gmra.mxu0 %v320
      %v495 = vpop.f32.mrf.mxu0
      %v496 = vadd.f32 0.0, %v495
      %v497 = vpop.f32.mrf.mxu0
      %v498 = vadd.f32 0.0, %v497
      %v499 = vpop.f32.mrf.mxu0
      %v500 = vadd.f32 0.0, %v499
      %v501 = vpop.f32.mrf.mxu0
      %v502 = vadd.f32 0.0, %v501
      %503 = vmatprep.mubr.bf16.mxu0 0
      %504 = vmatmul.mubr.bf16.gmra.mxu0 %v321
      %v505 = vpop.f32.mrf.mxu0
      %v506 = vadd.f32 0.0, %v505
      %v507 = vpop.f32.mrf.mxu0
      %v508 = vadd.f32 0.0, %v507
      %v509 = vpop.f32.mrf.mxu0
      %v510 = vadd.f32 0.0, %v509
      %v511 = vpop.f32.mrf.mxu0
      %v512 = vadd.f32 0.0, %v511
      %513 = vmatprep.mubr.bf16.mxu0 0
      %514 = vmatmul.mubr.bf16.gmra.mxu0 %v322
      %v515 = vpop.f32.mrf.mxu0
      %v516 = vadd.f32 0.0, %v515
      %v517 = vpop.f32.mrf.mxu0
      %v518 = vadd.f32 0.0, %v517
      %v519 = vpop.f32.mrf.mxu0
      %v520 = vadd.f32 0.0, %v519
      %v521 = vpop.f32.mrf.mxu0
      %v522 = vadd.f32 0.0, %v521
      %523 = vdwg.mxu0
      %v524 = vtanh.pop %v446
      %v525 = vtanh.pop %v448
      %v526 = vtanh.pop %v450
      %v527 = vtanh.pop %v452
      %v528 = vtanh.pop %v456
      %v529 = vtanh.pop %v458
      %v530 = vtanh.pop %v460
      %v531 = vtanh.pop %v462
      %v532 = vtanh.pop %v466
      %v533 = vtanh.pop %v468
      %v534 = vtanh.pop %v470
      %v535 = vtanh.pop %v472
      %v536 = vtanh.pop %v476
      %v537 = vtanh.pop %v478
      %v538 = vtanh.pop %v480
      %v539 = vtanh.pop %v482
      %v540 = vtanh.pop %v486
      %v541 = vtanh.pop %v488
      %v542 = vtanh.pop %v490
      %v543 = vtanh.pop %v492
      %v544 = vtanh.pop %v496
      %v545 = vtanh.pop %v498
      %v546 = vtanh.pop %v500
      %v547 = vtanh.pop %v502
      %v548 = vtanh.pop %v506
      %v549 = vtanh.pop %v508
      %v550 = vtanh.pop %v510
      %v551 = vtanh.pop %v512
      %v552 = vtanh.pop %v516
      %v553 = vtanh.pop %v518
      %v554 = vtanh.pop %v520
      %v555 = vtanh.pop %v522
      %v556 = vld [vmem:[%s3] sm:$0xff]
      %v557 = vld [vmem:[%s3 + $0x8] sm:$0xff]
      %v558 = vld [vmem:[%s3 + $0x10] sm:$0xff]
      %v559 = vld [vmem:[%s3 + $0x18] sm:$0xff]
      %v560 = vld [vmem:[%s3 + $0x20] sm:$0xff]
      %v561 = vld [vmem:[%s3 + $0x28] sm:$0xff]
      %v562 = vld [vmem:[%s3 + $0x30] sm:$0xff]
      %v563 = vld [vmem:[%s3 + $0x38] sm:$0xff]
      %v564 = vld [vmem:[%s3 + $0x40] sm:$0xff]
      %v565 = vld [vmem:[%s3 + $0x48] sm:$0xff]
      %v566 = vld [vmem:[%s3 + $0x50] sm:$0xff]
      %v567 = vld [vmem:[%s3 + $0x58] sm:$0xff]
      %v568 = vld [vmem:[%s3 + $0x60] sm:$0xff]
      %v569 = vld [vmem:[%s3 + $0x68] sm:$0xff]
      %v570 = vld [vmem:[%s3 + $0x70] sm:$0xff]
      %v571 = vld [vmem:[%s3 + $0x78] sm:$0xff]
      %v588 = vunpack.c.l.b16 %v556
      %v589 = vunpack.c.h.b16 %v556
      %v590 = vunpack.c.l.b16 %v557
      %v591 = vunpack.c.h.b16 %v557
      %v592 = vunpack.c.l.b16 %v558
      %v593 = vunpack.c.h.b16 %v558
      %v594 = vunpack.c.l.b16 %v559
      %v595 = vunpack.c.h.b16 %v559
      %v596 = vunpack.c.l.b16 %v560
      %v597 = vunpack.c.h.b16 %v560
      %v598 = vunpack.c.l.b16 %v561
      %v599 = vunpack.c.h.b16 %v561
      %v600 = vunpack.c.l.b16 %v562
      %v601 = vunpack.c.h.b16 %v562
      %v602 = vunpack.c.l.b16 %v563
      %v603 = vunpack.c.h.b16 %v563
      %v604 = vunpack.c.l.b16 %v564
      %v605 = vunpack.c.h.b16 %v564
      %v606 = vunpack.c.l.b16 %v565
      %v607 = vunpack.c.h.b16 %v565
      %v608 = vunpack.c.l.b16 %v566
      %v609 = vunpack.c.h.b16 %v566
      %v610 = vunpack.c.l.b16 %v567
      %v611 = vunpack.c.h.b16 %v567
      %v612 = vunpack.c.l.b16 %v568
      %v613 = vunpack.c.h.b16 %v568
      %v614 = vunpack.c.l.b16 %v569
      %v615 = vunpack.c.h.b16 %v569
      %v616 = vunpack.c.l.b16 %v570
      %v617 = vunpack.c.h.b16 %v570
      %v618 = vunpack.c.l.b16 %v571
      %v619 = vunpack.c.h.b16 %v571
      %v620 = vpack.c.b16 %v590, %v588
      %v621 = vpack.c.b16 %v591, %v589
      %v622 = vpack.c.b16 %v594, %v592
      %v623 = vpack.c.b16 %v595, %v593
      %v624 = vpack.c.b16 %v598, %v596
      %v625 = vpack.c.b16 %v599, %v597
      %v626 = vpack.c.b16 %v602, %v600
      %v627 = vpack.c.b16 %v603, %v601
      %v628 = vpack.c.b16 %v606, %v604
      %v629 = vpack.c.b16 %v607, %v605
      %v630 = vpack.c.b16 %v610, %v608
      %v631 = vpack.c.b16 %v611, %v609
      %v632 = vpack.c.b16 %v614, %v612
      %v633 = vpack.c.b16 %v615, %v613
      %v634 = vpack.c.b16 %v618, %v616
      %v635 = vpack.c.b16 %v619, %v617
      %652 = vmatprep.subr.bf16.mxu0 %v635
      %653 = vmatpush1.bf16.msra.mxu0 %v634
      %654 = vmatprep.subr.bf16.mxu0 %v633
      %655 = vmatpush1.bf16.msra.mxu0 %v632
      %656 = vmatprep.subr.bf16.mxu0 %v631
      %657 = vmatpush1.bf16.msra.mxu0 %v630
      %658 = vmatprep.subr.bf16.mxu0 %v629
      %659 = vmatpush1.bf16.msra.mxu0 %v628
      %660 = vmatprep.subr.bf16.mxu0 %v627
      %661 = vmatpush1.bf16.msra.mxu0 %v626
      %662 = vmatprep.subr.bf16.mxu0 %v625
      %663 = vmatpush1.bf16.msra.mxu0 %v624
      %664 = vmatprep.subr.bf16.mxu0 %v623
      %665 = vmatpush1.bf16.msra.mxu0 %v622
      %666 = vmatprep.subr.bf16.mxu0 %v621
      %667 = vmatpush1.bf16.msra.mxu0 %v620
      %668 = vmatprep.subr.bf16.mxu0 0
      %669 = vmatpush2.bf16.msra.mxu0 0
      %670 = vmatprep.subr.bf16.mxu0 0
      %671 = vmatpush2.bf16.msra.mxu0 0
      %672 = vmatprep.subr.bf16.mxu0 0
      %673 = vmatpush2.bf16.msra.mxu0 0
      %674 = vmatprep.subr.bf16.mxu0 0
      %675 = vmatpush2.bf16.msra.mxu0 0
      %676 = vmatprep.subr.bf16.mxu0 0
      %677 = vmatpush2.bf16.msra.mxu0 0
      %678 = vmatprep.subr.bf16.mxu0 0
      %679 = vmatpush2.bf16.msra.mxu0 0
      %680 = vmatprep.subr.bf16.mxu0 0
      %681 = vmatpush2.bf16.msra.mxu0 0
      %682 = vmatprep.subr.bf16.mxu0 0
      %683 = vmatpush2.bf16.msra.mxu0 0
      %684 = vmatprep.mubr.bf16.mxu0 0
      %685 = vmatmul.mubr.bf16.gmra.mxu0 %v315
      %v686 = vpop.f32.mrf.mxu0
      %v687 = vadd.f32 0.0, %v686
      %v688 = vpop.f32.mrf.mxu0
      %v689 = vadd.f32 0.0, %v688
      %v690 = vpop.f32.mrf.mxu0
      %v691 = vadd.f32 0.0, %v690
      %v692 = vpop.f32.mrf.mxu0
      %v693 = vadd.f32 0.0, %v692
      %694 = vmatprep.mubr.bf16.mxu0 0
      %695 = vmatmul.mubr.bf16.gmra.mxu0 %v316
      %v696 = vpop.f32.mrf.mxu0
      %v697 = vadd.f32 0.0, %v696
      %v698 = vpop.f32.mrf.mxu0
      %v699 = vadd.f32 0.0, %v698
      %v700 = vpop.f32.mrf.mxu0
      %v701 = vadd.f32 0.0, %v700
      %v702 = vpop.f32.mrf.mxu0
      %v703 = vadd.f32 0.0, %v702
      %704 = vmatprep.mubr.bf16.mxu0 0
      %705 = vmatmul.mubr.bf16.gmra.mxu0 %v317
      %v706 = vpop.f32.mrf.mxu0
      %v707 = vadd.f32 0.0, %v706
      %v708 = vpop.f32.mrf.mxu0
      %v709 = vadd.f32 0.0, %v708
      %v710 = vpop.f32.mrf.mxu0
      %v711 = vadd.f32 0.0, %v710
      %v712 = vpop.f32.mrf.mxu0
      %v713 = vadd.f32 0.0, %v712
      %714 = vmatprep.mubr.bf16.mxu0 0
      %715 = vmatmul.mubr.bf16.gmra.mxu0 %v318
      %v716 = vpop.f32.mrf.mxu0
      %v717 = vadd.f32 0.0, %v716
      %v718 = vpop.f32.mrf.mxu0
      %v719 = vadd.f32 0.0, %v718
      %v720 = vpop.f32.mrf.mxu0
      %v721 = vadd.f32 0.0, %v720
      %v722 = vpop.f32.mrf.mxu0
      %v723 = vadd.f32 0.0, %v722
      %724 = vmatprep.mubr.bf16.mxu0 0
      %725 = vmatmul.mubr.bf16.gmra.mxu0 %v319
      %v726 = vpop.f32.mrf.mxu0
      %v727 = vadd.f32 0.0, %v726
      %v728 = vpop.f32.mrf.mxu0
      %v729 = vadd.f32 0.0, %v728
      %v730 = vpop.f32.mrf.mxu0
      %v731 = vadd.f32 0.0, %v730
      %v732 = vpop.f32.mrf.mxu0
      %v733 = vadd.f32 0.0, %v732
      %734 = vmatprep.mubr.bf16.mxu0 0
      %735 = vmatmul.mubr.bf16.gmra.mxu0 %v320
      %v736 = vpop.f32.mrf.mxu0
      %v737 = vadd.f32 0.0, %v736
      %v738 = vpop.f32.mrf.mxu0
      %v739 = vadd.f32 0.0, %v738
      %v740 = vpop.f32.mrf.mxu0
      %v741 = vadd.f32 0.0, %v740
      %v742 = vpop.f32.mrf.mxu0
      %v743 = vadd.f32 0.0, %v742
      %744 = vmatprep.mubr.bf16.mxu0 0
      %745 = vmatmul.mubr.bf16.gmra.mxu0 %v321
      %v746 = vpop.f32.mrf.mxu0
      %v747 = vadd.f32 0.0, %v746
      %v748 = vpop.f32.mrf.mxu0
      %v749 = vadd.f32 0.0, %v748
      %v750 = vpop.f32.mrf.mxu0
      %v751 = vadd.f32 0.0, %v750
      %v752 = vpop.f32.mrf.mxu0
      %v753 = vadd.f32 0.0, %v752
      %754 = vmatprep.mubr.bf16.mxu0 0
      %755 = vmatmul.mubr.bf16.gmra.mxu0 %v322
      %v756 = vpop.f32.mrf.mxu0
      %v757 = vadd.f32 0.0, %v756
      %v758 = vpop.f32.mrf.mxu0
      %v759 = vadd.f32 0.0, %v758
      %v760 = vpop.f32.mrf.mxu0
      %v761 = vadd.f32 0.0, %v760
      %v762 = vpop.f32.mrf.mxu0
      %v763 = vadd.f32 0.0, %v762
      %764 = vdwg.mxu0
      %v765 = vxor.u32 %v687, 2147483648
      %v766 = vxor.u32 %v689, 2147483648
      %v767 = vxor.u32 %v691, 2147483648
      %v768 = vxor.u32 %v693, 2147483648
      %v769 = vxor.u32 %v697, 2147483648
      %v770 = vxor.u32 %v699, 2147483648
      %v771 = vxor.u32 %v701, 2147483648
      %v772 = vxor.u32 %v703, 2147483648
      %v773 = vxor.u32 %v707, 2147483648
      %v774 = vxor.u32 %v709, 2147483648
      %v775 = vxor.u32 %v711, 2147483648
      %v776 = vxor.u32 %v713, 2147483648
      %v777 = vxor.u32 %v717, 2147483648
      %v778 = vxor.u32 %v719, 2147483648
      %v779 = vxor.u32 %v721, 2147483648
      %v780 = vxor.u32 %v723, 2147483648
      %v781 = vxor.u32 %v727, 2147483648
      %v782 = vxor.u32 %v729, 2147483648
      %v783 = vxor.u32 %v731, 2147483648
      %v784 = vxor.u32 %v733, 2147483648
      %v785 = vxor.u32 %v737, 2147483648
      %v786 = vxor.u32 %v739, 2147483648
      %v787 = vxor.u32 %v741, 2147483648
      %v788 = vxor.u32 %v743, 2147483648
      %v789 = vxor.u32 %v747, 2147483648
      %v790 = vxor.u32 %v749, 2147483648
      %v791 = vxor.u32 %v751, 2147483648
      %v792 = vxor.u32 %v753, 2147483648
      %v793 = vxor.u32 %v757, 2147483648
      %v794 = vxor.u32 %v759, 2147483648
      %v795 = vxor.u32 %v761, 2147483648
      %v796 = vxor.u32 %v763, 2147483648
      %v797 = vmul.f32 %v765, 1.442695
      %v798 = vpow.pop %v797
      %v799 = vmul.f32 %v766, 1.442695
      %v800 = vpow.pop %v799
      %v801 = vmul.f32 %v767, 1.442695
      %v802 = vpow.pop %v801
      %v803 = vmul.f32 %v768, 1.442695
      %v804 = vpow.pop %v803
      %v805 = vmul.f32 %v769, 1.442695
      %v806 = vpow.pop %v805
      %v807 = vmul.f32 %v770, 1.442695
      %v808 = vpow.pop %v807
      %v809 = vmul.f32 %v771, 1.442695
      %v810 = vpow.pop %v809
      %v811 = vmul.f32 %v772, 1.442695
      %v812 = vpow.pop %v811
      %v813 = vmul.f32 %v773, 1.442695
      %v814 = vpow.pop %v813
      %v815 = vmul.f32 %v774, 1.442695
      %v816 = vpow.pop %v815
      %v817 = vmul.f32 %v775, 1.442695
      %v818 = vpow.pop %v817
      %v819 = vmul.f32 %v776, 1.442695
      %v820 = vpow.pop %v819
      %v821 = vmul.f32 %v777, 1.442695
      %v822 = vpow.pop %v821
      %v823 = vmul.f32 %v778, 1.442695
      %v824 = vpow.pop %v823
      %v825 = vmul.f32 %v779, 1.442695
      %v826 = vpow.pop %v825
      %v827 = vmul.f32 %v780, 1.442695
      %v828 = vpow.pop %v827
      %v829 = vmul.f32 %v781, 1.442695
      %v830 = vpow.pop %v829
      %v831 = vmul.f32 %v782, 1.442695
      %v832 = vpow.pop %v831
      %v833 = vmul.f32 %v783, 1.442695
      %v834 = vpow.pop %v833
      %v835 = vmul.f32 %v784, 1.442695
      %v836 = vpow.pop %v835
      %v837 = vmul.f32 %v785, 1.442695
      %v838 = vpow.pop %v837
      %v839 = vmul.f32 %v786, 1.442695
      %v840 = vpow.pop %v839
      %v841 = vmul.f32 %v787, 1.442695
      %v842 = vpow.pop %v841
      %v843 = vmul.f32 %v788, 1.442695
      %v844 = vpow.pop %v843
      %v845 = vmul.f32 %v789, 1.442695
      %v846 = vpow.pop %v845
      %v847 = vmul.f32 %v790, 1.442695
      %v848 = vpow.pop %v847
      %v849 = vmul.f32 %v791, 1.442695
      %v850 = vpow.pop %v849
      %v851 = vmul.f32 %v792, 1.442695
      %v852 = vpow.pop %v851
      %v853 = vmul.f32 %v793, 1.442695
      %v854 = vpow.pop %v853
      %v855 = vmul.f32 %v794, 1.442695
      %v856 = vpow.pop %v855
      %v857 = vmul.f32 %v795, 1.442695
      %v858 = vpow.pop %v857
      %v859 = vmul.f32 %v796, 1.442695
      %v860 = vpow.pop %v859
      %v861 = vadd.f32 %v798, 1.0
      %v862 = vadd.f32 %v800, 1.0
      %v863 = vadd.f32 %v802, 1.0
      %v864 = vadd.f32 %v804, 1.0
      %v865 = vadd.f32 %v806, 1.0
      %v866 = vadd.f32 %v808, 1.0
      %v867 = vadd.f32 %v810, 1.0
      %v868 = vadd.f32 %v812, 1.0
      %v869 = vadd.f32 %v814, 1.0
      %v870 = vadd.f32 %v816, 1.0
      %v871 = vadd.f32 %v818, 1.0
      %v872 = vadd.f32 %v820, 1.0
      %v873 = vadd.f32 %v822, 1.0
      %v874 = vadd.f32 %v824, 1.0
      %v875 = vadd.f32 %v826, 1.0
      %v876 = vadd.f32 %v828, 1.0
      %v877 = vadd.f32 %v830, 1.0
      %v878 = vadd.f32 %v832, 1.0
      %v879 = vadd.f32 %v834, 1.0
      %v880 = vadd.f32 %v836, 1.0
      %v881 = vadd.f32 %v838, 1.0
      %v882 = vadd.f32 %v840, 1.0
      %v883 = vadd.f32 %v842, 1.0
      %v884 = vadd.f32 %v844, 1.0
      %v885 = vadd.f32 %v846, 1.0
      %v886 = vadd.f32 %v848, 1.0
      %v887 = vadd.f32 %v850, 1.0
      %v888 = vadd.f32 %v852, 1.0
      %v889 = vadd.f32 %v854, 1.0
      %v890 = vadd.f32 %v856, 1.0
      %v891 = vadd.f32 %v858, 1.0
      %v892 = vadd.f32 %v860, 1.0
      %v893 = vrcp.pop %v861
      %v894 = vmul.f32 1.0, %v893
      %v895 = vrcp.pop %v862
      %v896 = vmul.f32 1.0, %v895
      %v897 = vrcp.pop %v863
      %v898 = vmul.f32 1.0, %v897
      %v899 = vrcp.pop %v864
      %v900 = vmul.f32 1.0, %v899
      %v901 = vrcp.pop %v865
      %v902 = vmul.f32 1.0, %v901
      %v903 = vrcp.pop %v866
      %v904 = vmul.f32 1.0, %v903
      %v905 = vrcp.pop %v867
      %v906 = vmul.f32 1.0, %v905
      %v907 = vrcp.pop %v868
      %v908 = vmul.f32 1.0, %v907
      %v909 = vrcp.pop %v869
      %v910 = vmul.f32 1.0, %v909
      %v911 = vrcp.pop %v870
      %v912 = vmul.f32 1.0, %v911
      %v913 = vrcp.pop %v871
      %v914 = vmul.f32 1.0, %v913
      %v915 = vrcp.pop %v872
      %v916 = vmul.f32 1.0, %v915
      %v917 = vrcp.pop %v873
      %v918 = vmul.f32 1.0, %v917
      %v919 = vrcp.pop %v874
      %v920 = vmul.f32 1.0, %v919
      %v921 = vrcp.pop %v875
      %v922 = vmul.f32 1.0, %v921
      %v923 = vrcp.pop %v876
      %v924 = vmul.f32 1.0, %v923
      %v925 = vrcp.pop %v877
      %v926 = vmul.f32 1.0, %v925
      %v927 = vrcp.pop %v878
      %v928 = vmul.f32 1.0, %v927
      %v929 = vrcp.pop %v879
      %v930 = vmul.f32 1.0, %v929
      %v931 = vrcp.pop %v880
      %v932 = vmul.f32 1.0, %v931
      %v933 = vrcp.pop %v881
      %v934 = vmul.f32 1.0, %v933
      %v935 = vrcp.pop %v882
      %v936 = vmul.f32 1.0, %v935
      %v937 = vrcp.pop %v883
      %v938 = vmul.f32 1.0, %v937
      %v939 = vrcp.pop %v884
      %v940 = vmul.f32 1.0, %v939
      %v941 = vrcp.pop %v885
      %v942 = vmul.f32 1.0, %v941
      %v943 = vrcp.pop %v886
      %v944 = vmul.f32 1.0, %v943
      %v945 = vrcp.pop %v887
      %v946 = vmul.f32 1.0, %v945
      %v947 = vrcp.pop %v888
      %v948 = vmul.f32 1.0, %v947
      %v949 = vrcp.pop %v889
      %v950 = vmul.f32 1.0, %v949
      %v951 = vrcp.pop %v890
      %v952 = vmul.f32 1.0, %v951
      %v953 = vrcp.pop %v891
      %v954 = vmul.f32 1.0, %v953
      %v955 = vrcp.pop %v892
      %v956 = vmul.f32 1.0, %v955
      %v957 = vmul.f32 %v524, %v894
      %v958 = vmul.f32 %v525, %v896
      %v959 = vmul.f32 %v526, %v898
      %v960 = vmul.f32 %v527, %v900
      %v961 = vmul.f32 %v528, %v902
      %v962 = vmul.f32 %v529, %v904
      %v963 = vmul.f32 %v530, %v906
      %v964 = vmul.f32 %v531, %v908
      %v965 = vmul.f32 %v532, %v910
      %v966 = vmul.f32 %v533, %v912
      %v967 = vmul.f32 %v534, %v914
      %v968 = vmul.f32 %v535, %v916
      %v969 = vmul.f32 %v536, %v918
      %v970 = vmul.f32 %v537, %v920
      %v971 = vmul.f32 %v538, %v922
      %v972 = vmul.f32 %v539, %v924
      %v973 = vmul.f32 %v540, %v926
      %v974 = vmul.f32 %v541, %v928
      %v975 = vmul.f32 %v542, %v930
      %v976 = vmul.f32 %v543, %v932
      %v977 = vmul.f32 %v544, %v934
      %v978 = vmul.f32 %v545, %v936
      %v979 = vmul.f32 %v546, %v938
      %v980 = vmul.f32 %v547, %v940
      %v981 = vmul.f32 %v548, %v942
      %v982 = vmul.f32 %v549, %v944
      %v983 = vmul.f32 %v550, %v946
      %v984 = vmul.f32 %v551, %v948
      %v985 = vmul.f32 %v552, %v950
      %v986 = vmul.f32 %v553, %v952
      %v987 = vmul.f32 %v554, %v954
      %v988 = vmul.f32 %v555, %v956
      %v989 = vmax.f32 %v957, 0.0
      %v990 = vmax.f32 %v958, 0.0
      %v991 = vmax.f32 %v959, 0.0
      %v992 = vmax.f32 %v960, 0.0
      %v993 = vmax.f32 %v961, 0.0
      %v994 = vmax.f32 %v962, 0.0
      %v995 = vmax.f32 %v963, 0.0
      %v996 = vmax.f32 %v964, 0.0
      %v997 = vmax.f32 %v965, 0.0
      %v998 = vmax.f32 %v966, 0.0
      %v999 = vmax.f32 %v967, 0.0
      %v1000 = vmax.f32 %v968, 0.0
      %v1001 = vmax.f32 %v969, 0.0
      %v1002 = vmax.f32 %v970, 0.0
      %v1003 = vmax.f32 %v971, 0.0
      %v1004 = vmax.f32 %v972, 0.0
      %v1005 = vmax.f32 %v973, 0.0
      %v1006 = vmax.f32 %v974, 0.0
      %v1007 = vmax.f32 %v975, 0.0
      %v1008 = vmax.f32 %v976, 0.0
      %v1009 = vmax.f32 %v977, 0.0
      %v1010 = vmax.f32 %v978, 0.0
      %v1011 = vmax.f32 %v979, 0.0
      %v1012 = vmax.f32 %v980, 0.0
      %v1013 = vmax.f32 %v981, 0.0
      %v1014 = vmax.f32 %v982, 0.0
      %v1015 = vmax.f32 %v983, 0.0
      %v1016 = vmax.f32 %v984, 0.0
      %v1017 = vmax.f32 %v985, 0.0
      %v1018 = vmax.f32 %v986, 0.0
      %v1019 = vmax.f32 %v987, 0.0
      %v1020 = vmax.f32 %v988, 0.0
      %v1021 = vld [vmem:[%s242] sm:$0xf]
      %v1022 = vld [vmem:[%s242 + $0x4] sm:$0xf]
      %v1023 = vld [vmem:[%s242 + $0x8] sm:$0xf]
      %v1024 = vld [vmem:[%s242 + $0xc] sm:$0xf]
      %v1025 = vld [vmem:[%s242 + $0x10] sm:$0xf]
      %v1026 = vld [vmem:[%s242 + $0x14] sm:$0xf]
      %v1027 = vld [vmem:[%s242 + $0x18] sm:$0xf]
      %v1028 = vld [vmem:[%s242 + $0x1c] sm:$0xf]
      %v1029 = vld [vmem:[%s242 + $0x20] sm:$0xf]
      %v1030 = vld [vmem:[%s242 + $0x24] sm:$0xf]
      %v1031 = vld [vmem:[%s242 + $0x28] sm:$0xf]
      %v1032 = vld [vmem:[%s242 + $0x2c] sm:$0xf]
      %v1033 = vld [vmem:[%s242 + $0x30] sm:$0xf]
      %v1034 = vld [vmem:[%s242 + $0x34] sm:$0xf]
      %v1035 = vld [vmem:[%s242 + $0x38] sm:$0xf]
      %v1036 = vld [vmem:[%s242 + $0x3c] sm:$0xf]
      %v1037 = vunpack.c.l.bf16 %v1021
      %v1038 = vunpack.c.l.bf16 %v1022
      %v1039 = vunpack.c.l.bf16 %v1023
      %v1040 = vunpack.c.l.bf16 %v1024
      %v1041 = vunpack.c.l.bf16 %v1025
      %v1042 = vunpack.c.l.bf16 %v1026
      %v1043 = vunpack.c.l.bf16 %v1027
      %v1044 = vunpack.c.l.bf16 %v1028
      %v1045 = vunpack.c.l.bf16 %v1029
      %v1046 = vunpack.c.l.bf16 %v1030
      %v1047 = vunpack.c.l.bf16 %v1031
      %v1048 = vunpack.c.l.bf16 %v1032
      %v1049 = vunpack.c.l.bf16 %v1033
      %v1050 = vunpack.c.l.bf16 %v1034
      %v1051 = vunpack.c.l.bf16 %v1035
      %v1052 = vunpack.c.l.bf16 %v1036
      %v1053 = vmul.f32 %v1037, %v989
      %v1054 = vmul.f32 %v1038, %v991
      %v1055 = vmul.f32 %v1039, %v993
      %v1056 = vmul.f32 %v1040, %v995
      %v1057 = vmul.f32 %v1041, %v997
      %v1058 = vmul.f32 %v1042, %v999
      %v1059 = vmul.f32 %v1043, %v1001
      %v1060 = vmul.f32 %v1044, %v1003
      %v1061 = vmul.f32 %v1045, %v1005
      %v1062 = vmul.f32 %v1046, %v1007
      %v1063 = vmul.f32 %v1047, %v1009
      %v1064 = vmul.f32 %v1048, %v1011
      %v1065 = vmul.f32 %v1049, %v1013
      %v1066 = vmul.f32 %v1050, %v1015
      %v1067 = vmul.f32 %v1051, %v1017
      %v1068 = vmul.f32 %v1052, %v1019
      %v1069 = vpack.c.bf16 %v1054, %v1053
      %v1070 = vpack.c.bf16 %v1056, %v1055
      %v1071 = vpack.c.bf16 %v1058, %v1057
      %v1072 = vpack.c.bf16 %v1060, %v1059
      %v1073 = vpack.c.bf16 %v1062, %v1061
      %v1074 = vpack.c.bf16 %v1064, %v1063
      %v1075 = vpack.c.bf16 %v1066, %v1065
      %v1076 = vpack.c.bf16 %v1068, %v1067
      %v1077 = vld [vmem:[%s4] sm:$0xf]
      %v1078 = vld [vmem:[%s4 + $0x4] sm:$0xf]
      %v1079 = vld [vmem:[%s4 + $0x8] sm:$0xf]
      %v1080 = vld [vmem:[%s4 + $0xc] sm:$0xf]
      %v1081 = vld [vmem:[%s4 + $0x10] sm:$0xf]
      %v1082 = vld [vmem:[%s4 + $0x14] sm:$0xf]
      %v1083 = vld [vmem:[%s4 + $0x18] sm:$0xf]
      %v1084 = vld [vmem:[%s4 + $0x1c] sm:$0xf]
      %v1085 = vld [vmem:[%s4 + $0x20] sm:$0xf]
      %v1086 = vld [vmem:[%s4 + $0x24] sm:$0xf]
      %v1087 = vld [vmem:[%s4 + $0x28] sm:$0xf]
      %v1088 = vld [vmem:[%s4 + $0x2c] sm:$0xf]
      %v1089 = vld [vmem:[%s4 + $0x30] sm:$0xf]
      %v1090 = vld [vmem:[%s4 + $0x34] sm:$0xf]
      %v1091 = vld [vmem:[%s4 + $0x38] sm:$0xf]
      %v1092 = vld [vmem:[%s4 + $0x3c] sm:$0xf]
      %v1109 = vunpack.c.l.b16 %v1077
      %v1110 = vunpack.c.l.b16 %v1078
      %v1111 = vunpack.c.l.b16 %v1079
      %v1112 = vunpack.c.l.b16 %v1080
      %v1113 = vunpack.c.l.b16 %v1081
      %v1114 = vunpack.c.l.b16 %v1082
      %v1115 = vunpack.c.l.b16 %v1083
      %v1116 = vunpack.c.l.b16 %v1084
      %v1117 = vunpack.c.l.b16 %v1085
      %v1118 = vunpack.c.l.b16 %v1086
      %v1119 = vunpack.c.l.b16 %v1087
      %v1120 = vunpack.c.l.b16 %v1088
      %v1121 = vunpack.c.l.b16 %v1089
      %v1122 = vunpack.c.l.b16 %v1090
      %v1123 = vunpack.c.l.b16 %v1091
      %v1124 = vunpack.c.l.b16 %v1092
      %v1125 = vpack.c.b16 %v1110, %v1109
      %v1126 = vpack.c.b16 %v1112, %v1111
      %v1127 = vpack.c.b16 %v1114, %v1113
      %v1128 = vpack.c.b16 %v1116, %v1115
      %v1129 = vpack.c.b16 %v1118, %v1117
      %v1130 = vpack.c.b16 %v1120, %v1119
      %v1131 = vpack.c.b16 %v1122, %v1121
      %v1132 = vpack.c.b16 %v1124, %v1123
      %1141 = vmatprep.subr.bf16.mxu0 0
      %1142 = vmatpush1.bf16.msra.mxu0 %v1132
      %1143 = vmatprep.subr.bf16.mxu0 0
      %1144 = vmatpush1.bf16.msra.mxu0 %v1131
      %1145 = vmatprep.subr.bf16.mxu0 0
      %1146 = vmatpush1.bf16.msra.mxu0 %v1130
      %1147 = vmatprep.subr.bf16.mxu0 0
      %1148 = vmatpush1.bf16.msra.mxu0 %v1129
      %1149 = vmatprep.subr.bf16.mxu0 0
      %1150 = vmatpush1.bf16.msra.mxu0 %v1128
      %1151 = vmatprep.subr.bf16.mxu0 0
      %1152 = vmatpush1.bf16.msra.mxu0 %v1127
      %1153 = vmatprep.subr.bf16.mxu0 0
      %1154 = vmatpush1.bf16.msra.mxu0 %v1126
      %1155 = vmatprep.subr.bf16.mxu0 0
      %1156 = vmatpush1.bf16.msra.mxu0 %v1125
      %1157 = vmatprep.subr.bf16.mxu0 0
      %1158 = vmatpush2.bf16.msra.mxu0 0
      %1159 = vmatprep.subr.bf16.mxu0 0
      %1160 = vmatpush2.bf16.msra.mxu0 0
      %1161 = vmatprep.subr.bf16.mxu0 0
      %1162 = vmatpush2.bf16.msra.mxu0 0
      %1163 = vmatprep.subr.bf16.mxu0 0
      %1164 = vmatpush2.bf16.msra.mxu0 0
      %1165 = vmatprep.subr.bf16.mxu0 0
      %1166 = vmatpush2.bf16.msra.mxu0 0
      %1167 = vmatprep.subr.bf16.mxu0 0
      %1168 = vmatpush2.bf16.msra.mxu0 0
      %1169 = vmatprep.subr.bf16.mxu0 0
      %1170 = vmatpush2.bf16.msra.mxu0 0
      %1171 = vmatprep.subr.bf16.mxu0 0
      %1172 = vmatpush2.bf16.msra.mxu0 0
      %1173 = vmatprep.mubr.bf16.mxu0 0
      %1174 = vmatmul.mubr.bf16.gmra.mxu0 %v1069
      %v1175 = vpop.f32.mrf.mxu0
      %v1176 = vadd.f32 0.0, %v1175
      %v1177 = vpop.f32.mrf.mxu0
      %v1178 = vpop.f32.mrf.mxu0
      %v1179 = vadd.f32 0.0, %v1178
      %v1180 = vpop.f32.mrf.mxu0
      %1181 = vmatprep.mubr.bf16.mxu0 0
      %1182 = vmatmul.mubr.bf16.gmra.mxu0 %v1070
      %v1183 = vpop.f32.mrf.mxu0
      %v1184 = vadd.f32 0.0, %v1183
      %v1185 = vpop.f32.mrf.mxu0
      %v1186 = vpop.f32.mrf.mxu0
      %v1187 = vadd.f32 0.0, %v1186
      %v1188 = vpop.f32.mrf.mxu0
      %1189 = vmatprep.mubr.bf16.mxu0 0
      %1190 = vmatmul.mubr.bf16.gmra.mxu0 %v1071
      %v1191 = vpop.f32.mrf.mxu0
      %v1192 = vadd.f32 0.0, %v1191
      %v1193 = vpop.f32.mrf.mxu0
      %v1194 = vpop.f32.mrf.mxu0
      %v1195 = vadd.f32 0.0, %v1194
      %v1196 = vpop.f32.mrf.mxu0
      %1197 = vmatprep.mubr.bf16.mxu0 0
      %1198 = vmatmul.mubr.bf16.gmra.mxu0 %v1072
      %v1199 = vpop.f32.mrf.mxu0
      %v1200 = vadd.f32 0.0, %v1199
      %v1201 = vpop.f32.mrf.mxu0
      %v1202 = vpop.f32.mrf.mxu0
      %v1203 = vadd.f32 0.0, %v1202
      %v1204 = vpop.f32.mrf.mxu0
      %1205 = vmatprep.mubr.bf16.mxu0 0
      %1206 = vmatmul.mubr.bf16.gmra.mxu0 %v1073
      %v1207 = vpop.f32.mrf.mxu0
      %v1208 = vadd.f32 0.0, %v1207
      %v1209 = vpop.f32.mrf.mxu0
      %v1210 = vpop.f32.mrf.mxu0
      %v1211 = vadd.f32 0.0, %v1210
      %v1212 = vpop.f32.mrf.mxu0
      %1213 = vmatprep.mubr.bf16.mxu0 0
      %1214 = vmatmul.mubr.bf16.gmra.mxu0 %v1074
      %v1215 = vpop.f32.mrf.mxu0
      %v1216 = vadd.f32 0.0, %v1215
      %v1217 = vpop.f32.mrf.mxu0
      %v1218 = vpop.f32.mrf.mxu0
      %v1219 = vadd.f32 0.0, %v1218
      %v1220 = vpop.f32.mrf.mxu0
      %1221 = vmatprep.mubr.bf16.mxu0 0
      %1222 = vmatmul.mubr.bf16.gmra.mxu0 %v1075
      %v1223 = vpop.f32.mrf.mxu0
      %v1224 = vadd.f32 0.0, %v1223
      %v1225 = vpop.f32.mrf.mxu0
      %v1226 = vpop.f32.mrf.mxu0
      %v1227 = vadd.f32 0.0, %v1226
      %v1228 = vpop.f32.mrf.mxu0
      %1229 = vmatprep.mubr.bf16.mxu0 0
      %1230 = vmatmul.mubr.bf16.gmra.mxu0 %v1076
      %v1231 = vpop.f32.mrf.mxu0
      %v1232 = vadd.f32 0.0, %v1231
      %v1233 = vpop.f32.mrf.mxu0
      %v1234 = vpop.f32.mrf.mxu0
      %v1235 = vadd.f32 0.0, %v1234
      %v1236 = vpop.f32.mrf.mxu0
      %1237 = vdwg.mxu0
      %v1238 = vmul.f32 %v1037, %v990
      %v1239 = vmul.f32 %v1038, %v992
      %v1240 = vmul.f32 %v1039, %v994
      %v1241 = vmul.f32 %v1040, %v996
      %v1242 = vmul.f32 %v1041, %v998
      %v1243 = vmul.f32 %v1042, %v1000
      %v1244 = vmul.f32 %v1043, %v1002
      %v1245 = vmul.f32 %v1044, %v1004
      %v1246 = vmul.f32 %v1045, %v1006
      %v1247 = vmul.f32 %v1046, %v1008
      %v1248 = vmul.f32 %v1047, %v1010
      %v1249 = vmul.f32 %v1048, %v1012
      %v1250 = vmul.f32 %v1049, %v1014
      %v1251 = vmul.f32 %v1050, %v1016
      %v1252 = vmul.f32 %v1051, %v1018
      %v1253 = vmul.f32 %v1052, %v1020
      %v1254 = vpack.c.bf16 %v1239, %v1238
      %v1255 = vpack.c.bf16 %v1241, %v1240
      %v1256 = vpack.c.bf16 %v1243, %v1242
      %v1257 = vpack.c.bf16 %v1245, %v1244
      %v1258 = vpack.c.bf16 %v1247, %v1246
      %v1259 = vpack.c.bf16 %v1249, %v1248
      %v1260 = vpack.c.bf16 %v1251, %v1250
      %v1261 = vpack.c.bf16 %v1253, %v1252
      %1262 = vmatprep.subr.bf16.mxu0 0
      %1263 = vmatpush1.bf16.msra.mxu0 %v1132
      %1264 = vmatprep.subr.bf16.mxu0 0
      %1265 = vmatpush1.bf16.msra.mxu0 %v1131
      %1266 = vmatprep.subr.bf16.mxu0 0
      %1267 = vmatpush1.bf16.msra.mxu0 %v1130
      %1268 = vmatprep.subr.bf16.mxu0 0
      %1269 = vmatpush1.bf16.msra.mxu0 %v1129
      %1270 = vmatprep.subr.bf16.mxu0 0
      %1271 = vmatpush1.bf16.msra.mxu0 %v1128
      %1272 = vmatprep.subr.bf16.mxu0 0
      %1273 = vmatpush1.bf16.msra.mxu0 %v1127
      %1274 = vmatprep.subr.bf16.mxu0 0
      %1275 = vmatpush1.bf16.msra.mxu0 %v1126
      %1276 = vmatprep.subr.bf16.mxu0 0
      %1277 = vmatpush1.bf16.msra.mxu0 %v1125
      %1278 = vmatprep.subr.bf16.mxu0 0
      %1279 = vmatpush2.bf16.msra.mxu0 0
      %1280 = vmatprep.subr.bf16.mxu0 0
      %1281 = vmatpush2.bf16.msra.mxu0 0
      %1282 = vmatprep.subr.bf16.mxu0 0
      %1283 = vmatpush2.bf16.msra.mxu0 0
      %1284 = vmatprep.subr.bf16.mxu0 0
      %1285 = vmatpush2.bf16.msra.mxu0 0
      %1286 = vmatprep.subr.bf16.mxu0 0
      %1287 = vmatpush2.bf16.msra.mxu0 0
      %1288 = vmatprep.subr.bf16.mxu0 0
      %1289 = vmatpush2.bf16.msra.mxu0 0
      %1290 = vmatprep.subr.bf16.mxu0 0
      %1291 = vmatpush2.bf16.msra.mxu0 0
      %1292 = vmatprep.subr.bf16.mxu0 0
      %1293 = vmatpush2.bf16.msra.mxu0 0
      %1294 = vmatprep.mubr.bf16.mxu0 0
      %1295 = vmatmul.mubr.bf16.gmra.mxu0 %v1254
      %v1296 = vpop.f32.mrf.mxu0
      %v1297 = vadd.f32 0.0, %v1296
      %v1298 = vpop.f32.mrf.mxu0
      %v1299 = vpop.f32.mrf.mxu0
      %v1300 = vadd.f32 0.0, %v1299
      %v1301 = vpop.f32.mrf.mxu0
      %1302 = vmatprep.mubr.bf16.mxu0 0
      %1303 = vmatmul.mubr.bf16.gmra.mxu0 %v1255
      %v1304 = vpop.f32.mrf.mxu0
      %v1305 = vadd.f32 0.0, %v1304
      %v1306 = vpop.f32.mrf.mxu0
      %v1307 = vpop.f32.mrf.mxu0
      %v1308 = vadd.f32 0.0, %v1307
      %v1309 = vpop.f32.mrf.mxu0
      %1310 = vmatprep.mubr.bf16.mxu0 0
      %1311 = vmatmul.mubr.bf16.gmra.mxu0 %v1256
      %v1312 = vpop.f32.mrf.mxu0
      %v1313 = vadd.f32 0.0, %v1312
      %v1314 = vpop.f32.mrf.mxu0
      %v1315 = vpop.f32.mrf.mxu0
      %v1316 = vadd.f32 0.0, %v1315
      %v1317 = vpop.f32.mrf.mxu0
      %1318 = vmatprep.mubr.bf16.mxu0 0
      %1319 = vmatmul.mubr.bf16.gmra.mxu0 %v1257
      %v1320 = vpop.f32.mrf.mxu0
      %v1321 = vadd.f32 0.0, %v1320
      %v1322 = vpop.f32.mrf.mxu0
      %v1323 = vpop.f32.mrf.mxu0
      %v1324 = vadd.f32 0.0, %v1323
      %v1325 = vpop.f32.mrf.mxu0
      %1326 = vmatprep.mubr.bf16.mxu0 0
      %1327 = vmatmul.mubr.bf16.gmra.mxu0 %v1258
      %v1328 = vpop.f32.mrf.mxu0
      %v1329 = vadd.f32 0.0, %v1328
      %v1330 = vpop.f32.mrf.mxu0
      %v1331 = vpop.f32.mrf.mxu0
      %v1332 = vadd.f32 0.0, %v1331
      %v1333 = vpop.f32.mrf.mxu0
      %1334 = vmatprep.mubr.bf16.mxu0 0
      %1335 = vmatmul.mubr.bf16.gmra.mxu0 %v1259
      %v1336 = vpop.f32.mrf.mxu0
      %v1337 = vadd.f32 0.0, %v1336
      %v1338 = vpop.f32.mrf.mxu0
      %v1339 = vpop.f32.mrf.mxu0
      %v1340 = vadd.f32 0.0, %v1339
      %v1341 = vpop.f32.mrf.mxu0
      %1342 = vmatprep.mubr.bf16.mxu0 0
      %1343 = vmatmul.mubr.bf16.gmra.mxu0 %v1260
      %v1344 = vpop.f32.mrf.mxu0
      %v1345 = vadd.f32 0.0, %v1344
      %v1346 = vpop.f32.mrf.mxu0
      %v1347 = vpop.f32.mrf.mxu0
      %v1348 = vadd.f32 0.0, %v1347
      %v1349 = vpop.f32.mrf.mxu0
      %1350 = vmatprep.mubr.bf16.mxu0 0
      %1351 = vmatmul.mubr.bf16.gmra.mxu0 %v1261
      %v1352 = vpop.f32.mrf.mxu0
      %v1353 = vadd.f32 0.0, %v1352
      %v1354 = vpop.f32.mrf.mxu0
      %v1355 = vpop.f32.mrf.mxu0
      %v1356 = vadd.f32 0.0, %v1355
      %v1357 = vpop.f32.mrf.mxu0
      %1358 = vdwg.mxu0
      %1375 = vrot.lane.b32.xlu0 %v1297, 16
      %v1376 = vpop.permute.xlu0 %1375
      %1377 = vrot.lane.b32.xlu0 %v1300, 16
      %v1378 = vpop.permute.xlu0 %1377
      %1379 = vrot.lane.b32.xlu0 %v1305, 16
      %v1380 = vpop.permute.xlu0 %1379
      %1381 = vrot.lane.b32.xlu0 %v1308, 16
      %v1382 = vpop.permute.xlu0 %1381
      %1383 = vrot.lane.b32.xlu0 %v1313, 16
      %v1384 = vpop.permute.xlu0 %1383
      %1385 = vrot.lane.b32.xlu0 %v1316, 16
      %v1386 = vpop.permute.xlu0 %1385
      %1387 = vrot.lane.b32.xlu0 %v1321, 16
      %v1388 = vpop.permute.xlu0 %1387
      %1389 = vrot.lane.b32.xlu0 %v1324, 16
      %v1390 = vpop.permute.xlu0 %1389
      %1391 = vrot.lane.b32.xlu0 %v1329, 16
      %v1392 = vpop.permute.xlu0 %1391
      %1393 = vrot.lane.b32.xlu0 %v1332, 16
      %v1394 = vpop.permute.xlu0 %1393
      %1395 = vrot.lane.b32.xlu0 %v1337, 16
      %v1396 = vpop.permute.xlu0 %1395
      %1397 = vrot.lane.b32.xlu0 %v1340, 16
      %v1398 = vpop.permute.xlu0 %1397
      %1399 = vrot.lane.b32.xlu0 %v1345, 16
      %v1400 = vpop.permute.xlu0 %1399
      %1401 = vrot.lane.b32.xlu0 %v1348, 16
      %v1402 = vpop.permute.xlu0 %1401
      %1403 = vrot.lane.b32.xlu0 %v1353, 16
      %v1404 = vpop.permute.xlu0 %1403
      %1405 = vrot.lane.b32.xlu0 %v1356, 16
      %v1406 = vpop.permute.xlu0 %1405
      %vm1423 = vcmask 130048
      %v1424 = vsel %vm1423, %v1176, %v1376
      %v1425 = vsel %vm1423, %v1179, %v1378
      %v1426 = vsel %vm1423, %v1184, %v1380
      %v1427 = vsel %vm1423, %v1187, %v1382
      %v1428 = vsel %vm1423, %v1192, %v1384
      %v1429 = vsel %vm1423, %v1195, %v1386
      %v1430 = vsel %vm1423, %v1200, %v1388
      %v1431 = vsel %vm1423, %v1203, %v1390
      %v1432 = vsel %vm1423, %v1208, %v1392
      %v1433 = vsel %vm1423, %v1211, %v1394
      %v1434 = vsel %vm1423, %v1216, %v1396
      %v1435 = vsel %vm1423, %v1219, %v1398
      %v1436 = vsel %vm1423, %v1224, %v1400
      %v1437 = vsel %vm1423, %v1227, %v1402
      %v1438 = vsel %vm1423, %v1232, %v1404
      %v1439 = vsel %vm1423, %v1235, %v1406
      %vm1440 = vcmask 261120
      %1441 = vst.msk [vmem:[%s248] sm:$0xff] %vm1440, %v1424
      %1442 = vst.msk [vmem:[%s248 + $0x8] sm:$0xff] %vm1440, %v1425
      %1443 = vst.msk [vmem:[%s248 + $0x10] sm:$0xff] %vm1440, %v1426
      %1444 = vst.msk [vmem:[%s248 + $0x18] sm:$0xff] %vm1440, %v1427
      %1445 = vst.msk [vmem:[%s248 + $0x20] sm:$0xff] %vm1440, %v1428
      %1446 = vst.msk [vmem:[%s248 + $0x28] sm:$0xff] %vm1440, %v1429
      %1447 = vst.msk [vmem:[%s248 + $0x30] sm:$0xff] %vm1440, %v1430
      %1448 = vst.msk [vmem:[%s248 + $0x38] sm:$0xff] %vm1440, %v1431
      %1449 = vst.msk [vmem:[%s248 + $0x40] sm:$0xff] %vm1440, %v1432
      %1450 = vst.msk [vmem:[%s248 + $0x48] sm:$0xff] %vm1440, %v1433
      %1451 = vst.msk [vmem:[%s248 + $0x50] sm:$0xff] %vm1440, %v1434
      %1452 = vst.msk [vmem:[%s248 + $0x58] sm:$0xff] %vm1440, %v1435
      %1453 = vst.msk [vmem:[%s248 + $0x60] sm:$0xff] %vm1440, %v1436
      %1454 = vst.msk [vmem:[%s248 + $0x68] sm:$0xff] %vm1440, %v1437
      %1455 = vst.msk [vmem:[%s248 + $0x70] sm:$0xff] %vm1440, %v1438
      %1456 = vst.msk [vmem:[%s248 + $0x78] sm:$0xff] %vm1440, %v1439
      %s1457 = smul.u32 16, %s16
      %p1458 = scmp.lt.s32.totalorder %s1457, 31
      %s1459 = scalar_select %p1458, %s1457, 31
      %s1460 = smul.addr %s1459, 8
      %s1461 = scalar_lea.vmem %s5, %s1460
      // Predicated region
      $region41: #{mossformer2_ss_forward.5} parent=39 // pred_check
        %p1462 = pneg %p149
      $region42: #{mossformer2_ss_forward.5} parent=39 // pred_check_branch
        %1464 = sbr.rel (%p1462) target = $region44
      $region43: #{mossformer2_ss_forward.5} parent=39 // pred_region
        %s1465 = smul.u32 16, %s16
      $region44: #{mossformer2_ss_forward.5} parent=39 // pred_fallthru
        _
    $region40: #{mossformer2_ss_forward.5} parent=5 // pred_fallthru
      _
    %p1466 = scmp.le.s32.totalorder 2, %s11
    // Predicated region
    $region45: #{mossformer2_ss_forward.5} parent=5 // pred_check
      %p1467 = pneg %p1466
    $region46: #{mossformer2_ss_forward.5} parent=5 // pred_check_branch
      %1469 = sbr.rel (%p1467) target = $region48
    $region47: #{mossformer2_ss_forward.5} parent=5 // pred_region
      %s1470 = ssub.s32 %s11, 2
      // Predicated region
      $region49: #{mossformer2_ss_forward.5} parent=47 // pred_check
        %p1471 = pneg %p155
      $region50: #{mossformer2_ss_forward.5} parent=47 // pred_check_branch
        %1473 = sbr.rel (%p1471) target = $region52
      $region51: #{mossformer2_ss_forward.5} parent=47 // pred_region
        %s1474 = smul.u32 16, %s17
        %p1475 = scmp.lt.s32.totalorder %s1474, 31
        %s1476 = scalar_select %p1475, %s1474, 31
        %s1477 = smul.addr %s1476, 8
        %s1478 = scalar_lea.vmem %s5, %s1477
      $region52: #{mossformer2_ss_forward.5} parent=47 // pred_fallthru
        _
    $region48: #{mossformer2_ss_forward.5} parent=5 // pred_fallthru
      _
  $region6: #{mossformer2_ss_forward.5} parent=0 // loop_footer
    %s15 = sadd.s32 1, %s11
  $region7: #{mossformer2_ss_forward.5} parent=0 // loop_footer_branch
    %10 = sbr.rel target = $region3
  $region8: #{mossformer2_ss_forward.5} parent=0 // loop_exit
    _

</llo_original>
